<compile_context>
chip_gen: v7x
topology: tpu7x:2x2x1
jax: 0.10.0
libtpu: 0.0.40
codegen_flags: <defaults>
</compile_context>

<pallas_src>
import jax
import jax.numpy as jnp
from jax.experimental import pallas as pl
from jax.experimental.pallas import tpu as pltpu

# ----- small, module-consistent shapes -----
B, T = 2, 8
DIM_INPUT = 16
DIM_VAE_HIDDEN = 32          # must be even (GRU hidden = H/2 per direction)
DIM_OUTPUT = 16
HH = DIM_VAE_HIDDEN // 2     # per-direction GRU hidden size
H = DIM_VAE_HIDDEN
G2 = 2 * HH                  # width of one gate block over the 2 fused streams
PACK_W = 12 * HH             # packed GRU width (3 gates x 4 streams) = 192
XPROJ_W = PACK_W + 2 * H + H  # fused X-projection width: GRU | q-layer1 | head-X = 288


def _vmem():
    return pl.BlockSpec(memory_space=pltpu.MemorySpace.VMEM)


# --------------------------------------------------------------------------
# Single fused kernel: 2 x bidirectional GRU + 2 x (Linear-ReLU-Linear) + head
#
# Packed GRU layout:
#   hidden state h : (B, 4*HH)   stream order [mu_f | sigma_f | mu_b | sigma_b]
#   hp = h @ Whh   : (B, 12*HH)  [fwd: r|z|n (each over mu,sigma) | bwd: r|z|n]
#   xproj = Xf @ Wbig : (B*T, 288) = [GRU proj (192) | q-MLP layer1 (64) | head X (32)]
# --------------------------------------------------------------------------
def fused_kernel(x_ref, eps_ref, wbig_ref, whh_ref, w2q_ref,
                 wz_ref, whz_ref, wo_ref, bias_ref,
                 out_ref, mu_p_ref, sigma_p_ref, mu_q_ref, sigma_q_ref):
    x = x_ref[...]                                   # (B, T, D)
    Bb, Tt, D = x.shape
    xf = x.reshape(Bb * Tt, D)                       # (B*T, D)

    # packed bias table (one DMA): one row-vector per sublane row
    b_big = bias_ref[0:1, 0:XPROJ_W]                 # [bih | b1q | 0]
    bhh = bias_ref[1:2, 0:PACK_W]
    b2q = bias_ref[2:3, 0:2 * H]
    bz = bias_ref[3:4, 0:H]
    bh = bias_ref[4:5, 0:H]
    bo = bias_ref[5:6, 0:DIM_OUTPUT]

    # ---- every X-consuming projection in ONE matmul ----
    xproj = jnp.dot(xf, wbig_ref[...], preferred_element_type=jnp.float32) + b_big
    xp = xproj[:, 0:PACK_W].reshape(Bb, Tt, PACK_W)  # GRU input projections
    h1p = xproj[:, PACK_W:PACK_W + 2 * H]            # q-MLP first-layer pre-act
    xh = xproj[:, PACK_W + 2 * H:XPROJ_W]            # head: xf @ Whx (no bias yet)

    whh = whh_ref[...]                               # (4HH, 12HH) block-diagonal
    h = jnp.zeros((Bb, 4 * HH), jnp.float32)         # [mu_f | sigma_f | mu_b | sigma_b]

    # fully unrolled recurrence; fwd streams walk t=i, bwd streams walk t=T-1-i
    for i in range(Tt):
        j = Tt - 1 - i
        hp = jnp.dot(h, whh, preferred_element_type=jnp.float32) + bhh
        xpf = xp[:, i, 0:6 * HH]                     # fwd streams at time i
        xpb = xp[:, j, 6 * HH:12 * HH]               # bwd streams at time j
        hpf = hp[:, 0:6 * HH]
        hpb = hp[:, 6 * HH:12 * HH]

        # forward-direction streams (mu, sigma fused on the lane axis)
        r_f = jax.nn.sigmoid(xpf[:, 0:G2] + hpf[:, 0:G2])
        z_f = jax.nn.sigmoid(xpf[:, G2:2 * G2] + hpf[:, G2:2 * G2])
        n_f = jnp.tanh(xpf[:, 2 * G2:3 * G2] + r_f * hpf[:, 2 * G2:3 * G2])
        h_f = (1.0 - z_f) * n_f + z_f * h[:, 0:G2]

        # backward-direction streams
        r_b = jax.nn.sigmoid(xpb[:, 0:G2] + hpb[:, 0:G2])
        z_b = jax.nn.sigmoid(xpb[:, G2:2 * G2] + hpb[:, G2:2 * G2])
        n_b = jnp.tanh(xpb[:, 2 * G2:3 * G2] + r_b * hpb[:, 2 * G2:3 * G2])
        h_b = (1.0 - z_b) * n_b + z_b * h[:, G2:2 * G2]

        # single lane-concat per step (state already in Whh's row order)
        h = jnp.concatenate([h_f, h_b], axis=-1)

        # direct static stores: PyTorch bi-GRU output is [fwd | bwd] per timestep
        mu_p_ref[:, i:i + 1, 0:HH] = h_f[:, 0:HH].reshape(Bb, 1, HH)
        sigma_p_ref[:, i:i + 1, 0:HH] = h_f[:, HH:2 * HH].reshape(Bb, 1, HH)
        mu_p_ref[:, j:j + 1, HH:2 * HH] = h_b[:, 0:HH].reshape(Bb, 1, HH)
        sigma_p_ref[:, j:j + 1, HH:2 * HH] = h_b[:, HH:2 * HH].reshape(Bb, 1, HH)

    # ---- q networks (mu & sigma branches fused; block-diagonal 2nd layer) ----
    h1 = jnp.maximum(h1p, 0.0)
    q = jnp.dot(h1, w2q_ref[...], preferred_element_type=jnp.float32) + b2q
    mu_q = q[:, 0:H]
    sigma_q = q[:, H:2 * H]
    mu_q_ref[...] = mu_q.reshape(Bb, Tt, H)
    sigma_q_ref[...] = sigma_q.reshape(Bb, Tt, H)

    # ---- VAE head ----
    # Z = mu_q + exp(sigma_q/2) * eps   (eps is a single (H,) vector, broadcast)
    zlat = mu_q + jnp.exp(sigma_q * 0.5) * eps_ref[...]
    tz = jnp.maximum(
        jnp.dot(zlat, wz_ref[...], preferred_element_type=jnp.float32) + bz, 0.0)
    hid = jnp.maximum(
        xh + jnp.dot(tz, whz_ref[...], preferred_element_type=jnp.float32) + bh, 0.0)
    out = jnp.dot(hid, wo_ref[...], preferred_element_type=jnp.float32) + bo
    out_ref[...] = out.reshape(Bb, Tt, DIM_OUTPUT)


# --------------------------------------------------------------------------
# Raw (PyTorch-layout, pre-transposed) parameter init
# --------------------------------------------------------------------------
def init_raw_params(key):
    scale = 0.1

    def nrm(k, shape):
        return scale * jax.random.normal(k, shape, jnp.float32)

    def gru_params(k):
        ks = jax.random.split(k, 8)
        wih_f = nrm(ks[0], (3 * HH, DIM_INPUT))
        whh_f = nrm(ks[1], (3 * HH, HH))
        bih_f = nrm(ks[2], (3 * HH,))
        bhh_f = nrm(ks[3], (3 * HH,))
        wih_b = nrm(ks[4], (3 * HH, DIM_INPUT))
        whh_b = nrm(ks[5], (3 * HH, HH))
        bih_b = nrm(ks[6], (3 * HH,))
        bhh_b = nrm(ks[7], (3 * HH,))
        return (wih_f.T, whh_f.T, bih_f.reshape(1, -1), bhh_f.reshape(1, -1),
                wih_b.T, whh_b.T, bih_b.reshape(1, -1), bhh_b.reshape(1, -1))

    def mlp_params(k):
        ks = jax.random.split(k, 4)
        w1 = nrm(ks[0], (H, DIM_INPUT))
        b1 = nrm(ks[1], (H,))
        w2 = nrm(ks[2], (H, H))
        b2 = nrm(ks[3], (H,))
        return (w1.T, b1.reshape(1, -1), w2.T, b2.reshape(1, -1))

    k_gmu, k_gsig, k_qmu, k_qsig, k_head = jax.random.split(key, 5)
    kh = jax.random.split(k_head, 6)
    wz = nrm(kh[0], (H, H))
    bz = nrm(kh[1], (H,))
    wh = nrm(kh[2], (H, DIM_INPUT + H))      # hidden Linear (torch layout)
    bh = nrm(kh[3], (H,))
    wo = nrm(kh[4], (DIM_OUTPUT, H))
    bo = nrm(kh[5], (DIM_OUTPUT,))
    # split hidden weight: cat(X, Z) @ W.T == X @ W[:, :D].T + Z @ W[:, D:].T
    head = (wz.T, bz.reshape(1, -1),
            wh[:, :DIM_INPUT].T, wh[:, DIM_INPUT:].T, bh.reshape(1, -1),
            wo.T, bo.reshape(1, -1))

    return {"gru_mu": gru_params(k_gmu), "gru_sigma": gru_params(k_gsig),
            "q_mu": mlp_params(k_qmu), "q_sigma": mlp_params(k_qsig),
            "head": head}


# --------------------------------------------------------------------------
# Pack raw params into fused / block-diagonal layouts (done once at init)
# --------------------------------------------------------------------------
def pack_params(raw):
    def gate_major(mats):
        # mats: per-stream (?, 3*HH) with PyTorch gate order r,z,n
        cols = []
        for g in range(3):
            for m in mats:
                cols.append(m[..., g * HH:(g + 1) * HH])
        return jnp.concatenate(cols, axis=-1)

    (wih_mf, whh_mf, bih_mf, bhh_mf,
     wih_mb, whh_mb, bih_mb, bhh_mb) = raw["gru_mu"]
    (wih_sf, whh_sf, bih_sf, bhh_sf,
     wih_sb, whh_sb, bih_sb, bhh_sb) = raw["gru_sigma"]

    # input projection columns: [fwd streams gate-major (6HH) | bwd streams (6HH)]
    wih = jnp.concatenate([gate_major([wih_mf, wih_sf]),
                           gate_major([wih_mb, wih_sb])], axis=-1)      # (D, 12HH)
    bih = jnp.concatenate([gate_major([bih_mf, bih_sf]),
                           gate_major([bih_mb, bih_sb])], axis=-1)      # (1, 12HH)
    bhh = jnp.concatenate([gate_major([bhh_mf, bhh_sf]),
                           gate_major([bhh_mb, bhh_sb])], axis=-1)      # (1, 12HH)

    # recurrent weight: rows [mu_f|sigma_f|mu_b|sigma_b]; columns in the SAME
    # layout as the input projection -> no per-step concat of gate inputs.
    whh_list = [whh_mf, whh_sf, whh_mb, whh_sb]
    whh = jnp.zeros((4 * HH, PACK_W), jnp.float32)
    for s in range(4):
        base = 0 if s < 2 else 6 * HH
        sub = s % 2
        for g in range(3):
            col0 = base + g * 2 * HH + sub * HH
            whh = whh.at[s * HH:(s + 1) * HH, col0:col0 + HH].set(
                whh_list[s][:, g * HH:(g + 1) * HH])

    # q networks: first layers side-by-side, second layers block-diagonal
    w1m, b1m, w2m, b2m = raw["q_mu"]
    w1s, b1s, w2s, b2s = raw["q_sigma"]
    w1q = jnp.concatenate([w1m, w1s], axis=-1)                          # (D, 2H)
    b1q = jnp.concatenate([b1m, b1s], axis=-1)
    w2q = jnp.zeros((2 * H, 2 * H), jnp.float32)
    w2q = w2q.at[:H, :H].set(w2m).at[H:, H:].set(w2s)
    b2q = jnp.concatenate([b2m, b2s], axis=-1)

    wz, bz, whx, whz, bh, wo, bo = raw["head"]

    # single fused X-projection weight: [GRU | q-layer1 | head-X]  -> (D, 288)
    wbig = jnp.concatenate([wih, w1q, whx], axis=-1)
    b_big = jnp.concatenate([bih, b1q, jnp.zeros((1, H), jnp.float32)], axis=-1)

    # all bias row-vectors in one (8, 288) table (one sublane row each)
    def pad(v):
        return jnp.pad(v, ((0, 0), (0, XPROJ_W - v.shape[-1])))
    bias = jnp.concatenate(
        [pad(v) for v in (b_big, bhh, b2q, bz, bh, bo,
                          jnp.zeros((1, XPROJ_W), jnp.float32),
                          jnp.zeros((1, XPROJ_W), jnp.float32))], axis=0)

    return {"wbig": wbig, "whh": whh, "w2q": w2q,
            "wz": wz, "whz": whz, "wo": wo, "bias": bias}


# --------------------------------------------------------------------------
# Forward: one fused pallas_call, no XLA glue between stages
# --------------------------------------------------------------------------
# TODO(synk): on v7x the two independent GRUs (mu vs sigma) could be split
# across the two TensorCores via pl.core_map; kept single-core here since the
# block-diagonal fusion already collapses the recurrence to one matmul/step.
@jax.jit
def forward(X, packed, eps):
    eps_row = eps.reshape(1, H)
    return pl.pallas_call(
        fused_kernel,
        out_shape=(
            jax.ShapeDtypeStruct((B, T, DIM_OUTPUT), jnp.float32),
            jax.ShapeDtypeStruct((B, T, H), jnp.float32),
            jax.ShapeDtypeStruct((B, T, H), jnp.float32),
            jax.ShapeDtypeStruct((B, T, H), jnp.float32),
            jax.ShapeDtypeStruct((B, T, H), jnp.float32),
        ),
        in_specs=[_vmem()] * 9,
        out_specs=tuple([_vmem()] * 5),
    )(X, eps_row,
      packed["wbig"], packed["whh"], packed["w2q"],
      packed["wz"], packed["whz"], packed["wo"],
      packed["bias"])


# --------------------------------------------------------------------------
# Pure-JAX reference (mirrors PyTorch semantics) for a numeric self-check
# --------------------------------------------------------------------------
@jax.jit
def reference_forward(X, raw, eps):
    def gru_dir(x, wih, whh, bih, bhh, reverse):
        Tt = x.shape[1]
        h = jnp.zeros((x.shape[0], HH), jnp.float32)
        outs = [None] * Tt
        order = range(Tt - 1, -1, -1) if reverse else range(Tt)
        for t in order:
            xp = x[:, t, :] @ wih + bih
            hp = h @ whh + bhh
            r = jax.nn.sigmoid(xp[:, :HH] + hp[:, :HH])
            z = jax.nn.sigmoid(xp[:, HH:2 * HH] + hp[:, HH:2 * HH])
            n = jnp.tanh(xp[:, 2 * HH:] + r * hp[:, 2 * HH:])
            h = (1.0 - z) * n + z * h
            outs[t] = h
        return jnp.stack(outs, axis=1)

    def bigru(x, p):
        wf, hf, bif, bhf, wb, hb, bib, bhb = p
        return jnp.concatenate([gru_dir(x, wf, hf, bif, bhf, False),
                                gru_dir(x, wb, hb, bib, bhb, True)], axis=-1)

    mu_p = bigru(X, raw["gru_mu"])
    sigma_p = bigru(X, raw["gru_sigma"])
    Xf = X.reshape(B * T, DIM_INPUT)

    def mlp(p):
        w1, b1, w2, b2 = p
        return jnp.maximum(Xf @ w1 + b1, 0.0) @ w2 + b2

    mu_q = mlp(raw["q_mu"])
    sigma_q = mlp(raw["q_sigma"])
    wz, bz, whx, whz, bh, wo, bo = raw["head"]
    zlat = mu_q + jnp.exp(sigma_q * 0.5) * eps.reshape(1, -1)
    tz = jnp.maximum(zlat @ wz + bz, 0.0)
    hid = jnp.maximum(Xf @ whx + tz @ whz + bh, 0.0)
    out = hid @ wo + bo
    return (out.reshape(B, T, DIM_OUTPUT), mu_p, sigma_p,
            mu_q.reshape(B, T, H), sigma_q.reshape(B, T, H))


if __name__ == "__main__":
    key = jax.random.PRNGKey(0)
    kx, kp, ke = jax.random.split(key, 3)
    X = jax.random.normal(kx, (B, T, DIM_INPUT), jnp.float32)
    raw = init_raw_params(kp)
    packed = pack_params(raw)
    # TODO(synk): torch.randn(H) is drawn outside the kernel with jax.random
    # (same broadcast semantics, different RNG stream than torch).
    eps = jax.random.normal(ke, (H,), jnp.float32)

    outs = forward(X, packed, eps)
    jax.block_until_ready(outs)

    out, mu_p, sigma_p, mu_q, sigma_q = outs
    assert out.shape == (B, T, DIM_OUTPUT)
    assert mu_p.shape == (B, T, H)
    assert sigma_p.shape == (B, T, H)
    assert mu_q.shape == (B, T, H)
    assert sigma_q.shape == (B, T, H)

    # numeric self-check against a straightforward (unpacked) reference
    refs = reference_forward(X, raw, eps)
    names = ("out", "mu_p", "sigma_p", "mu_q", "sigma_q")
    for name, a, b in zip(names, outs, refs):
        err = float(jnp.max(jnp.abs(a - b)))
        assert err < 1e-3, f"{name} mismatch vs reference: max abs err {err}"

    print("KERNEL_OK")
</pallas_src>

<mosaic_0001>
module attributes {stable_mosaic.version = 11 : i64} {
  func.func @fused_kernel(%arg0: memref<2x8x16xf32, #tpu.memory_space<vmem>>, %arg1: memref<1x32xf32, #tpu.memory_space<vmem>>, %arg2: memref<16x288xf32, #tpu.memory_space<vmem>>, %arg3: memref<64x192xf32, #tpu.memory_space<vmem>>, %arg4: memref<64x64xf32, #tpu.memory_space<vmem>>, %arg5: memref<32x32xf32, #tpu.memory_space<vmem>>, %arg6: memref<32x32xf32, #tpu.memory_space<vmem>>, %arg7: memref<32x16xf32, #tpu.memory_space<vmem>>, %arg8: memref<8x288xf32, #tpu.memory_space<vmem>>, %arg9: memref<2x8x16xf32, #tpu.memory_space<vmem>>, %arg10: memref<2x8x32xf32, #tpu.memory_space<vmem>>, %arg11: memref<2x8x32xf32, #tpu.memory_space<vmem>>, %arg12: memref<2x8x32xf32, #tpu.memory_space<vmem>>, %arg13: memref<2x8x32xf32, #tpu.memory_space<vmem>>) attributes {dimension_semantics = [], scalar_prefetch = 0 : i64, scratch_operands = 0 : i64, tpu.core_type = #tpu.core_type<tc>} {
    %c0 = arith.constant 0 : index
    %c0_0 = arith.constant 0 : index
    %c0_1 = arith.constant 0 : index
    %0 = vector.load %arg0[%c0, %c0_0, %c0_1] : memref<2x8x16xf32, #tpu.memory_space<vmem>>, vector<2x8x16xf32>
    %1 = vector.shape_cast %0 : vector<2x8x16xf32> to vector<16x16xf32>
    %c0_2 = arith.constant 0 : index
    %c0_3 = arith.constant 0 : index
    %2 = vector.load %arg8[%c0_2, %c0_3] : memref<8x288xf32, #tpu.memory_space<vmem>>, vector<1x288xf32>
    %c1 = arith.constant 1 : index
    %c0_4 = arith.constant 0 : index
    %3 = vector.load %arg8[%c1, %c0_4] : memref<8x288xf32, #tpu.memory_space<vmem>>, vector<1x192xf32>
    %c2 = arith.constant 2 : index
    %c0_5 = arith.constant 0 : index
    %4 = vector.load %arg8[%c2, %c0_5] : memref<8x288xf32, #tpu.memory_space<vmem>>, vector<1x64xf32>
    %c3 = arith.constant 3 : index
    %c0_6 = arith.constant 0 : index
    %5 = vector.load %arg8[%c3, %c0_6] : memref<8x288xf32, #tpu.memory_space<vmem>>, vector<1x32xf32>
    %c4 = arith.constant 4 : index
    %c0_7 = arith.constant 0 : index
    %6 = vector.load %arg8[%c4, %c0_7] : memref<8x288xf32, #tpu.memory_space<vmem>>, vector<1x32xf32>
    %c5 = arith.constant 5 : index
    %c0_8 = arith.constant 0 : index
    %7 = vector.load %arg8[%c5, %c0_8] : memref<8x288xf32, #tpu.memory_space<vmem>>, vector<1x16xf32>
    %c0_9 = arith.constant 0 : index
    %c0_10 = arith.constant 0 : index
    %8 = vector.load %arg2[%c0_9, %c0_10] : memref<16x288xf32, #tpu.memory_space<vmem>>, vector<16x288xf32>
    %cst = arith.constant dense<0.000000e+00> : vector<16x288xf32>
    %9 = tpu.matmul %1, %8, %cst {dimension_numbers = #tpu.dot_dimension_numbers<[1], [0], [0], [1], [0, 0, 1, 1], [], []>} : vector<16x16xf32>, vector<16x288xf32>, vector<16x288xf32> -> vector<16x288xf32>
    %10 = vector.broadcast %2 : vector<1x288xf32> to vector<16x288xf32>
    %11 = arith.addf %9, %10 : vector<16x288xf32>
    %12 = vector.extract_strided_slice %11 {offsets = [0, 0], sizes = [16, 192], strides = [1, 1]} : vector<16x288xf32> to vector<16x192xf32>
    %13 = vector.shape_cast %12 : vector<16x192xf32> to vector<2x8x192xf32>
    %14 = vector.extract_strided_slice %11 {offsets = [0, 192], sizes = [16, 64], strides = [1, 1]} : vector<16x288xf32> to vector<16x64xf32>
    %15 = vector.extract_strided_slice %11 {offsets = [0, 256], sizes = [16, 32], strides = [1, 1]} : vector<16x288xf32> to vector<16x32xf32>
    %c0_11 = arith.constant 0 : index
    %c0_12 = arith.constant 0 : index
    %16 = vector.load %arg3[%c0_11, %c0_12] : memref<64x192xf32, #tpu.memory_space<vmem>>, vector<64x192xf32>
    %cst_13 = arith.constant 0.000000e+00 : f32
    %17 = vector.broadcast %cst_13 : f32 to vector<2x64xf32>
    %cst_14 = arith.constant dense<0.000000e+00> : vector<2x192xf32>
    %18 = tpu.matmul %17, %16, %cst_14 {dimension_numbers = #tpu.dot_dimension_numbers<[1], [0], [0], [1], [0, 0, 1, 1], [], []>} : vector<2x64xf32>, vector<64x192xf32>, vector<2x192xf32> -> vector<2x192xf32>
    %19 = vector.broadcast %3 : vector<1x192xf32> to vector<2x192xf32>
    %20 = arith.addf %18, %19 : vector<2x192xf32>
    %21 = vector.extract_strided_slice %13 {offsets = [0, 0, 0], sizes = [2, 1, 96], strides = [1, 1, 1]} : vector<2x8x192xf32> to vector<2x1x96xf32>
    %22 = vector.shape_cast %21 : vector<2x1x96xf32> to vector<2x96xf32>
    %23 = vector.extract_strided_slice %13 {offsets = [0, 7, 96], sizes = [2, 1, 96], strides = [1, 1, 1]} : vector<2x8x192xf32> to vector<2x1x96xf32>
    %24 = vector.shape_cast %23 : vector<2x1x96xf32> to vector<2x96xf32>
    %25 = vector.extract_strided_slice %20 {offsets = [0, 0], sizes = [2, 96], strides = [1, 1]} : vector<2x192xf32> to vector<2x96xf32>
    %26 = vector.extract_strided_slice %20 {offsets = [0, 96], sizes = [2, 96], strides = [1, 1]} : vector<2x192xf32> to vector<2x96xf32>
    %27 = vector.extract_strided_slice %22 {offsets = [0, 0], sizes = [2, 32], strides = [1, 1]} : vector<2x96xf32> to vector<2x32xf32>
    %28 = vector.extract_strided_slice %25 {offsets = [0, 0], sizes = [2, 32], strides = [1, 1]} : vector<2x96xf32> to vector<2x32xf32>
    %29 = arith.addf %27, %28 : vector<2x32xf32>
    %30 = arith.negf %29 : vector<2x32xf32>
    %31 = math.exp %30 : vector<2x32xf32>
    %cst_15 = arith.constant 1.000000e+00 : f32
    %32 = vector.broadcast %cst_15 : f32 to vector<2x32xf32>
    %33 = arith.addf %32, %31 : vector<2x32xf32>
    %34 = arith.divf %32, %33 : vector<2x32xf32>
    %35 = vector.extract_strided_slice %22 {offsets = [0, 32], sizes = [2, 32], strides = [1, 1]} : vector<2x96xf32> to vector<2x32xf32>
    %36 = vector.extract_strided_slice %25 {offsets = [0, 32], sizes = [2, 32], strides = [1, 1]} : vector<2x96xf32> to vector<2x32xf32>
    %37 = arith.addf %35, %36 : vector<2x32xf32>
    %38 = arith.negf %37 : vector<2x32xf32>
    %39 = math.exp %38 : vector<2x32xf32>
    %cst_16 = arith.constant 1.000000e+00 : f32
    %40 = vector.broadcast %cst_16 : f32 to vector<2x32xf32>
    %41 = arith.addf %40, %39 : vector<2x32xf32>
    %42 = arith.divf %40, %41 : vector<2x32xf32>
    %43 = vector.extract_strided_slice %22 {offsets = [0, 64], sizes = [2, 32], strides = [1, 1]} : vector<2x96xf32> to vector<2x32xf32>
    %44 = vector.extract_strided_slice %25 {offsets = [0, 64], sizes = [2, 32], strides = [1, 1]} : vector<2x96xf32> to vector<2x32xf32>
    %45 = arith.mulf %34, %44 : vector<2x32xf32>
    %46 = arith.addf %43, %45 : vector<2x32xf32>
    %47 = math.tanh %46 : vector<2x32xf32>
    %cst_17 = arith.constant 1.000000e+00 : f32
    %48 = vector.broadcast %cst_17 : f32 to vector<2x32xf32>
    %49 = arith.subf %48, %42 : vector<2x32xf32>
    %50 = arith.mulf %49, %47 : vector<2x32xf32>
    %51 = vector.extract_strided_slice %17 {offsets = [0, 0], sizes = [2, 32], strides = [1, 1]} : vector<2x64xf32> to vector<2x32xf32>
    %52 = arith.mulf %42, %51 : vector<2x32xf32>
    %53 = arith.addf %50, %52 : vector<2x32xf32>
    %54 = vector.extract_strided_slice %24 {offsets = [0, 0], sizes = [2, 32], strides = [1, 1]} : vector<2x96xf32> to vector<2x32xf32>
    %55 = vector.extract_strided_slice %26 {offsets = [0, 0], sizes = [2, 32], strides = [1, 1]} : vector<2x96xf32> to vector<2x32xf32>
    %56 = arith.addf %54, %55 : vector<2x32xf32>
    %57 = arith.negf %56 : vector<2x32xf32>
    %58 = math.exp %57 : vector<2x32xf32>
    %cst_18 = arith.constant 1.000000e+00 : f32
    %59 = vector.broadcast %cst_18 : f32 to vector<2x32xf32>
    %60 = arith.addf %59, %58 : vector<2x32xf32>
    %61 = arith.divf %59, %60 : vector<2x32xf32>
    %62 = vector.extract_strided_slice %24 {offsets = [0, 32], sizes = [2, 32], strides = [1, 1]} : vector<2x96xf32> to vector<2x32xf32>
    %63 = vector.extract_strided_slice %26 {offsets = [0, 32], sizes = [2, 32], strides = [1, 1]} : vector<2x96xf32> to vector<2x32xf32>
    %64 = arith.addf %62, %63 : vector<2x32xf32>
    %65 = arith.negf %64 : vector<2x32xf32>
    %66 = math.exp %65 : vector<2x32xf32>
    %cst_19 = arith.constant 1.000000e+00 : f32
    %67 = vector.broadcast %cst_19 : f32 to vector<2x32xf32>
    %68 = arith.addf %67, %66 : vector<2x32xf32>
    %69 = arith.divf %67, %68 : vector<2x32xf32>
    %70 = vector.extract_strided_slice %24 {offsets = [0, 64], sizes = [2, 32], strides = [1, 1]} : vector<2x96xf32> to vector<2x32xf32>
    %71 = vector.extract_strided_slice %26 {offsets = [0, 64], sizes = [2, 32], strides = [1, 1]} : vector<2x96xf32> to vector<2x32xf32>
    %72 = arith.mulf %61, %71 : vector<2x32xf32>
    %73 = arith.addf %70, %72 : vector<2x32xf32>
    %74 = math.tanh %73 : vector<2x32xf32>
    %cst_20 = arith.constant 1.000000e+00 : f32
    %75 = vector.broadcast %cst_20 : f32 to vector<2x32xf32>
    %76 = arith.subf %75, %69 : vector<2x32xf32>
    %77 = arith.mulf %76, %74 : vector<2x32xf32>
    %78 = vector.extract_strided_slice %17 {offsets = [0, 32], sizes = [2, 32], strides = [1, 1]} : vector<2x64xf32> to vector<2x32xf32>
    %79 = arith.mulf %69, %78 : vector<2x32xf32>
    %80 = arith.addf %77, %79 : vector<2x32xf32>
    %81 = tpu.concatenate %53, %80 in 1 : vector<2x32xf32>, vector<2x32xf32> -> vector<2x64xf32>
    %82 = vector.extract_strided_slice %53 {offsets = [0, 0], sizes = [2, 16], strides = [1, 1]} : vector<2x32xf32> to vector<2x16xf32>
    %83 = vector.shape_cast %82 : vector<2x16xf32> to vector<2x1x16xf32>
    %c0_21 = arith.constant 0 : index
    %c0_22 = arith.constant 0 : index
    %c0_23 = arith.constant 0 : index
    %84 = vector.load %arg10[%c0_21, %c0_22, %c0_23] : memref<2x8x32xf32, #tpu.memory_space<vmem>>, vector<2x1x16xf32>
    tpu.vector_store %arg10[%c0_21, %c0_22, %c0_23], %83 {strides = array<i32>} : memref<2x8x32xf32, #tpu.memory_space<vmem>>, vector<2x1x16xf32>,
    %85 = vector.extract_strided_slice %53 {offsets = [0, 16], sizes = [2, 16], strides = [1, 1]} : vector<2x32xf32> to vector<2x16xf32>
    %86 = vector.shape_cast %85 : vector<2x16xf32> to vector<2x1x16xf32>
    %c0_24 = arith.constant 0 : index
    %c0_25 = arith.constant 0 : index
    %c0_26 = arith.constant 0 : index
    %87 = vector.load %arg11[%c0_24, %c0_25, %c0_26] : memref<2x8x32xf32, #tpu.memory_space<vmem>>, vector<2x1x16xf32>
    tpu.vector_store %arg11[%c0_24, %c0_25, %c0_26], %86 {strides = array<i32>} : memref<2x8x32xf32, #tpu.memory_space<vmem>>, vector<2x1x16xf32>,
    %88 = vector.extract_strided_slice %80 {offsets = [0, 0], sizes = [2, 16], strides = [1, 1]} : vector<2x32xf32> to vector<2x16xf32>
    %89 = vector.shape_cast %88 : vector<2x16xf32> to vector<2x1x16xf32>
    %c0_27 = arith.constant 0 : index
    %c7 = arith.constant 7 : index
    %c16 = arith.constant 16 : index
    %90 = vector.load %arg10[%c0_27, %c7, %c16] : memref<2x8x32xf32, #tpu.memory_space<vmem>>, vector<2x1x16xf32>
    tpu.vector_store %arg10[%c0_27, %c7, %c16], %89 {strides = array<i32>} : memref<2x8x32xf32, #tpu.memory_space<vmem>>, vector<2x1x16xf32>,
    %91 = vector.extract_strided_slice %80 {offsets = [0, 16], sizes = [2, 16], strides = [1, 1]} : vector<2x32xf32> to vector<2x16xf32>
    %92 = vector.shape_cast %91 : vector<2x16xf32> to vector<2x1x16xf32>
    %c0_28 = arith.constant 0 : index
    %c7_29 = arith.constant 7 : index
    %c16_30 = arith.constant 16 : index
    %93 = vector.load %arg11[%c0_28, %c7_29, %c16_30] : memref<2x8x32xf32, #tpu.memory_space<vmem>>, vector<2x1x16xf32>
    tpu.vector_store %arg11[%c0_28, %c7_29, %c16_30], %92 {strides = array<i32>} : memref<2x8x32xf32, #tpu.memory_space<vmem>>, vector<2x1x16xf32>,
    %cst_31 = arith.constant dense<0.000000e+00> : vector<2x192xf32>
    %94 = tpu.matmul %81, %16, %cst_31 {dimension_numbers = #tpu.dot_dimension_numbers<[1], [0], [0], [1], [0, 0, 1, 1], [], []>} : vector<2x64xf32>, vector<64x192xf32>, vector<2x192xf32> -> vector<2x192xf32>
    %95 = vector.broadcast %3 : vector<1x192xf32> to vector<2x192xf32>
    %96 = arith.addf %94, %95 : vector<2x192xf32>
    %97 = vector.extract_strided_slice %13 {offsets = [0, 1, 0], sizes = [2, 1, 96], strides = [1, 1, 1]} : vector<2x8x192xf32> to vector<2x1x96xf32>
    %98 = vector.shape_cast %97 : vector<2x1x96xf32> to vector<2x96xf32>
    %99 = vector.extract_strided_slice %13 {offsets = [0, 6, 96], sizes = [2, 1, 96], strides = [1, 1, 1]} : vector<2x8x192xf32> to vector<2x1x96xf32>
    %100 = vector.shape_cast %99 : vector<2x1x96xf32> to vector<2x96xf32>
    %101 = vector.extract_strided_slice %96 {offsets = [0, 0], sizes = [2, 96], strides = [1, 1]} : vector<2x192xf32> to vector<2x96xf32>
    %102 = vector.extract_strided_slice %96 {offsets = [0, 96], sizes = [2, 96], strides = [1, 1]} : vector<2x192xf32> to vector<2x96xf32>
    %103 = vector.extract_strided_slice %98 {offsets = [0, 0], sizes = [2, 32], strides = [1, 1]} : vector<2x96xf32> to vector<2x32xf32>
    %104 = vector.extract_strided_slice %101 {offsets = [0, 0], sizes = [2, 32], strides = [1, 1]} : vector<2x96xf32> to vector<2x32xf32>
    %105 = arith.addf %103, %104 : vector<2x32xf32>
    %106 = arith.negf %105 : vector<2x32xf32>
    %107 = math.exp %106 : vector<2x32xf32>
    %cst_32 = arith.constant 1.000000e+00 : f32
    %108 = vector.broadcast %cst_32 : f32 to vector<2x32xf32>
    %109 = arith.addf %108, %107 : vector<2x32xf32>
    %110 = arith.divf %108, %109 : vector<2x32xf32>
    %111 = vector.extract_strided_slice %98 {offsets = [0, 32], sizes = [2, 32], strides = [1, 1]} : vector<2x96xf32> to vector<2x32xf32>
    %112 = vector.extract_strided_slice %101 {offsets = [0, 32], sizes = [2, 32], strides = [1, 1]} : vector<2x96xf32> to vector<2x32xf32>
    %113 = arith.addf %111, %112 : vector<2x32xf32>
    %114 = arith.negf %113 : vector<2x32xf32>
    %115 = math.exp %114 : vector<2x32xf32>
    %cst_33 = arith.constant 1.000000e+00 : f32
    %116 = vector.broadcast %cst_33 : f32 to vector<2x32xf32>
    %117 = arith.addf %116, %115 : vector<2x32xf32>
    %118 = arith.divf %116, %117 : vector<2x32xf32>
    %119 = vector.extract_strided_slice %98 {offsets = [0, 64], sizes = [2, 32], strides = [1, 1]} : vector<2x96xf32> to vector<2x32xf32>
    %120 = vector.extract_strided_slice %101 {offsets = [0, 64], sizes = [2, 32], strides = [1, 1]} : vector<2x96xf32> to vector<2x32xf32>
    %121 = arith.mulf %110, %120 : vector<2x32xf32>
    %122 = arith.addf %119, %121 : vector<2x32xf32>
    %123 = math.tanh %122 : vector<2x32xf32>
    %cst_34 = arith.constant 1.000000e+00 : f32
    %124 = vector.broadcast %cst_34 : f32 to vector<2x32xf32>
    %125 = arith.subf %124, %118 : vector<2x32xf32>
    %126 = arith.mulf %125, %123 : vector<2x32xf32>
    %127 = vector.extract_strided_slice %81 {offsets = [0, 0], sizes = [2, 32], strides = [1, 1]} : vector<2x64xf32> to vector<2x32xf32>
    %128 = arith.mulf %118, %127 : vector<2x32xf32>
    %129 = arith.addf %126, %128 : vector<2x32xf32>
    %130 = vector.extract_strided_slice %100 {offsets = [0, 0], sizes = [2, 32], strides = [1, 1]} : vector<2x96xf32> to vector<2x32xf32>
    %131 = vector.extract_strided_slice %102 {offsets = [0, 0], sizes = [2, 32], strides = [1, 1]} : vector<2x96xf32> to vector<2x32xf32>
    %132 = arith.addf %130, %131 : vector<2x32xf32>
    %133 = arith.negf %132 : vector<2x32xf32>
    %134 = math.exp %133 : vector<2x32xf32>
    %cst_35 = arith.constant 1.000000e+00 : f32
    %135 = vector.broadcast %cst_35 : f32 to vector<2x32xf32>
    %136 = arith.addf %135, %134 : vector<2x32xf32>
    %137 = arith.divf %135, %136 : vector<2x32xf32>
    %138 = vector.extract_strided_slice %100 {offsets = [0, 32], sizes = [2, 32], strides = [1, 1]} : vector<2x96xf32> to vector<2x32xf32>
    %139 = vector.extract_strided_slice %102 {offsets = [0, 32], sizes = [2, 32], strides = [1, 1]} : vector<2x96xf32> to vector<2x32xf32>
    %140 = arith.addf %138, %139 : vector<2x32xf32>
    %141 = arith.negf %140 : vector<2x32xf32>
    %142 = math.exp %141 : vector<2x32xf32>
    %cst_36 = arith.constant 1.000000e+00 : f32
    %143 = vector.broadcast %cst_36 : f32 to vector<2x32xf32>
    %144 = arith.addf %143, %142 : vector<2x32xf32>
    %145 = arith.divf %143, %144 : vector<2x32xf32>
    %146 = vector.extract_strided_slice %100 {offsets = [0, 64], sizes = [2, 32], strides = [1, 1]} : vector<2x96xf32> to vector<2x32xf32>
    %147 = vector.extract_strided_slice %102 {offsets = [0, 64], sizes = [2, 32], strides = [1, 1]} : vector<2x96xf32> to vector<2x32xf32>
    %148 = arith.mulf %137, %147 : vector<2x32xf32>
    %149 = arith.addf %146, %148 : vector<2x32xf32>
    %150 = math.tanh %149 : vector<2x32xf32>
    %cst_37 = arith.constant 1.000000e+00 : f32
    %151 = vector.broadcast %cst_37 : f32 to vector<2x32xf32>
    %152 = arith.subf %151, %145 : vector<2x32xf32>
    %153 = arith.mulf %152, %150 : vector<2x32xf32>
    %154 = vector.extract_strided_slice %81 {offsets = [0, 32], sizes = [2, 32], strides = [1, 1]} : vector<2x64xf32> to vector<2x32xf32>
    %155 = arith.mulf %145, %154 : vector<2x32xf32>
    %156 = arith.addf %153, %155 : vector<2x32xf32>
    %157 = tpu.concatenate %129, %156 in 1 : vector<2x32xf32>, vector<2x32xf32> -> vector<2x64xf32>
    %158 = vector.extract_strided_slice %129 {offsets = [0, 0], sizes = [2, 16], strides = [1, 1]} : vector<2x32xf32> to vector<2x16xf32>
    %159 = vector.shape_cast %158 : vector<2x16xf32> to vector<2x1x16xf32>
    %c0_38 = arith.constant 0 : index
    %c1_39 = arith.constant 1 : index
    %c0_40 = arith.constant 0 : index
    %160 = vector.load %arg10[%c0_38, %c1_39, %c0_40] : memref<2x8x32xf32, #tpu.memory_space<vmem>>, vector<2x1x16xf32>
    tpu.vector_store %arg10[%c0_38, %c1_39, %c0_40], %159 {strides = array<i32>} : memref<2x8x32xf32, #tpu.memory_space<vmem>>, vector<2x1x16xf32>,
    %161 = vector.extract_strided_slice %129 {offsets = [0, 16], sizes = [2, 16], strides = [1, 1]} : vector<2x32xf32> to vector<2x16xf32>
    %162 = vector.shape_cast %161 : vector<2x16xf32> to vector<2x1x16xf32>
    %c0_41 = arith.constant 0 : index
    %c1_42 = arith.constant 1 : index
    %c0_43 = arith.constant 0 : index
    %163 = vector.load %arg11[%c0_41, %c1_42, %c0_43] : memref<2x8x32xf32, #tpu.memory_space<vmem>>, vector<2x1x16xf32>
    tpu.vector_store %arg11[%c0_41, %c1_42, %c0_43], %162 {strides = array<i32>} : memref<2x8x32xf32, #tpu.memory_space<vmem>>, vector<2x1x16xf32>,
    %164 = vector.extract_strided_slice %156 {offsets = [0, 0], sizes = [2, 16], strides = [1, 1]} : vector<2x32xf32> to vector<2x16xf32>
    %165 = vector.shape_cast %164 : vector<2x16xf32> to vector<2x1x16xf32>
    %c0_44 = arith.constant 0 : index
    %c6 = arith.constant 6 : index
    %c16_45 = arith.constant 16 : index
    %166 = vector.load %arg10[%c0_44, %c6, %c16_45] : memref<2x8x32xf32, #tpu.memory_space<vmem>>, vector<2x1x16xf32>
    tpu.vector_store %arg10[%c0_44, %c6, %c16_45], %165 {strides = array<i32>} : memref<2x8x32xf32, #tpu.memory_space<vmem>>, vector<2x1x16xf32>,
    %167 = vector.extract_strided_slice %156 {offsets = [0, 16], sizes = [2, 16], strides = [1, 1]} : vector<2x32xf32> to vector<2x16xf32>
    %168 = vector.shape_cast %167 : vector<2x16xf32> to vector<2x1x16xf32>
    %c0_46 = arith.constant 0 : index
    %c6_47 = arith.constant 6 : index
    %c16_48 = arith.constant 16 : index
    %169 = vector.load %arg11[%c0_46, %c6_47, %c16_48] : memref<2x8x32xf32, #tpu.memory_space<vmem>>, vector<2x1x16xf32>
    tpu.vector_store %arg11[%c0_46, %c6_47, %c16_48], %168 {strides = array<i32>} : memref<2x8x32xf32, #tpu.memory_space<vmem>>, vector<2x1x16xf32>,
    %cst_49 = arith.constant dense<0.000000e+00> : vector<2x192xf32>
    %170 = tpu.matmul %157, %16, %cst_49 {dimension_numbers = #tpu.dot_dimension_numbers<[1], [0], [0], [1], [0, 0, 1, 1], [], []>} : vector<2x64xf32>, vector<64x192xf32>, vector<2x192xf32> -> vector<2x192xf32>
    %171 = vector.broadcast %3 : vector<1x192xf32> to vector<2x192xf32>
    %172 = arith.addf %170, %171 : vector<2x192xf32>
    %173 = vector.extract_strided_slice %13 {offsets = [0, 2, 0], sizes = [2, 1, 96], strides = [1, 1, 1]} : vector<2x8x192xf32> to vector<2x1x96xf32>
    %174 = vector.shape_cast %173 : vector<2x1x96xf32> to vector<2x96xf32>
    %175 = vector.extract_strided_slice %13 {offsets = [0, 5, 96], sizes = [2, 1, 96], strides = [1, 1, 1]} : vector<2x8x192xf32> to vector<2x1x96xf32>
    %176 = vector.shape_cast %175 : vector<2x1x96xf32> to vector<2x96xf32>
    %177 = vector.extract_strided_slice %172 {offsets = [0, 0], sizes = [2, 96], strides = [1, 1]} : vector<2x192xf32> to vector<2x96xf32>
    %178 = vector.extract_strided_slice %172 {offsets = [0, 96], sizes = [2, 96], strides = [1, 1]} : vector<2x192xf32> to vector<2x96xf32>
    %179 = vector.extract_strided_slice %174 {offsets = [0, 0], sizes = [2, 32], strides = [1, 1]} : vector<2x96xf32> to vector<2x32xf32>
    %180 = vector.extract_strided_slice %177 {offsets = [0, 0], sizes = [2, 32], strides = [1, 1]} : vector<2x96xf32> to vector<2x32xf32>
    %181 = arith.addf %179, %180 : vector<2x32xf32>
    %182 = arith.negf %181 : vector<2x32xf32>
    %183 = math.exp %182 : vector<2x32xf32>
    %cst_50 = arith.constant 1.000000e+00 : f32
    %184 = vector.broadcast %cst_50 : f32 to vector<2x32xf32>
    %185 = arith.addf %184, %183 : vector<2x32xf32>
    %186 = arith.divf %184, %185 : vector<2x32xf32>
    %187 = vector.extract_strided_slice %174 {offsets = [0, 32], sizes = [2, 32], strides = [1, 1]} : vector<2x96xf32> to vector<2x32xf32>
    %188 = vector.extract_strided_slice %177 {offsets = [0, 32], sizes = [2, 32], strides = [1, 1]} : vector<2x96xf32> to vector<2x32xf32>
    %189 = arith.addf %187, %188 : vector<2x32xf32>
    %190 = arith.negf %189 : vector<2x32xf32>
    %191 = math.exp %190 : vector<2x32xf32>
    %cst_51 = arith.constant 1.000000e+00 : f32
    %192 = vector.broadcast %cst_51 : f32 to vector<2x32xf32>
    %193 = arith.addf %192, %191 : vector<2x32xf32>
    %194 = arith.divf %192, %193 : vector<2x32xf32>
    %195 = vector.extract_strided_slice %174 {offsets = [0, 64], sizes = [2, 32], strides = [1, 1]} : vector<2x96xf32> to vector<2x32xf32>
    %196 = vector.extract_strided_slice %177 {offsets = [0, 64], sizes = [2, 32], strides = [1, 1]} : vector<2x96xf32> to vector<2x32xf32>
    %197 = arith.mulf %186, %196 : vector<2x32xf32>
    %198 = arith.addf %195, %197 : vector<2x32xf32>
    %199 = math.tanh %198 : vector<2x32xf32>
    %cst_52 = arith.constant 1.000000e+00 : f32
    %200 = vector.broadcast %cst_52 : f32 to vector<2x32xf32>
    %201 = arith.subf %200, %194 : vector<2x32xf32>
    %202 = arith.mulf %201, %199 : vector<2x32xf32>
    %203 = vector.extract_strided_slice %157 {offsets = [0, 0], sizes = [2, 32], strides = [1, 1]} : vector<2x64xf32> to vector<2x32xf32>
    %204 = arith.mulf %194, %203 : vector<2x32xf32>
    %205 = arith.addf %202, %204 : vector<2x32xf32>
    %206 = vector.extract_strided_slice %176 {offsets = [0, 0], sizes = [2, 32], strides = [1, 1]} : vector<2x96xf32> to vector<2x32xf32>
    %207 = vector.extract_strided_slice %178 {offsets = [0, 0], sizes = [2, 32], strides = [1, 1]} : vector<2x96xf32> to vector<2x32xf32>
    %208 = arith.addf %206, %207 : vector<2x32xf32>
    %209 = arith.negf %208 : vector<2x32xf32>
    %210 = math.exp %209 : vector<2x32xf32>
    %cst_53 = arith.constant 1.000000e+00 : f32
    %211 = vector.broadcast %cst_53 : f32 to vector<2x32xf32>
    %212 = arith.addf %211, %210 : vector<2x32xf32>
    %213 = arith.divf %211, %212 : vector<2x32xf32>
    %214 = vector.extract_strided_slice %176 {offsets = [0, 32], sizes = [2, 32], strides = [1, 1]} : vector<2x96xf32> to vector<2x32xf32>
    %215 = vector.extract_strided_slice %178 {offsets = [0, 32], sizes = [2, 32], strides = [1, 1]} : vector<2x96xf32> to vector<2x32xf32>
    %216 = arith.addf %214, %215 : vector<2x32xf32>
    %217 = arith.negf %216 : vector<2x32xf32>
    %218 = math.exp %217 : vector<2x32xf32>
    %cst_54 = arith.constant 1.000000e+00 : f32
    %219 = vector.broadcast %cst_54 : f32 to vector<2x32xf32>
    %220 = arith.addf %219, %218 : vector<2x32xf32>
    %221 = arith.divf %219, %220 : vector<2x32xf32>
    %222 = vector.extract_strided_slice %176 {offsets = [0, 64], sizes = [2, 32], strides = [1, 1]} : vector<2x96xf32> to vector<2x32xf32>
    %223 = vector.extract_strided_slice %178 {offsets = [0, 64], sizes = [2, 32], strides = [1, 1]} : vector<2x96xf32> to vector<2x32xf32>
    %224 = arith.mulf %213, %223 : vector<2x32xf32>
    %225 = arith.addf %222, %224 : vector<2x32xf32>
    %226 = math.tanh %225 : vector<2x32xf32>
    %cst_55 = arith.constant 1.000000e+00 : f32
    %227 = vector.broadcast %cst_55 : f32 to vector<2x32xf32>
    %228 = arith.subf %227, %221 : vector<2x32xf32>
    %229 = arith.mulf %228, %226 : vector<2x32xf32>
    %230 = vector.extract_strided_slice %157 {offsets = [0, 32], sizes = [2, 32], strides = [1, 1]} : vector<2x64xf32> to vector<2x32xf32>
    %231 = arith.mulf %221, %230 : vector<2x32xf32>
    %232 = arith.addf %229, %231 : vector<2x32xf32>
    %233 = tpu.concatenate %205, %232 in 1 : vector<2x32xf32>, vector<2x32xf32> -> vector<2x64xf32>
    %234 = vector.extract_strided_slice %205 {offsets = [0, 0], sizes = [2, 16], strides = [1, 1]} : vector<2x32xf32> to vector<2x16xf32>
    %235 = vector.shape_cast %234 : vector<2x16xf32> to vector<2x1x16xf32>
    %c0_56 = arith.constant 0 : index
    %c2_57 = arith.constant 2 : index
    %c0_58 = arith.constant 0 : index
    %236 = vector.load %arg10[%c0_56, %c2_57, %c0_58] : memref<2x8x32xf32, #tpu.memory_space<vmem>>, vector<2x1x16xf32>
    tpu.vector_store %arg10[%c0_56, %c2_57, %c0_58], %235 {strides = array<i32>} : memref<2x8x32xf32, #tpu.memory_space<vmem>>, vector<2x1x16xf32>,
    %237 = vector.extract_strided_slice %205 {offsets = [0, 16], sizes = [2, 16], strides = [1, 1]} : vector<2x32xf32> to vector<2x16xf32>
    %238 = vector.shape_cast %237 : vector<2x16xf32> to vector<2x1x16xf32>
    %c0_59 = arith.constant 0 : index
    %c2_60 = arith.constant 2 : index
    %c0_61 = arith.constant 0 : index
    %239 = vector.load %arg11[%c0_59, %c2_60, %c0_61] : memref<2x8x32xf32, #tpu.memory_space<vmem>>, vector<2x1x16xf32>
    tpu.vector_store %arg11[%c0_59, %c2_60, %c0_61], %238 {strides = array<i32>} : memref<2x8x32xf32, #tpu.memory_space<vmem>>, vector<2x1x16xf32>,
    %240 = vector.extract_strided_slice %232 {offsets = [0, 0], sizes = [2, 16], strides = [1, 1]} : vector<2x32xf32> to vector<2x16xf32>
    %241 = vector.shape_cast %240 : vector<2x16xf32> to vector<2x1x16xf32>
    %c0_62 = arith.constant 0 : index
    %c5_63 = arith.constant 5 : index
    %c16_64 = arith.constant 16 : index
    %242 = vector.load %arg10[%c0_62, %c5_63, %c16_64] : memref<2x8x32xf32, #tpu.memory_space<vmem>>, vector<2x1x16xf32>
    tpu.vector_store %arg10[%c0_62, %c5_63, %c16_64], %241 {strides = array<i32>} : memref<2x8x32xf32, #tpu.memory_space<vmem>>, vector<2x1x16xf32>,
    %243 = vector.extract_strided_slice %232 {offsets = [0, 16], sizes = [2, 16], strides = [1, 1]} : vector<2x32xf32> to vector<2x16xf32>
    %244 = vector.shape_cast %243 : vector<2x16xf32> to vector<2x1x16xf32>
    %c0_65 = arith.constant 0 : index
    %c5_66 = arith.constant 5 : index
    %c16_67 = arith.constant 16 : index
    %245 = vector.load %arg11[%c0_65, %c5_66, %c16_67] : memref<2x8x32xf32, #tpu.memory_space<vmem>>, vector<2x1x16xf32>
    tpu.vector_store %arg11[%c0_65, %c5_66, %c16_67], %244 {strides = array<i32>} : memref<2x8x32xf32, #tpu.memory_space<vmem>>, vector<2x1x16xf32>,
    %cst_68 = arith.constant dense<0.000000e+00> : vector<2x192xf32>
    %246 = tpu.matmul %233, %16, %cst_68 {dimension_numbers = #tpu.dot_dimension_numbers<[1], [0], [0], [1], [0, 0, 1, 1], [], []>} : vector<2x64xf32>, vector<64x192xf32>, vector<2x192xf32> -> vector<2x192xf32>
    %247 = vector.broadcast %3 : vector<1x192xf32> to vector<2x192xf32>
    %248 = arith.addf %246, %247 : vector<2x192xf32>
    %249 = vector.extract_strided_slice %13 {offsets = [0, 3, 0], sizes = [2, 1, 96], strides = [1, 1, 1]} : vector<2x8x192xf32> to vector<2x1x96xf32>
    %250 = vector.shape_cast %249 : vector<2x1x96xf32> to vector<2x96xf32>
    %251 = vector.extract_strided_slice %13 {offsets = [0, 4, 96], sizes = [2, 1, 96], strides = [1, 1, 1]} : vector<2x8x192xf32> to vector<2x1x96xf32>
    %252 = vector.shape_cast %251 : vector<2x1x96xf32> to vector<2x96xf32>
    %253 = vector.extract_strided_slice %248 {offsets = [0, 0], sizes = [2, 96], strides = [1, 1]} : vector<2x192xf32> to vector<2x96xf32>
    %254 = vector.extract_strided_slice %248 {offsets = [0, 96], sizes = [2, 96], strides = [1, 1]} : vector<2x192xf32> to vector<2x96xf32>
    %255 = vector.extract_strided_slice %250 {offsets = [0, 0], sizes = [2, 32], strides = [1, 1]} : vector<2x96xf32> to vector<2x32xf32>
    %256 = vector.extract_strided_slice %253 {offsets = [0, 0], sizes = [2, 32], strides = [1, 1]} : vector<2x96xf32> to vector<2x32xf32>
    %257 = arith.addf %255, %256 : vector<2x32xf32>
    %258 = arith.negf %257 : vector<2x32xf32>
    %259 = math.exp %258 : vector<2x32xf32>
    %cst_69 = arith.constant 1.000000e+00 : f32
    %260 = vector.broadcast %cst_69 : f32 to vector<2x32xf32>
    %261 = arith.addf %260, %259 : vector<2x32xf32>
    %262 = arith.divf %260, %261 : vector<2x32xf32>
    %263 = vector.extract_strided_slice %250 {offsets = [0, 32], sizes = [2, 32], strides = [1, 1]} : vector<2x96xf32> to vector<2x32xf32>
    %264 = vector.extract_strided_slice %253 {offsets = [0, 32], sizes = [2, 32], strides = [1, 1]} : vector<2x96xf32> to vector<2x32xf32>
    %265 = arith.addf %263, %264 : vector<2x32xf32>
    %266 = arith.negf %265 : vector<2x32xf32>
    %267 = math.exp %266 : vector<2x32xf32>
    %cst_70 = arith.constant 1.000000e+00 : f32
    %268 = vector.broadcast %cst_70 : f32 to vector<2x32xf32>
    %269 = arith.addf %268, %267 : vector<2x32xf32>
    %270 = arith.divf %268, %269 : vector<2x32xf32>
    %271 = vector.extract_strided_slice %250 {offsets = [0, 64], sizes = [2, 32], strides = [1, 1]} : vector<2x96xf32> to vector<2x32xf32>
    %272 = vector.extract_strided_slice %253 {offsets = [0, 64], sizes = [2, 32], strides = [1, 1]} : vector<2x96xf32> to vector<2x32xf32>
    %273 = arith.mulf %262, %272 : vector<2x32xf32>
    %274 = arith.addf %271, %273 : vector<2x32xf32>
    %275 = math.tanh %274 : vector<2x32xf32>
    %cst_71 = arith.constant 1.000000e+00 : f32
    %276 = vector.broadcast %cst_71 : f32 to vector<2x32xf32>
    %277 = arith.subf %276, %270 : vector<2x32xf32>
    %278 = arith.mulf %277, %275 : vector<2x32xf32>
    %279 = vector.extract_strided_slice %233 {offsets = [0, 0], sizes = [2, 32], strides = [1, 1]} : vector<2x64xf32> to vector<2x32xf32>
    %280 = arith.mulf %270, %279 : vector<2x32xf32>
    %281 = arith.addf %278, %280 : vector<2x32xf32>
    %282 = vector.extract_strided_slice %252 {offsets = [0, 0], sizes = [2, 32], strides = [1, 1]} : vector<2x96xf32> to vector<2x32xf32>
    %283 = vector.extract_strided_slice %254 {offsets = [0, 0], sizes = [2, 32], strides = [1, 1]} : vector<2x96xf32> to vector<2x32xf32>
    %284 = arith.addf %282, %283 : vector<2x32xf32>
    %285 = arith.negf %284 : vector<2x32xf32>
    %286 = math.exp %285 : vector<2x32xf32>
    %cst_72 = arith.constant 1.000000e+00 : f32
    %287 = vector.broadcast %cst_72 : f32 to vector<2x32xf32>
    %288 = arith.addf %287, %286 : vector<2x32xf32>
    %289 = arith.divf %287, %288 : vector<2x32xf32>
    %290 = vector.extract_strided_slice %252 {offsets = [0, 32], sizes = [2, 32], strides = [1, 1]} : vector<2x96xf32> to vector<2x32xf32>
    %291 = vector.extract_strided_slice %254 {offsets = [0, 32], sizes = [2, 32], strides = [1, 1]} : vector<2x96xf32> to vector<2x32xf32>
    %292 = arith.addf %290, %291 : vector<2x32xf32>
    %293 = arith.negf %292 : vector<2x32xf32>
    %294 = math.exp %293 : vector<2x32xf32>
    %cst_73 = arith.constant 1.000000e+00 : f32
    %295 = vector.broadcast %cst_73 : f32 to vector<2x32xf32>
    %296 = arith.addf %295, %294 : vector<2x32xf32>
    %297 = arith.divf %295, %296 : vector<2x32xf32>
    %298 = vector.extract_strided_slice %252 {offsets = [0, 64], sizes = [2, 32], strides = [1, 1]} : vector<2x96xf32> to vector<2x32xf32>
    %299 = vector.extract_strided_slice %254 {offsets = [0, 64], sizes = [2, 32], strides = [1, 1]} : vector<2x96xf32> to vector<2x32xf32>
    %300 = arith.mulf %289, %299 : vector<2x32xf32>
    %301 = arith.addf %298, %300 : vector<2x32xf32>
    %302 = math.tanh %301 : vector<2x32xf32>
    %cst_74 = arith.constant 1.000000e+00 : f32
    %303 = vector.broadcast %cst_74 : f32 to vector<2x32xf32>
    %304 = arith.subf %303, %297 : vector<2x32xf32>
    %305 = arith.mulf %304, %302 : vector<2x32xf32>
    %306 = vector.extract_strided_slice %233 {offsets = [0, 32], sizes = [2, 32], strides = [1, 1]} : vector<2x64xf32> to vector<2x32xf32>
    %307 = arith.mulf %297, %306 : vector<2x32xf32>
    %308 = arith.addf %305, %307 : vector<2x32xf32>
    %309 = tpu.concatenate %281, %308 in 1 : vector<2x32xf32>, vector<2x32xf32> -> vector<2x64xf32>
    %310 = vector.extract_strided_slice %281 {offsets = [0, 0], sizes = [2, 16], strides = [1, 1]} : vector<2x32xf32> to vector<2x16xf32>
    %311 = vector.shape_cast %310 : vector<2x16xf32> to vector<2x1x16xf32>
    %c0_75 = arith.constant 0 : index
    %c3_76 = arith.constant 3 : index
    %c0_77 = arith.constant 0 : index
    %312 = vector.load %arg10[%c0_75, %c3_76, %c0_77] : memref<2x8x32xf32, #tpu.memory_space<vmem>>, vector<2x1x16xf32>
    tpu.vector_store %arg10[%c0_75, %c3_76, %c0_77], %311 {strides = array<i32>} : memref<2x8x32xf32, #tpu.memory_space<vmem>>, vector<2x1x16xf32>,
    %313 = vector.extract_strided_slice %281 {offsets = [0, 16], sizes = [2, 16], strides = [1, 1]} : vector<2x32xf32> to vector<2x16xf32>
    %314 = vector.shape_cast %313 : vector<2x16xf32> to vector<2x1x16xf32>
    %c0_78 = arith.constant 0 : index
    %c3_79 = arith.constant 3 : index
    %c0_80 = arith.constant 0 : index
    %315 = vector.load %arg11[%c0_78, %c3_79, %c0_80] : memref<2x8x32xf32, #tpu.memory_space<vmem>>, vector<2x1x16xf32>
    tpu.vector_store %arg11[%c0_78, %c3_79, %c0_80], %314 {strides = array<i32>} : memref<2x8x32xf32, #tpu.memory_space<vmem>>, vector<2x1x16xf32>,
    %316 = vector.extract_strided_slice %308 {offsets = [0, 0], sizes = [2, 16], strides = [1, 1]} : vector<2x32xf32> to vector<2x16xf32>
    %317 = vector.shape_cast %316 : vector<2x16xf32> to vector<2x1x16xf32>
    %c0_81 = arith.constant 0 : index
    %c4_82 = arith.constant 4 : index
    %c16_83 = arith.constant 16 : index
    %318 = vector.load %arg10[%c0_81, %c4_82, %c16_83] : memref<2x8x32xf32, #tpu.memory_space<vmem>>, vector<2x1x16xf32>
    tpu.vector_store %arg10[%c0_81, %c4_82, %c16_83], %317 {strides = array<i32>} : memref<2x8x32xf32, #tpu.memory_space<vmem>>, vector<2x1x16xf32>,
    %319 = vector.extract_strided_slice %308 {offsets = [0, 16], sizes = [2, 16], strides = [1, 1]} : vector<2x32xf32> to vector<2x16xf32>
    %320 = vector.shape_cast %319 : vector<2x16xf32> to vector<2x1x16xf32>
    %c0_84 = arith.constant 0 : index
    %c4_85 = arith.constant 4 : index
    %c16_86 = arith.constant 16 : index
    %321 = vector.load %arg11[%c0_84, %c4_85, %c16_86] : memref<2x8x32xf32, #tpu.memory_space<vmem>>, vector<2x1x16xf32>
    tpu.vector_store %arg11[%c0_84, %c4_85, %c16_86], %320 {strides = array<i32>} : memref<2x8x32xf32, #tpu.memory_space<vmem>>, vector<2x1x16xf32>,
    %cst_87 = arith.constant dense<0.000000e+00> : vector<2x192xf32>
    %322 = tpu.matmul %309, %16, %cst_87 {dimension_numbers = #tpu.dot_dimension_numbers<[1], [0], [0], [1], [0, 0, 1, 1], [], []>} : vector<2x64xf32>, vector<64x192xf32>, vector<2x192xf32> -> vector<2x192xf32>
    %323 = vector.broadcast %3 : vector<1x192xf32> to vector<2x192xf32>
    %324 = arith.addf %322, %323 : vector<2x192xf32>
    %325 = vector.extract_strided_slice %13 {offsets = [0, 4, 0], sizes = [2, 1, 96], strides = [1, 1, 1]} : vector<2x8x192xf32> to vector<2x1x96xf32>
    %326 = vector.shape_cast %325 : vector<2x1x96xf32> to vector<2x96xf32>
    %327 = vector.extract_strided_slice %13 {offsets = [0, 3, 96], sizes = [2, 1, 96], strides = [1, 1, 1]} : vector<2x8x192xf32> to vector<2x1x96xf32>
    %328 = vector.shape_cast %327 : vector<2x1x96xf32> to vector<2x96xf32>
    %329 = vector.extract_strided_slice %324 {offsets = [0, 0], sizes = [2, 96], strides = [1, 1]} : vector<2x192xf32> to vector<2x96xf32>
    %330 = vector.extract_strided_slice %324 {offsets = [0, 96], sizes = [2, 96], strides = [1, 1]} : vector<2x192xf32> to vector<2x96xf32>
    %331 = vector.extract_strided_slice %326 {offsets = [0, 0], sizes = [2, 32], strides = [1, 1]} : vector<2x96xf32> to vector<2x32xf32>
    %332 = vector.extract_strided_slice %329 {offsets = [0, 0], sizes = [2, 32], strides = [1, 1]} : vector<2x96xf32> to vector<2x32xf32>
    %333 = arith.addf %331, %332 : vector<2x32xf32>
    %334 = arith.negf %333 : vector<2x32xf32>
    %335 = math.exp %334 : vector<2x32xf32>
    %cst_88 = arith.constant 1.000000e+00 : f32
    %336 = vector.broadcast %cst_88 : f32 to vector<2x32xf32>
    %337 = arith.addf %336, %335 : vector<2x32xf32>
    %338 = arith.divf %336, %337 : vector<2x32xf32>
    %339 = vector.extract_strided_slice %326 {offsets = [0, 32], sizes = [2, 32], strides = [1, 1]} : vector<2x96xf32> to vector<2x32xf32>
    %340 = vector.extract_strided_slice %329 {offsets = [0, 32], sizes = [2, 32], strides = [1, 1]} : vector<2x96xf32> to vector<2x32xf32>
    %341 = arith.addf %339, %340 : vector<2x32xf32>
    %342 = arith.negf %341 : vector<2x32xf32>
    %343 = math.exp %342 : vector<2x32xf32>
    %cst_89 = arith.constant 1.000000e+00 : f32
    %344 = vector.broadcast %cst_89 : f32 to vector<2x32xf32>
    %345 = arith.addf %344, %343 : vector<2x32xf32>
    %346 = arith.divf %344, %345 : vector<2x32xf32>
    %347 = vector.extract_strided_slice %326 {offsets = [0, 64], sizes = [2, 32], strides = [1, 1]} : vector<2x96xf32> to vector<2x32xf32>
    %348 = vector.extract_strided_slice %329 {offsets = [0, 64], sizes = [2, 32], strides = [1, 1]} : vector<2x96xf32> to vector<2x32xf32>
    %349 = arith.mulf %338, %348 : vector<2x32xf32>
    %350 = arith.addf %347, %349 : vector<2x32xf32>
    %351 = math.tanh %350 : vector<2x32xf32>
    %cst_90 = arith.constant 1.000000e+00 : f32
    %352 = vector.broadcast %cst_90 : f32 to vector<2x32xf32>
    %353 = arith.subf %352, %346 : vector<2x32xf32>
    %354 = arith.mulf %353, %351 : vector<2x32xf32>
    %355 = vector.extract_strided_slice %309 {offsets = [0, 0], sizes = [2, 32], strides = [1, 1]} : vector<2x64xf32> to vector<2x32xf32>
    %356 = arith.mulf %346, %355 : vector<2x32xf32>
    %357 = arith.addf %354, %356 : vector<2x32xf32>
    %358 = vector.extract_strided_slice %328 {offsets = [0, 0], sizes = [2, 32], strides = [1, 1]} : vector<2x96xf32> to vector<2x32xf32>
    %359 = vector.extract_strided_slice %330 {offsets = [0, 0], sizes = [2, 32], strides = [1, 1]} : vector<2x96xf32> to vector<2x32xf32>
    %360 = arith.addf %358, %359 : vector<2x32xf32>
    %361 = arith.negf %360 : vector<2x32xf32>
    %362 = math.exp %361 : vector<2x32xf32>
    %cst_91 = arith.constant 1.000000e+00 : f32
    %363 = vector.broadcast %cst_91 : f32 to vector<2x32xf32>
    %364 = arith.addf %363, %362 : vector<2x32xf32>
    %365 = arith.divf %363, %364 : vector<2x32xf32>
    %366 = vector.extract_strided_slice %328 {offsets = [0, 32], sizes = [2, 32], strides = [1, 1]} : vector<2x96xf32> to vector<2x32xf32>
    %367 = vector.extract_strided_slice %330 {offsets = [0, 32], sizes = [2, 32], strides = [1, 1]} : vector<2x96xf32> to vector<2x32xf32>
    %368 = arith.addf %366, %367 : vector<2x32xf32>
    %369 = arith.negf %368 : vector<2x32xf32>
    %370 = math.exp %369 : vector<2x32xf32>
    %cst_92 = arith.constant 1.000000e+00 : f32
    %371 = vector.broadcast %cst_92 : f32 to vector<2x32xf32>
    %372 = arith.addf %371, %370 : vector<2x32xf32>
    %373 = arith.divf %371, %372 : vector<2x32xf32>
    %374 = vector.extract_strided_slice %328 {offsets = [0, 64], sizes = [2, 32], strides = [1, 1]} : vector<2x96xf32> to vector<2x32xf32>
    %375 = vector.extract_strided_slice %330 {offsets = [0, 64], sizes = [2, 32], strides = [1, 1]} : vector<2x96xf32> to vector<2x32xf32>
    %376 = arith.mulf %365, %375 : vector<2x32xf32>
    %377 = arith.addf %374, %376 : vector<2x32xf32>
    %378 = math.tanh %377 : vector<2x32xf32>
    %cst_93 = arith.constant 1.000000e+00 : f32
    %379 = vector.broadcast %cst_93 : f32 to vector<2x32xf32>
    %380 = arith.subf %379, %373 : vector<2x32xf32>
    %381 = arith.mulf %380, %378 : vector<2x32xf32>
    %382 = vector.extract_strided_slice %309 {offsets = [0, 32], sizes = [2, 32], strides = [1, 1]} : vector<2x64xf32> to vector<2x32xf32>
    %383 = arith.mulf %373, %382 : vector<2x32xf32>
    %384 = arith.addf %381, %383 : vector<2x32xf32>
    %385 = tpu.concatenate %357, %384 in 1 : vector<2x32xf32>, vector<2x32xf32> -> vector<2x64xf32>
    %386 = vector.extract_strided_slice %357 {offsets = [0, 0], sizes = [2, 16], strides = [1, 1]} : vector<2x32xf32> to vector<2x16xf32>
    %387 = vector.shape_cast %386 : vector<2x16xf32> to vector<2x1x16xf32>
    %c0_94 = arith.constant 0 : index
    %c4_95 = arith.constant 4 : index
    %c0_96 = arith.constant 0 : index
    %388 = vector.load %arg10[%c0_94, %c4_95, %c0_96] : memref<2x8x32xf32, #tpu.memory_space<vmem>>, vector<2x1x16xf32>
    tpu.vector_store %arg10[%c0_94, %c4_95, %c0_96], %387 {strides = array<i32>} : memref<2x8x32xf32, #tpu.memory_space<vmem>>, vector<2x1x16xf32>,
    %389 = vector.extract_strided_slice %357 {offsets = [0, 16], sizes = [2, 16], strides = [1, 1]} : vector<2x32xf32> to vector<2x16xf32>
    %390 = vector.shape_cast %389 : vector<2x16xf32> to vector<2x1x16xf32>
    %c0_97 = arith.constant 0 : index
    %c4_98 = arith.constant 4 : index
    %c0_99 = arith.constant 0 : index
    %391 = vector.load %arg11[%c0_97, %c4_98, %c0_99] : memref<2x8x32xf32, #tpu.memory_space<vmem>>, vector<2x1x16xf32>
    tpu.vector_store %arg11[%c0_97, %c4_98, %c0_99], %390 {strides = array<i32>} : memref<2x8x32xf32, #tpu.memory_space<vmem>>, vector<2x1x16xf32>,
    %392 = vector.extract_strided_slice %384 {offsets = [0, 0], sizes = [2, 16], strides = [1, 1]} : vector<2x32xf32> to vector<2x16xf32>
    %393 = vector.shape_cast %392 : vector<2x16xf32> to vector<2x1x16xf32>
    %c0_100 = arith.constant 0 : index
    %c3_101 = arith.constant 3 : index
    %c16_102 = arith.constant 16 : index
    %394 = vector.load %arg10[%c0_100, %c3_101, %c16_102] : memref<2x8x32xf32, #tpu.memory_space<vmem>>, vector<2x1x16xf32>
    tpu.vector_store %arg10[%c0_100, %c3_101, %c16_102], %393 {strides = array<i32>} : memref<2x8x32xf32, #tpu.memory_space<vmem>>, vector<2x1x16xf32>,
    %395 = vector.extract_strided_slice %384 {offsets = [0, 16], sizes = [2, 16], strides = [1, 1]} : vector<2x32xf32> to vector<2x16xf32>
    %396 = vector.shape_cast %395 : vector<2x16xf32> to vector<2x1x16xf32>
    %c0_103 = arith.constant 0 : index
    %c3_104 = arith.constant 3 : index
    %c16_105 = arith.constant 16 : index
    %397 = vector.load %arg11[%c0_103, %c3_104, %c16_105] : memref<2x8x32xf32, #tpu.memory_space<vmem>>, vector<2x1x16xf32>
    tpu.vector_store %arg11[%c0_103, %c3_104, %c16_105], %396 {strides = array<i32>} : memref<2x8x32xf32, #tpu.memory_space<vmem>>, vector<2x1x16xf32>,
    %cst_106 = arith.constant dense<0.000000e+00> : vector<2x192xf32>
    %398 = tpu.matmul %385, %16, %cst_106 {dimension_numbers = #tpu.dot_dimension_numbers<[1], [0], [0], [1], [0, 0, 1, 1], [], []>} : vector<2x64xf32>, vector<64x192xf32>, vector<2x192xf32> -> vector<2x192xf32>
    %399 = vector.broadcast %3 : vector<1x192xf32> to vector<2x192xf32>
    %400 = arith.addf %398, %399 : vector<2x192xf32>
    %401 = vector.extract_strided_slice %13 {offsets = [0, 5, 0], sizes = [2, 1, 96], strides = [1, 1, 1]} : vector<2x8x192xf32> to vector<2x1x96xf32>
    %402 = vector.shape_cast %401 : vector<2x1x96xf32> to vector<2x96xf32>
    %403 = vector.extract_strided_slice %13 {offsets = [0, 2, 96], sizes = [2, 1, 96], strides = [1, 1, 1]} : vector<2x8x192xf32> to vector<2x1x96xf32>
    %404 = vector.shape_cast %403 : vector<2x1x96xf32> to vector<2x96xf32>
    %405 = vector.extract_strided_slice %400 {offsets = [0, 0], sizes = [2, 96], strides = [1, 1]} : vector<2x192xf32> to vector<2x96xf32>
    %406 = vector.extract_strided_slice %400 {offsets = [0, 96], sizes = [2, 96], strides = [1, 1]} : vector<2x192xf32> to vector<2x96xf32>
    %407 = vector.extract_strided_slice %402 {offsets = [0, 0], sizes = [2, 32], strides = [1, 1]} : vector<2x96xf32> to vector<2x32xf32>
    %408 = vector.extract_strided_slice %405 {offsets = [0, 0], sizes = [2, 32], strides = [1, 1]} : vector<2x96xf32> to vector<2x32xf32>
    %409 = arith.addf %407, %408 : vector<2x32xf32>
    %410 = arith.negf %409 : vector<2x32xf32>
    %411 = math.exp %410 : vector<2x32xf32>
    %cst_107 = arith.constant 1.000000e+00 : f32
    %412 = vector.broadcast %cst_107 : f32 to vector<2x32xf32>
    %413 = arith.addf %412, %411 : vector<2x32xf32>
    %414 = arith.divf %412, %413 : vector<2x32xf32>
    %415 = vector.extract_strided_slice %402 {offsets = [0, 32], sizes = [2, 32], strides = [1, 1]} : vector<2x96xf32> to vector<2x32xf32>
    %416 = vector.extract_strided_slice %405 {offsets = [0, 32], sizes = [2, 32], strides = [1, 1]} : vector<2x96xf32> to vector<2x32xf32>
    %417 = arith.addf %415, %416 : vector<2x32xf32>
    %418 = arith.negf %417 : vector<2x32xf32>
    %419 = math.exp %418 : vector<2x32xf32>
    %cst_108 = arith.constant 1.000000e+00 : f32
    %420 = vector.broadcast %cst_108 : f32 to vector<2x32xf32>
    %421 = arith.addf %420, %419 : vector<2x32xf32>
    %422 = arith.divf %420, %421 : vector<2x32xf32>
    %423 = vector.extract_strided_slice %402 {offsets = [0, 64], sizes = [2, 32], strides = [1, 1]} : vector<2x96xf32> to vector<2x32xf32>
    %424 = vector.extract_strided_slice %405 {offsets = [0, 64], sizes = [2, 32], strides = [1, 1]} : vector<2x96xf32> to vector<2x32xf32>
    %425 = arith.mulf %414, %424 : vector<2x32xf32>
    %426 = arith.addf %423, %425 : vector<2x32xf32>
    %427 = math.tanh %426 : vector<2x32xf32>
    %cst_109 = arith.constant 1.000000e+00 : f32
    %428 = vector.broadcast %cst_109 : f32 to vector<2x32xf32>
    %429 = arith.subf %428, %422 : vector<2x32xf32>
    %430 = arith.mulf %429, %427 : vector<2x32xf32>
    %431 = vector.extract_strided_slice %385 {offsets = [0, 0], sizes = [2, 32], strides = [1, 1]} : vector<2x64xf32> to vector<2x32xf32>
    %432 = arith.mulf %422, %431 : vector<2x32xf32>
    %433 = arith.addf %430, %432 : vector<2x32xf32>
    %434 = vector.extract_strided_slice %404 {offsets = [0, 0], sizes = [2, 32], strides = [1, 1]} : vector<2x96xf32> to vector<2x32xf32>
    %435 = vector.extract_strided_slice %406 {offsets = [0, 0], sizes = [2, 32], strides = [1, 1]} : vector<2x96xf32> to vector<2x32xf32>
    %436 = arith.addf %434, %435 : vector<2x32xf32>
    %437 = arith.negf %436 : vector<2x32xf32>
    %438 = math.exp %437 : vector<2x32xf32>
    %cst_110 = arith.constant 1.000000e+00 : f32
    %439 = vector.broadcast %cst_110 : f32 to vector<2x32xf32>
    %440 = arith.addf %439, %438 : vector<2x32xf32>
    %441 = arith.divf %439, %440 : vector<2x32xf32>
    %442 = vector.extract_strided_slice %404 {offsets = [0, 32], sizes = [2, 32], strides = [1, 1]} : vector<2x96xf32> to vector<2x32xf32>
    %443 = vector.extract_strided_slice %406 {offsets = [0, 32], sizes = [2, 32], strides = [1, 1]} : vector<2x96xf32> to vector<2x32xf32>
    %444 = arith.addf %442, %443 : vector<2x32xf32>
    %445 = arith.negf %444 : vector<2x32xf32>
    %446 = math.exp %445 : vector<2x32xf32>
    %cst_111 = arith.constant 1.000000e+00 : f32
    %447 = vector.broadcast %cst_111 : f32 to vector<2x32xf32>
    %448 = arith.addf %447, %446 : vector<2x32xf32>
    %449 = arith.divf %447, %448 : vector<2x32xf32>
    %450 = vector.extract_strided_slice %404 {offsets = [0, 64], sizes = [2, 32], strides = [1, 1]} : vector<2x96xf32> to vector<2x32xf32>
    %451 = vector.extract_strided_slice %406 {offsets = [0, 64], sizes = [2, 32], strides = [1, 1]} : vector<2x96xf32> to vector<2x32xf32>
    %452 = arith.mulf %441, %451 : vector<2x32xf32>
    %453 = arith.addf %450, %452 : vector<2x32xf32>
    %454 = math.tanh %453 : vector<2x32xf32>
    %cst_112 = arith.constant 1.000000e+00 : f32
    %455 = vector.broadcast %cst_112 : f32 to vector<2x32xf32>
    %456 = arith.subf %455, %449 : vector<2x32xf32>
    %457 = arith.mulf %456, %454 : vector<2x32xf32>
    %458 = vector.extract_strided_slice %385 {offsets = [0, 32], sizes = [2, 32], strides = [1, 1]} : vector<2x64xf32> to vector<2x32xf32>
    %459 = arith.mulf %449, %458 : vector<2x32xf32>
    %460 = arith.addf %457, %459 : vector<2x32xf32>
    %461 = tpu.concatenate %433, %460 in 1 : vector<2x32xf32>, vector<2x32xf32> -> vector<2x64xf32>
    %462 = vector.extract_strided_slice %433 {offsets = [0, 0], sizes = [2, 16], strides = [1, 1]} : vector<2x32xf32> to vector<2x16xf32>
    %463 = vector.shape_cast %462 : vector<2x16xf32> to vector<2x1x16xf32>
    %c0_113 = arith.constant 0 : index
    %c5_114 = arith.constant 5 : index
    %c0_115 = arith.constant 0 : index
    %464 = vector.load %arg10[%c0_113, %c5_114, %c0_115] : memref<2x8x32xf32, #tpu.memory_space<vmem>>, vector<2x1x16xf32>
    tpu.vector_store %arg10[%c0_113, %c5_114, %c0_115], %463 {strides = array<i32>} : memref<2x8x32xf32, #tpu.memory_space<vmem>>, vector<2x1x16xf32>,
    %465 = vector.extract_strided_slice %433 {offsets = [0, 16], sizes = [2, 16], strides = [1, 1]} : vector<2x32xf32> to vector<2x16xf32>
    %466 = vector.shape_cast %465 : vector<2x16xf32> to vector<2x1x16xf32>
    %c0_116 = arith.constant 0 : index
    %c5_117 = arith.constant 5 : index
    %c0_118 = arith.constant 0 : index
    %467 = vector.load %arg11[%c0_116, %c5_117, %c0_118] : memref<2x8x32xf32, #tpu.memory_space<vmem>>, vector<2x1x16xf32>
    tpu.vector_store %arg11[%c0_116, %c5_117, %c0_118], %466 {strides = array<i32>} : memref<2x8x32xf32, #tpu.memory_space<vmem>>, vector<2x1x16xf32>,
    %468 = vector.extract_strided_slice %460 {offsets = [0, 0], sizes = [2, 16], strides = [1, 1]} : vector<2x32xf32> to vector<2x16xf32>
    %469 = vector.shape_cast %468 : vector<2x16xf32> to vector<2x1x16xf32>
    %c0_119 = arith.constant 0 : index
    %c2_120 = arith.constant 2 : index
    %c16_121 = arith.constant 16 : index
    %470 = vector.load %arg10[%c0_119, %c2_120, %c16_121] : memref<2x8x32xf32, #tpu.memory_space<vmem>>, vector<2x1x16xf32>
    tpu.vector_store %arg10[%c0_119, %c2_120, %c16_121], %469 {strides = array<i32>} : memref<2x8x32xf32, #tpu.memory_space<vmem>>, vector<2x1x16xf32>,
    %471 = vector.extract_strided_slice %460 {offsets = [0, 16], sizes = [2, 16], strides = [1, 1]} : vector<2x32xf32> to vector<2x16xf32>
    %472 = vector.shape_cast %471 : vector<2x16xf32> to vector<2x1x16xf32>
    %c0_122 = arith.constant 0 : index
    %c2_123 = arith.constant 2 : index
    %c16_124 = arith.constant 16 : index
    %473 = vector.load %arg11[%c0_122, %c2_123, %c16_124] : memref<2x8x32xf32, #tpu.memory_space<vmem>>, vector<2x1x16xf32>
    tpu.vector_store %arg11[%c0_122, %c2_123, %c16_124], %472 {strides = array<i32>} : memref<2x8x32xf32, #tpu.memory_space<vmem>>, vector<2x1x16xf32>,
    %cst_125 = arith.constant dense<0.000000e+00> : vector<2x192xf32>
    %474 = tpu.matmul %461, %16, %cst_125 {dimension_numbers = #tpu.dot_dimension_numbers<[1], [0], [0], [1], [0, 0, 1, 1], [], []>} : vector<2x64xf32>, vector<64x192xf32>, vector<2x192xf32> -> vector<2x192xf32>
    %475 = vector.broadcast %3 : vector<1x192xf32> to vector<2x192xf32>
    %476 = arith.addf %474, %475 : vector<2x192xf32>
    %477 = vector.extract_strided_slice %13 {offsets = [0, 6, 0], sizes = [2, 1, 96], strides = [1, 1, 1]} : vector<2x8x192xf32> to vector<2x1x96xf32>
    %478 = vector.shape_cast %477 : vector<2x1x96xf32> to vector<2x96xf32>
    %479 = vector.extract_strided_slice %13 {offsets = [0, 1, 96], sizes = [2, 1, 96], strides = [1, 1, 1]} : vector<2x8x192xf32> to vector<2x1x96xf32>
    %480 = vector.shape_cast %479 : vector<2x1x96xf32> to vector<2x96xf32>
    %481 = vector.extract_strided_slice %476 {offsets = [0, 0], sizes = [2, 96], strides = [1, 1]} : vector<2x192xf32> to vector<2x96xf32>
    %482 = vector.extract_strided_slice %476 {offsets = [0, 96], sizes = [2, 96], strides = [1, 1]} : vector<2x192xf32> to vector<2x96xf32>
    %483 = vector.extract_strided_slice %478 {offsets = [0, 0], sizes = [2, 32], strides = [1, 1]} : vector<2x96xf32> to vector<2x32xf32>
    %484 = vector.extract_strided_slice %481 {offsets = [0, 0], sizes = [2, 32], strides = [1, 1]} : vector<2x96xf32> to vector<2x32xf32>
    %485 = arith.addf %483, %484 : vector<2x32xf32>
    %486 = arith.negf %485 : vector<2x32xf32>
    %487 = math.exp %486 : vector<2x32xf32>
    %cst_126 = arith.constant 1.000000e+00 : f32
    %488 = vector.broadcast %cst_126 : f32 to vector<2x32xf32>
    %489 = arith.addf %488, %487 : vector<2x32xf32>
    %490 = arith.divf %488, %489 : vector<2x32xf32>
    %491 = vector.extract_strided_slice %478 {offsets = [0, 32], sizes = [2, 32], strides = [1, 1]} : vector<2x96xf32> to vector<2x32xf32>
    %492 = vector.extract_strided_slice %481 {offsets = [0, 32], sizes = [2, 32], strides = [1, 1]} : vector<2x96xf32> to vector<2x32xf32>
    %493 = arith.addf %491, %492 : vector<2x32xf32>
    %494 = arith.negf %493 : vector<2x32xf32>
    %495 = math.exp %494 : vector<2x32xf32>
    %cst_127 = arith.constant 1.000000e+00 : f32
    %496 = vector.broadcast %cst_127 : f32 to vector<2x32xf32>
    %497 = arith.addf %496, %495 : vector<2x32xf32>
    %498 = arith.divf %496, %497 : vector<2x32xf32>
    %499 = vector.extract_strided_slice %478 {offsets = [0, 64], sizes = [2, 32], strides = [1, 1]} : vector<2x96xf32> to vector<2x32xf32>
    %500 = vector.extract_strided_slice %481 {offsets = [0, 64], sizes = [2, 32], strides = [1, 1]} : vector<2x96xf32> to vector<2x32xf32>
    %501 = arith.mulf %490, %500 : vector<2x32xf32>
    %502 = arith.addf %499, %501 : vector<2x32xf32>
    %503 = math.tanh %502 : vector<2x32xf32>
    %cst_128 = arith.constant 1.000000e+00 : f32
    %504 = vector.broadcast %cst_128 : f32 to vector<2x32xf32>
    %505 = arith.subf %504, %498 : vector<2x32xf32>
    %506 = arith.mulf %505, %503 : vector<2x32xf32>
    %507 = vector.extract_strided_slice %461 {offsets = [0, 0], sizes = [2, 32], strides = [1, 1]} : vector<2x64xf32> to vector<2x32xf32>
    %508 = arith.mulf %498, %507 : vector<2x32xf32>
    %509 = arith.addf %506, %508 : vector<2x32xf32>
    %510 = vector.extract_strided_slice %480 {offsets = [0, 0], sizes = [2, 32], strides = [1, 1]} : vector<2x96xf32> to vector<2x32xf32>
    %511 = vector.extract_strided_slice %482 {offsets = [0, 0], sizes = [2, 32], strides = [1, 1]} : vector<2x96xf32> to vector<2x32xf32>
    %512 = arith.addf %510, %511 : vector<2x32xf32>
    %513 = arith.negf %512 : vector<2x32xf32>
    %514 = math.exp %513 : vector<2x32xf32>
    %cst_129 = arith.constant 1.000000e+00 : f32
    %515 = vector.broadcast %cst_129 : f32 to vector<2x32xf32>
    %516 = arith.addf %515, %514 : vector<2x32xf32>
    %517 = arith.divf %515, %516 : vector<2x32xf32>
    %518 = vector.extract_strided_slice %480 {offsets = [0, 32], sizes = [2, 32], strides = [1, 1]} : vector<2x96xf32> to vector<2x32xf32>
    %519 = vector.extract_strided_slice %482 {offsets = [0, 32], sizes = [2, 32], strides = [1, 1]} : vector<2x96xf32> to vector<2x32xf32>
    %520 = arith.addf %518, %519 : vector<2x32xf32>
    %521 = arith.negf %520 : vector<2x32xf32>
    %522 = math.exp %521 : vector<2x32xf32>
    %cst_130 = arith.constant 1.000000e+00 : f32
    %523 = vector.broadcast %cst_130 : f32 to vector<2x32xf32>
    %524 = arith.addf %523, %522 : vector<2x32xf32>
    %525 = arith.divf %523, %524 : vector<2x32xf32>
    %526 = vector.extract_strided_slice %480 {offsets = [0, 64], sizes = [2, 32], strides = [1, 1]} : vector<2x96xf32> to vector<2x32xf32>
    %527 = vector.extract_strided_slice %482 {offsets = [0, 64], sizes = [2, 32], strides = [1, 1]} : vector<2x96xf32> to vector<2x32xf32>
    %528 = arith.mulf %517, %527 : vector<2x32xf32>
    %529 = arith.addf %526, %528 : vector<2x32xf32>
    %530 = math.tanh %529 : vector<2x32xf32>
    %cst_131 = arith.constant 1.000000e+00 : f32
    %531 = vector.broadcast %cst_131 : f32 to vector<2x32xf32>
    %532 = arith.subf %531, %525 : vector<2x32xf32>
    %533 = arith.mulf %532, %530 : vector<2x32xf32>
    %534 = vector.extract_strided_slice %461 {offsets = [0, 32], sizes = [2, 32], strides = [1, 1]} : vector<2x64xf32> to vector<2x32xf32>
    %535 = arith.mulf %525, %534 : vector<2x32xf32>
    %536 = arith.addf %533, %535 : vector<2x32xf32>
    %537 = tpu.concatenate %509, %536 in 1 : vector<2x32xf32>, vector<2x32xf32> -> vector<2x64xf32>
    %538 = vector.extract_strided_slice %509 {offsets = [0, 0], sizes = [2, 16], strides = [1, 1]} : vector<2x32xf32> to vector<2x16xf32>
    %539 = vector.shape_cast %538 : vector<2x16xf32> to vector<2x1x16xf32>
    %c0_132 = arith.constant 0 : index
    %c6_133 = arith.constant 6 : index
    %c0_134 = arith.constant 0 : index
    %540 = vector.load %arg10[%c0_132, %c6_133, %c0_134] : memref<2x8x32xf32, #tpu.memory_space<vmem>>, vector<2x1x16xf32>
    tpu.vector_store %arg10[%c0_132, %c6_133, %c0_134], %539 {strides = array<i32>} : memref<2x8x32xf32, #tpu.memory_space<vmem>>, vector<2x1x16xf32>,
    %541 = vector.extract_strided_slice %509 {offsets = [0, 16], sizes = [2, 16], strides = [1, 1]} : vector<2x32xf32> to vector<2x16xf32>
    %542 = vector.shape_cast %541 : vector<2x16xf32> to vector<2x1x16xf32>
    %c0_135 = arith.constant 0 : index
    %c6_136 = arith.constant 6 : index
    %c0_137 = arith.constant 0 : index
    %543 = vector.load %arg11[%c0_135, %c6_136, %c0_137] : memref<2x8x32xf32, #tpu.memory_space<vmem>>, vector<2x1x16xf32>
    tpu.vector_store %arg11[%c0_135, %c6_136, %c0_137], %542 {strides = array<i32>} : memref<2x8x32xf32, #tpu.memory_space<vmem>>, vector<2x1x16xf32>,
    %544 = vector.extract_strided_slice %536 {offsets = [0, 0], sizes = [2, 16], strides = [1, 1]} : vector<2x32xf32> to vector<2x16xf32>
    %545 = vector.shape_cast %544 : vector<2x16xf32> to vector<2x1x16xf32>
    %c0_138 = arith.constant 0 : index
    %c1_139 = arith.constant 1 : index
    %c16_140 = arith.constant 16 : index
    %546 = vector.load %arg10[%c0_138, %c1_139, %c16_140] : memref<2x8x32xf32, #tpu.memory_space<vmem>>, vector<2x1x16xf32>
    tpu.vector_store %arg10[%c0_138, %c1_139, %c16_140], %545 {strides = array<i32>} : memref<2x8x32xf32, #tpu.memory_space<vmem>>, vector<2x1x16xf32>,
    %547 = vector.extract_strided_slice %536 {offsets = [0, 16], sizes = [2, 16], strides = [1, 1]} : vector<2x32xf32> to vector<2x16xf32>
    %548 = vector.shape_cast %547 : vector<2x16xf32> to vector<2x1x16xf32>
    %c0_141 = arith.constant 0 : index
    %c1_142 = arith.constant 1 : index
    %c16_143 = arith.constant 16 : index
    %549 = vector.load %arg11[%c0_141, %c1_142, %c16_143] : memref<2x8x32xf32, #tpu.memory_space<vmem>>, vector<2x1x16xf32>
    tpu.vector_store %arg11[%c0_141, %c1_142, %c16_143], %548 {strides = array<i32>} : memref<2x8x32xf32, #tpu.memory_space<vmem>>, vector<2x1x16xf32>,
    %cst_144 = arith.constant dense<0.000000e+00> : vector<2x192xf32>
    %550 = tpu.matmul %537, %16, %cst_144 {dimension_numbers = #tpu.dot_dimension_numbers<[1], [0], [0], [1], [0, 0, 1, 1], [], []>} : vector<2x64xf32>, vector<64x192xf32>, vector<2x192xf32> -> vector<2x192xf32>
    %551 = vector.broadcast %3 : vector<1x192xf32> to vector<2x192xf32>
    %552 = arith.addf %550, %551 : vector<2x192xf32>
    %553 = vector.extract_strided_slice %13 {offsets = [0, 7, 0], sizes = [2, 1, 96], strides = [1, 1, 1]} : vector<2x8x192xf32> to vector<2x1x96xf32>
    %554 = vector.shape_cast %553 : vector<2x1x96xf32> to vector<2x96xf32>
    %555 = vector.extract_strided_slice %13 {offsets = [0, 0, 96], sizes = [2, 1, 96], strides = [1, 1, 1]} : vector<2x8x192xf32> to vector<2x1x96xf32>
    %556 = vector.shape_cast %555 : vector<2x1x96xf32> to vector<2x96xf32>
    %557 = vector.extract_strided_slice %552 {offsets = [0, 0], sizes = [2, 96], strides = [1, 1]} : vector<2x192xf32> to vector<2x96xf32>
    %558 = vector.extract_strided_slice %552 {offsets = [0, 96], sizes = [2, 96], strides = [1, 1]} : vector<2x192xf32> to vector<2x96xf32>
    %559 = vector.extract_strided_slice %554 {offsets = [0, 0], sizes = [2, 32], strides = [1, 1]} : vector<2x96xf32> to vector<2x32xf32>
    %560 = vector.extract_strided_slice %557 {offsets = [0, 0], sizes = [2, 32], strides = [1, 1]} : vector<2x96xf32> to vector<2x32xf32>
    %561 = arith.addf %559, %560 : vector<2x32xf32>
    %562 = arith.negf %561 : vector<2x32xf32>
    %563 = math.exp %562 : vector<2x32xf32>
    %cst_145 = arith.constant 1.000000e+00 : f32
    %564 = vector.broadcast %cst_145 : f32 to vector<2x32xf32>
    %565 = arith.addf %564, %563 : vector<2x32xf32>
    %566 = arith.divf %564, %565 : vector<2x32xf32>
    %567 = vector.extract_strided_slice %554 {offsets = [0, 32], sizes = [2, 32], strides = [1, 1]} : vector<2x96xf32> to vector<2x32xf32>
    %568 = vector.extract_strided_slice %557 {offsets = [0, 32], sizes = [2, 32], strides = [1, 1]} : vector<2x96xf32> to vector<2x32xf32>
    %569 = arith.addf %567, %568 : vector<2x32xf32>
    %570 = arith.negf %569 : vector<2x32xf32>
    %571 = math.exp %570 : vector<2x32xf32>
    %cst_146 = arith.constant 1.000000e+00 : f32
    %572 = vector.broadcast %cst_146 : f32 to vector<2x32xf32>
    %573 = arith.addf %572, %571 : vector<2x32xf32>
    %574 = arith.divf %572, %573 : vector<2x32xf32>
    %575 = vector.extract_strided_slice %554 {offsets = [0, 64], sizes = [2, 32], strides = [1, 1]} : vector<2x96xf32> to vector<2x32xf32>
    %576 = vector.extract_strided_slice %557 {offsets = [0, 64], sizes = [2, 32], strides = [1, 1]} : vector<2x96xf32> to vector<2x32xf32>
    %577 = arith.mulf %566, %576 : vector<2x32xf32>
    %578 = arith.addf %575, %577 : vector<2x32xf32>
    %579 = math.tanh %578 : vector<2x32xf32>
    %cst_147 = arith.constant 1.000000e+00 : f32
    %580 = vector.broadcast %cst_147 : f32 to vector<2x32xf32>
    %581 = arith.subf %580, %574 : vector<2x32xf32>
    %582 = arith.mulf %581, %579 : vector<2x32xf32>
    %583 = vector.extract_strided_slice %537 {offsets = [0, 0], sizes = [2, 32], strides = [1, 1]} : vector<2x64xf32> to vector<2x32xf32>
    %584 = arith.mulf %574, %583 : vector<2x32xf32>
    %585 = arith.addf %582, %584 : vector<2x32xf32>
    %586 = vector.extract_strided_slice %556 {offsets = [0, 0], sizes = [2, 32], strides = [1, 1]} : vector<2x96xf32> to vector<2x32xf32>
    %587 = vector.extract_strided_slice %558 {offsets = [0, 0], sizes = [2, 32], strides = [1, 1]} : vector<2x96xf32> to vector<2x32xf32>
    %588 = arith.addf %586, %587 : vector<2x32xf32>
    %589 = arith.negf %588 : vector<2x32xf32>
    %590 = math.exp %589 : vector<2x32xf32>
    %cst_148 = arith.constant 1.000000e+00 : f32
    %591 = vector.broadcast %cst_148 : f32 to vector<2x32xf32>
    %592 = arith.addf %591, %590 : vector<2x32xf32>
    %593 = arith.divf %591, %592 : vector<2x32xf32>
    %594 = vector.extract_strided_slice %556 {offsets = [0, 32], sizes = [2, 32], strides = [1, 1]} : vector<2x96xf32> to vector<2x32xf32>
    %595 = vector.extract_strided_slice %558 {offsets = [0, 32], sizes = [2, 32], strides = [1, 1]} : vector<2x96xf32> to vector<2x32xf32>
    %596 = arith.addf %594, %595 : vector<2x32xf32>
    %597 = arith.negf %596 : vector<2x32xf32>
    %598 = math.exp %597 : vector<2x32xf32>
    %cst_149 = arith.constant 1.000000e+00 : f32
    %599 = vector.broadcast %cst_149 : f32 to vector<2x32xf32>
    %600 = arith.addf %599, %598 : vector<2x32xf32>
    %601 = arith.divf %599, %600 : vector<2x32xf32>
    %602 = vector.extract_strided_slice %556 {offsets = [0, 64], sizes = [2, 32], strides = [1, 1]} : vector<2x96xf32> to vector<2x32xf32>
    %603 = vector.extract_strided_slice %558 {offsets = [0, 64], sizes = [2, 32], strides = [1, 1]} : vector<2x96xf32> to vector<2x32xf32>
    %604 = arith.mulf %593, %603 : vector<2x32xf32>
    %605 = arith.addf %602, %604 : vector<2x32xf32>
    %606 = math.tanh %605 : vector<2x32xf32>
    %cst_150 = arith.constant 1.000000e+00 : f32
    %607 = vector.broadcast %cst_150 : f32 to vector<2x32xf32>
    %608 = arith.subf %607, %601 : vector<2x32xf32>
    %609 = arith.mulf %608, %606 : vector<2x32xf32>
    %610 = vector.extract_strided_slice %537 {offsets = [0, 32], sizes = [2, 32], strides = [1, 1]} : vector<2x64xf32> to vector<2x32xf32>
    %611 = arith.mulf %601, %610 : vector<2x32xf32>
    %612 = arith.addf %609, %611 : vector<2x32xf32>
    %613 = vector.extract_strided_slice %585 {offsets = [0, 0], sizes = [2, 16], strides = [1, 1]} : vector<2x32xf32> to vector<2x16xf32>
    %614 = vector.shape_cast %613 : vector<2x16xf32> to vector<2x1x16xf32>
    %c0_151 = arith.constant 0 : index
    %c7_152 = arith.constant 7 : index
    %c0_153 = arith.constant 0 : index
    %615 = vector.load %arg10[%c0_151, %c7_152, %c0_153] : memref<2x8x32xf32, #tpu.memory_space<vmem>>, vector<2x1x16xf32>
    tpu.vector_store %arg10[%c0_151, %c7_152, %c0_153], %614 {strides = array<i32>} : memref<2x8x32xf32, #tpu.memory_space<vmem>>, vector<2x1x16xf32>,
    %616 = vector.extract_strided_slice %585 {offsets = [0, 16], sizes = [2, 16], strides = [1, 1]} : vector<2x32xf32> to vector<2x16xf32>
    %617 = vector.shape_cast %616 : vector<2x16xf32> to vector<2x1x16xf32>
    %c0_154 = arith.constant 0 : index
    %c7_155 = arith.constant 7 : index
    %c0_156 = arith.constant 0 : index
    %618 = vector.load %arg11[%c0_154, %c7_155, %c0_156] : memref<2x8x32xf32, #tpu.memory_space<vmem>>, vector<2x1x16xf32>
    tpu.vector_store %arg11[%c0_154, %c7_155, %c0_156], %617 {strides = array<i32>} : memref<2x8x32xf32, #tpu.memory_space<vmem>>, vector<2x1x16xf32>,
    %619 = vector.extract_strided_slice %612 {offsets = [0, 0], sizes = [2, 16], strides = [1, 1]} : vector<2x32xf32> to vector<2x16xf32>
    %620 = vector.shape_cast %619 : vector<2x16xf32> to vector<2x1x16xf32>
    %c0_157 = arith.constant 0 : index
    %c0_158 = arith.constant 0 : index
    %c16_159 = arith.constant 16 : index
    %621 = vector.load %arg10[%c0_157, %c0_158, %c16_159] : memref<2x8x32xf32, #tpu.memory_space<vmem>>, vector<2x1x16xf32>
    tpu.vector_store %arg10[%c0_157, %c0_158, %c16_159], %620 {strides = array<i32>} : memref<2x8x32xf32, #tpu.memory_space<vmem>>, vector<2x1x16xf32>,
    %622 = vector.extract_strided_slice %612 {offsets = [0, 16], sizes = [2, 16], strides = [1, 1]} : vector<2x32xf32> to vector<2x16xf32>
    %623 = vector.shape_cast %622 : vector<2x16xf32> to vector<2x1x16xf32>
    %c0_160 = arith.constant 0 : index
    %c0_161 = arith.constant 0 : index
    %c16_162 = arith.constant 16 : index
    %624 = vector.load %arg11[%c0_160, %c0_161, %c16_162] : memref<2x8x32xf32, #tpu.memory_space<vmem>>, vector<2x1x16xf32>
    tpu.vector_store %arg11[%c0_160, %c0_161, %c16_162], %623 {strides = array<i32>} : memref<2x8x32xf32, #tpu.memory_space<vmem>>, vector<2x1x16xf32>,
    %cst_163 = arith.constant 0.000000e+00 : f32
    %625 = vector.broadcast %cst_163 : f32 to vector<16x64xf32>
    %626 = arith.maximumf %14, %625 : vector<16x64xf32>
    %c0_164 = arith.constant 0 : index
    %c0_165 = arith.constant 0 : index
    %627 = vector.load %arg4[%c0_164, %c0_165] : memref<64x64xf32, #tpu.memory_space<vmem>>, vector<64x64xf32>
    %cst_166 = arith.constant dense<0.000000e+00> : vector<16x64xf32>
    %628 = tpu.matmul %626, %627, %cst_166 {dimension_numbers = #tpu.dot_dimension_numbers<[1], [0], [0], [1], [0, 0, 1, 1], [], []>} : vector<16x64xf32>, vector<64x64xf32>, vector<16x64xf32> -> vector<16x64xf32>
    %629 = vector.broadcast %4 : vector<1x64xf32> to vector<16x64xf32>
    %630 = arith.addf %628, %629 : vector<16x64xf32>
    %631 = vector.extract_strided_slice %630 {offsets = [0, 0], sizes = [16, 32], strides = [1, 1]} : vector<16x64xf32> to vector<16x32xf32>
    %632 = vector.extract_strided_slice %630 {offsets = [0, 32], sizes = [16, 32], strides = [1, 1]} : vector<16x64xf32> to vector<16x32xf32>
    %633 = vector.shape_cast %631 : vector<16x32xf32> to vector<2x8x32xf32>
    %c0_167 = arith.constant 0 : index
    %c0_168 = arith.constant 0 : index
    %c0_169 = arith.constant 0 : index
    %634 = vector.load %arg12[%c0_167, %c0_168, %c0_169] : memref<2x8x32xf32, #tpu.memory_space<vmem>>, vector<2x8x32xf32>
    tpu.vector_store %arg12[%c0_167, %c0_168, %c0_169], %633 {strides = array<i32>} : memref<2x8x32xf32, #tpu.memory_space<vmem>>, vector<2x8x32xf32>,
    %635 = vector.shape_cast %632 : vector<16x32xf32> to vector<2x8x32xf32>
    %c0_170 = arith.constant 0 : index
    %c0_171 = arith.constant 0 : index
    %c0_172 = arith.constant 0 : index
    %636 = vector.load %arg13[%c0_170, %c0_171, %c0_172] : memref<2x8x32xf32, #tpu.memory_space<vmem>>, vector<2x8x32xf32>
    tpu.vector_store %arg13[%c0_170, %c0_171, %c0_172], %635 {strides = array<i32>} : memref<2x8x32xf32, #tpu.memory_space<vmem>>, vector<2x8x32xf32>,
    %cst_173 = arith.constant 5.000000e-01 : f32
    %637 = vector.broadcast %cst_173 : f32 to vector<16x32xf32>
    %638 = arith.mulf %632, %637 : vector<16x32xf32>
    %639 = math.exp %638 : vector<16x32xf32>
    %c0_174 = arith.constant 0 : index
    %c0_175 = arith.constant 0 : index
    %640 = vector.load %arg1[%c0_174, %c0_175] : memref<1x32xf32, #tpu.memory_space<vmem>>, vector<1x32xf32>
    %641 = vector.broadcast %640 : vector<1x32xf32> to vector<16x32xf32>
    %642 = arith.mulf %639, %641 : vector<16x32xf32>
    %643 = arith.addf %631, %642 : vector<16x32xf32>
    %c0_176 = arith.constant 0 : index
    %c0_177 = arith.constant 0 : index
    %644 = vector.load %arg5[%c0_176, %c0_177] : memref<32x32xf32, #tpu.memory_space<vmem>>, vector<32x32xf32>
    %cst_178 = arith.constant dense<0.000000e+00> : vector<16x32xf32>
    %645 = tpu.matmul %643, %644, %cst_178 {dimension_numbers = #tpu.dot_dimension_numbers<[1], [0], [0], [1], [0, 0, 1, 1], [], []>} : vector<16x32xf32>, vector<32x32xf32>, vector<16x32xf32> -> vector<16x32xf32>
    %646 = vector.broadcast %5 : vector<1x32xf32> to vector<16x32xf32>
    %647 = arith.addf %645, %646 : vector<16x32xf32>
    %cst_179 = arith.constant 0.000000e+00 : f32
    %648 = vector.broadcast %cst_179 : f32 to vector<16x32xf32>
    %649 = arith.maximumf %647, %648 : vector<16x32xf32>
    %c0_180 = arith.constant 0 : index
    %c0_181 = arith.constant 0 : index
    %650 = vector.load %arg6[%c0_180, %c0_181] : memref<32x32xf32, #tpu.memory_space<vmem>>, vector<32x32xf32>
    %cst_182 = arith.constant dense<0.000000e+00> : vector<16x32xf32>
    %651 = tpu.matmul %649, %650, %cst_182 {dimension_numbers = #tpu.dot_dimension_numbers<[1], [0], [0], [1], [0, 0, 1, 1], [], []>} : vector<16x32xf32>, vector<32x32xf32>, vector<16x32xf32> -> vector<16x32xf32>
    %652 = arith.addf %15, %651 : vector<16x32xf32>
    %653 = vector.broadcast %6 : vector<1x32xf32> to vector<16x32xf32>
    %654 = arith.addf %652, %653 : vector<16x32xf32>
    %cst_183 = arith.constant 0.000000e+00 : f32
    %655 = vector.broadcast %cst_183 : f32 to vector<16x32xf32>
    %656 = arith.maximumf %654, %655 : vector<16x32xf32>
    %c0_184 = arith.constant 0 : index
    %c0_185 = arith.constant 0 : index
    %657 = vector.load %arg7[%c0_184, %c0_185] : memref<32x16xf32, #tpu.memory_space<vmem>>, vector<32x16xf32>
    %cst_186 = arith.constant dense<0.000000e+00> : vector<16x16xf32>
    %658 = tpu.matmul %656, %657, %cst_186 {dimension_numbers = #tpu.dot_dimension_numbers<[1], [0], [0], [1], [0, 0, 1, 1], [], []>} : vector<16x32xf32>, vector<32x16xf32>, vector<16x16xf32> -> vector<16x16xf32>
    %659 = vector.broadcast %7 : vector<1x16xf32> to vector<16x16xf32>
    %660 = arith.addf %658, %659 : vector<16x16xf32>
    %661 = vector.shape_cast %660 : vector<16x16xf32> to vector<2x8x16xf32>
    %c0_187 = arith.constant 0 : index
    %c0_188 = arith.constant 0 : index
    %c0_189 = arith.constant 0 : index
    %662 = vector.load %arg9[%c0_187, %c0_188, %c0_189] : memref<2x8x16xf32, #tpu.memory_space<vmem>>, vector<2x8x16xf32>
    tpu.vector_store %arg9[%c0_187, %c0_188, %c0_189], %661 {strides = array<i32>} : memref<2x8x16xf32, #tpu.memory_space<vmem>>, vector<2x8x16xf32>,
    return
  }
}

</mosaic_0001>

<llo_original>
// kernel: forward.1
$region0: #{forward.1}
  #allocation0 [shape = 'u32[]', space=smem, size = 0x4, offset = 0x4, fixed_abs, tag = 'smem constant byte address 0x4 - core index']
  #allocation1 [shape = 'u32[144,128]{1,0:T(1,128)}', space=vmem, size = 0x12000, scoped, tag = 'internal scratch']
  %s0 = inlined_call_operand.hbm [shape: f32[2,8,16], index: 0, kind: input, shape index: {}]
  %s1 = inlined_call_operand.vmem [shape: f32[1,32], index: 1, kind: input, shape index: {}]
  %s2 = inlined_call_operand.vmem [shape: f32[16,288], index: 2, kind: input, shape index: {}]
  %s3 = inlined_call_operand.hbm [shape: f32[64,192], index: 3, kind: input, shape index: {}]
  %s4 = inlined_call_operand.hbm [shape: f32[64,64], index: 4, kind: input, shape index: {}]
  %s5 = inlined_call_operand.hbm [shape: f32[32,32], index: 5, kind: input, shape index: {}]
  %s6 = inlined_call_operand.hbm [shape: f32[32,32], index: 6, kind: input, shape index: {}]
  %s7 = inlined_call_operand.vmem [shape: f32[32,16], index: 7, kind: input, shape index: {}]
  %s8 = inlined_call_operand.hbm [shape: f32[8,288], index: 8, kind: input, shape index: {}]
  %s9 = inlined_call_operand.hbm [shape: f32[2,8,16], index: 9, kind: output, shape index: {0}]
  %s10 = inlined_call_operand.hbm [shape: f32[2,8,32], index: 10, kind: output, shape index: {1}]
  %s11 = inlined_call_operand.hbm [shape: f32[2,8,32], index: 11, kind: output, shape index: {2}]
  %s12 = inlined_call_operand.hbm [shape: f32[2,8,32], index: 12, kind: output, shape index: {3}]
  %s13 = inlined_call_operand.hbm [shape: f32[2,8,32], index: 13, kind: output, shape index: {4}]
  %14 = xla_tuple %s9, %s10, %s11, %s12, %s13
  %s15 = sld [smem:[#allocation0]]
  $region102: #{forward.1} parent=0
    _
  %s17 = ssub.s32 1, %s15
  %s18 = scalar_select 0, %s17, %s15
  $region1: #{forward.1} parent=0
    #allocation2 [shape = 'u8[8192]{0}', space=vmem, size = 0x2000, scoped, tag = 'input window, operand 0, single buffered']
    #allocation3 [shape = 's32[1]{0}', space=sflag, size = 0x4, scoped, tag = 'scoped memory for forward.1']
    #allocation4 [shape = 's32[1]{0}', space=sflag, size = 0x4, scoped, tag = 'scoped memory for forward.1']
    #allocation5 [shape = 'u8[65536]{0}', space=vmem, size = 0x10000, scoped, tag = 'input window, operand 3, single buffered']
    #allocation6 [shape = 's32[1]{0}', space=sflag, size = 0x4, scoped, tag = 'scoped memory for forward.1']
    #allocation7 [shape = 'u8[32768]{0}', space=vmem, size = 0x8000, scoped, tag = 'input window, operand 4, single buffered']
    #allocation8 [shape = 'u8[16384]{0}', space=vmem, size = 0x4000, scoped, tag = 'input window, operand 5, single buffered']
    #allocation9 [shape = 's32[1]{0}', space=sflag, size = 0x4, scoped, tag = 'scoped memory for forward.1']
    #allocation10 [shape = 'u8[16384]{0}', space=vmem, size = 0x4000, scoped, tag = 'input window, operand 6, single buffered']
    #allocation11 [shape = 'u8[12288]{0}', space=vmem, size = 0x3000, scoped, tag = 'input window, operand 8, single buffered']
    #allocation12 [shape = 's32[1]{0}', space=sflag, size = 0x4, scoped, tag = 'scoped memory for forward.1']
    #allocation13 [shape = 'u8[8192]{0}', space=vmem, size = 0x2000, scoped, tag = 'output window, operand 0, single buffered']
    #allocation14 [shape = 'u8[8192]{0}', space=vmem, size = 0x2000, scoped, tag = 'output window, operand 1, single buffered']
    #allocation15 [shape = 's32[1]{0}', space=sflag, size = 0x4, scoped, tag = 'scoped memory for forward.1']
    #allocation16 [shape = 'u8[8192]{0}', space=vmem, size = 0x2000, scoped, tag = 'output window, operand 2, single buffered']
    #allocation17 [shape = 'u8[8192]{0}', space=vmem, size = 0x2000, scoped, tag = 'output window, operand 3, single buffered']
    #allocation18 [shape = 's32[1]{0}', space=sflag, size = 0x4, scoped, tag = 'scoped memory for forward.1']
    #allocation19 [shape = 'u8[8192]{0}', space=vmem, size = 0x2000, scoped, tag = 'output window, operand 4, single buffered']
    %19 = vsyncpa [#allocation3], 0
    %20 = vsyncpa [#allocation6], 0
    %21 = vsyncpa [#allocation9], 0
    %22 = vsyncpa [#allocation12], 0
    %23 = vsyncpa [#allocation4], 0
    %24 = vsyncpa [#allocation15], 0
    %25 = vsyncpa [#allocation18], 0
    // Predicated region
    $region2: #{forward.1} parent=1 // pred_check
      _
    $region3: #{forward.1} parent=1 // pred_check_branch
      %27 = sbr.rel (0) target = $region5
    $region4: #{forward.1} parent=1 // pred_region
      %s29 = ssub.s32 256, 256
      %30 = vsyncadd [#allocation3], %s29
      %s31 = sshll.u32 [#allocation2], 4
      %s32 = int_to_ptr.vmem [resolvable:$true] %s31
      %37 = dma.hbm_to_vmem [thread:$0]  %s0, 256, %s32, [#allocation3], 128, 128, 8
    $region5: #{forward.1} parent=1 // pred_fallthru
      _
    // Predicated region
    $region6: #{forward.1} parent=1 // pred_check
      _
    $region7: #{forward.1} parent=1 // pred_check_branch
      %39 = sbr.rel (0) target = $region9
    $region8: #{forward.1} parent=1 // pred_region
      _
    $region9: #{forward.1} parent=1 // pred_fallthru
      _
    // Predicated region
    $region10: #{forward.1} parent=1 // pred_check
      _
    $region11: #{forward.1} parent=1 // pred_check_branch
      %41 = sbr.rel (0) target = $region13
    $region12: #{forward.1} parent=1 // pred_region
      _
    $region13: #{forward.1} parent=1 // pred_fallthru
      _
    // Predicated region
    $region14: #{forward.1} parent=1 // pred_check
      _
    $region15: #{forward.1} parent=1 // pred_check_branch
      %43 = sbr.rel (0) target = $region17
    $region16: #{forward.1} parent=1 // pred_region
      %s45 = ssub.s32 2048, 2048
      %46 = vsyncadd [#allocation6], %s45
      %s47 = sshll.u32 [#allocation5], 4
      %s48 = int_to_ptr.vmem [resolvable:$true] %s47
      %53 = dma.hbm_to_vmem [thread:$0]  %s3, 2048, %s48, [#allocation6], 256, 256, 16
    $region17: #{forward.1} parent=1 // pred_fallthru
      _
    // Predicated region
    $region18: #{forward.1} parent=1 // pred_check
      _
    $region19: #{forward.1} parent=1 // pred_check_branch
      %55 = sbr.rel (0) target = $region21
    $region20: #{forward.1} parent=1 // pred_region
      %s57 = ssub.s32 1024, 1024
      %58 = vsyncadd [#allocation6], %s57
      %s59 = sshll.u32 [#allocation7], 4
      %s60 = int_to_ptr.vmem [resolvable:$true] %s59
      %65 = dma.hbm_to_vmem [thread:$0]  %s4, 1024, %s60, [#allocation6], 128, 128, 8
    $region21: #{forward.1} parent=1 // pred_fallthru
      _
    // Predicated region
    $region22: #{forward.1} parent=1 // pred_check
      _
    $region23: #{forward.1} parent=1 // pred_check_branch
      %67 = sbr.rel (0) target = $region25
    $region24: #{forward.1} parent=1 // pred_region
      %s69 = ssub.s32 512, 512
      %70 = vsyncadd [#allocation9], %s69
      %s71 = sshll.u32 [#allocation8], 4
      %s72 = int_to_ptr.vmem [resolvable:$true] %s71
      %77 = dma.hbm_to_vmem [thread:$0]  %s5, 512, %s72, [#allocation9], 128, 128, 8
    $region25: #{forward.1} parent=1 // pred_fallthru
      _
    // Predicated region
    $region26: #{forward.1} parent=1 // pred_check
      _
    $region27: #{forward.1} parent=1 // pred_check_branch
      %79 = sbr.rel (0) target = $region29
    $region28: #{forward.1} parent=1 // pred_region
      %s81 = ssub.s32 512, 512
      %82 = vsyncadd [#allocation9], %s81
      %s83 = sshll.u32 [#allocation10], 4
      %s84 = int_to_ptr.vmem [resolvable:$true] %s83
      %89 = dma.hbm_to_vmem [thread:$0]  %s6, 512, %s84, [#allocation9], 128, 128, 8
    $region29: #{forward.1} parent=1 // pred_fallthru
      _
    // Predicated region
    $region30: #{forward.1} parent=1 // pred_check
      _
    $region31: #{forward.1} parent=1 // pred_check_branch
      %91 = sbr.rel (0) target = $region33
    $region32: #{forward.1} parent=1 // pred_region
      _
    $region33: #{forward.1} parent=1 // pred_fallthru
      _
    // Predicated region
    $region34: #{forward.1} parent=1 // pred_check
      _
    $region35: #{forward.1} parent=1 // pred_check_branch
      %93 = sbr.rel (0) target = $region37
    $region36: #{forward.1} parent=1 // pred_region
      %s95 = ssub.s32 384, 384
      %96 = vsyncadd [#allocation12], %s95
      %s98 = sshll.u32 [#allocation11], 4
      %s99 = int_to_ptr.vmem [resolvable:$true] %s98
      %101 = dma.hbm_to_vmem [thread:$0]  %s8, 384, %s99, [#allocation12]
    $region37: #{forward.1} parent=1 // pred_fallthru
      _
    // Predicated region
    $region38: #{forward.1} parent=1 // pred_check
      _
    $region39: #{forward.1} parent=1 // pred_check_branch
      %103 = sbr.rel (0) target = $region41
    $region40: #{forward.1} parent=1 // pred_region
      %104 = dma.done [#allocation3], 256
    $region41: #{forward.1} parent=1 // pred_fallthru
      _
    // Predicated region
    $region42: #{forward.1} parent=1 // pred_check
      _
    $region43: #{forward.1} parent=1 // pred_check_branch
      %106 = sbr.rel (0) target = $region45
    $region44: #{forward.1} parent=1 // pred_region
      %107 = dma.done [#allocation6], 2048
    $region45: #{forward.1} parent=1 // pred_fallthru
      _
    // Predicated region
    $region46: #{forward.1} parent=1 // pred_check
      _
    $region47: #{forward.1} parent=1 // pred_check_branch
      %109 = sbr.rel (0) target = $region49
    $region48: #{forward.1} parent=1 // pred_region
      %110 = dma.done [#allocation6], 1024
    $region49: #{forward.1} parent=1 // pred_fallthru
      _
    // Predicated region
    $region50: #{forward.1} parent=1 // pred_check
      _
    $region51: #{forward.1} parent=1 // pred_check_branch
      %112 = sbr.rel (0) target = $region53
    $region52: #{forward.1} parent=1 // pred_region
      %113 = dma.done [#allocation9], 512
    $region53: #{forward.1} parent=1 // pred_fallthru
      _
    // Predicated region
    $region54: #{forward.1} parent=1 // pred_check
      _
    $region55: #{forward.1} parent=1 // pred_check_branch
      %115 = sbr.rel (0) target = $region57
    $region56: #{forward.1} parent=1 // pred_region
      %116 = dma.done [#allocation9], 512
    $region57: #{forward.1} parent=1 // pred_fallthru
      _
    // Predicated region
    $region58: #{forward.1} parent=1 // pred_check
      _
    $region59: #{forward.1} parent=1 // pred_check_branch
      %118 = sbr.rel (0) target = $region61
    $region60: #{forward.1} parent=1 // pred_region
      %119 = dma.done [#allocation12], 384
    $region61: #{forward.1} parent=1 // pred_fallthru
      _
    %v120 = vld [vmem:[#allocation2] sm:$0xff]
    %v121 = vld [vmem:[#allocation2 + $0x8] sm:$0xff]
    %v122 = vld [vmem:[#allocation11] ss:$8 sm:$0x7]
    %s123 = scalar_lea.vmem [#allocation11], 1
    %v124 = vld [vmem:[%s123] ss:$8 sm:$0x3]
    %v125 = vld [vmem:[#allocation11 + $0x2] ss:$0 sm:$0xff]
    %v126 = vld [vmem:[#allocation11 + $0x3] ss:$0 sm:$0xff]
    %v127 = vld [vmem:[#allocation11 + $0x4] ss:$0 sm:$0xff]
    %v128 = vld [vmem:[#allocation11 + $0x5] ss:$0 sm:$0xff]
    %v129 = vld [vmem:[%s2] sm:$0xff]
    %v130 = vld [vmem:[%s2 + $0x8] sm:$0xff]
    %v131 = vld [vmem:[%s2 + $0x10] sm:$0xff]
    %v132 = vld [vmem:[%s2 + $0x18] sm:$0xff]
    %v133 = vld [vmem:[%s2 + $0x20] sm:$0xff]
    %v134 = vld [vmem:[%s2 + $0x28] sm:$0xff]
    %v136 = vlaneseq
    %v137 = vshrl.u32 %v136, 7
    %v138 = vsub.s32 0, %v137
    %v139 = vrot.slane %v122, %v138
    %v140 = vlaneseq
    %v141 = vshrl.u32 %v140, 7
    %v142 = vsub.s32 1, %v141
    %v143 = vrot.slane %v122, %v142
    %v144 = vlaneseq
    %v145 = vshrl.u32 %v144, 7
    %v146 = vsub.s32 2, %v145
    %v147 = vrot.slane %v122, %v146
    %vm151 = vcmask 130048
    %v153 = vsel %vm151, %v120, 0
    %v156 = vsel %vm151, %v121, 0
    %158 = vmatprep.subr.mxu0 %v130
    %159 = vmatpush1.msra.mxu0 %v129
    %160 = vmatprep.subr.mxu0 %v133
    %161 = vmatpush1.msra.mxu0 %v132
    %162 = vmatprep.subr.mxu0 0.0
    %163 = vmatpush1.msra.mxu0 0.0
    %164 = vmatprep.subr.mxu0 0.0
    %165 = vmatpush1.msra.mxu0 0.0
    %166 = vmatprep.subr.mxu0 0.0
    %167 = vmatpush1.msra.mxu0 0.0
    %168 = vmatprep.subr.mxu0 0.0
    %169 = vmatpush1.msra.mxu0 0.0
    %170 = vmatprep.subr.mxu0 0.0
    %171 = vmatpush1.msra.mxu0 0.0
    %172 = vmatprep.subr.mxu0 0.0
    %173 = vmatpush1.msra.mxu0 0.0
    %174 = vmatprep.subr.mxu0 0.0
    %175 = vmatpush1.msra.mxu0 0.0
    %176 = vmatprep.subr.mxu0 0.0
    %177 = vmatpush1.msra.mxu0 0.0
    %178 = vmatprep.subr.mxu0 0.0
    %179 = vmatpush1.msra.mxu0 0.0
    %180 = vmatprep.subr.mxu0 0.0
    %181 = vmatpush1.msra.mxu0 0.0
    %182 = vmatprep.subr.mxu0 0.0
    %183 = vmatpush1.msra.mxu0 0.0
    %184 = vmatprep.subr.mxu0 0.0
    %185 = vmatpush1.msra.mxu0 0.0
    %186 = vmatprep.subr.mxu0 0.0
    %187 = vmatpush1.msra.mxu0 0.0
    %188 = vmatprep.subr.mxu0 0.0
    %189 = vmatpush1.msra.mxu0 0.0
    %190 = vmatprep.subr.mxu0 0.0
    %191 = vmatpush1.msra.mxu0 0.0
    %192 = vmatprep.subr.mxu0 0.0
    %193 = vmatpush1.msra.mxu0 0.0
    %194 = vmatprep.subr.mxu0 0.0
    %195 = vmatpush1.msra.mxu0 0.0
    %196 = vmatprep.subr.mxu0 0.0
    %197 = vmatpush1.msra.mxu0 0.0
    %198 = vmatprep.subr.mxu0 0.0
    %199 = vmatpush1.msra.mxu0 0.0
    %200 = vmatprep.subr.mxu0 0.0
    %201 = vmatpush1.msra.mxu0 0.0
    %202 = vmatprep.subr.mxu0 0.0
    %203 = vmatpush1.msra.mxu0 0.0
    %204 = vmatprep.subr.mxu0 0.0
    %205 = vmatpush1.msra.mxu0 0.0
    %206 = vmatprep.subr.mxu0 0.0
    %207 = vmatpush1.msra.mxu0 0.0
    %208 = vmatprep.subr.mxu0 0.0
    %209 = vmatpush1.msra.mxu0 0.0
    %210 = vmatprep.subr.mxu0 0.0
    %211 = vmatpush1.msra.mxu0 0.0
    %212 = vmatprep.subr.mxu0 0.0
    %213 = vmatpush1.msra.mxu0 0.0
    %214 = vmatprep.subr.mxu0 0.0
    %215 = vmatpush1.msra.mxu0 0.0
    %216 = vmatprep.subr.mxu0 0.0
    %217 = vmatpush1.msra.mxu0 0.0
    %218 = vmatprep.subr.mxu0 0.0
    %219 = vmatpush1.msra.mxu0 0.0
    %220 = vmatprep.subr.mxu0 0.0
    %221 = vmatpush1.msra.mxu0 0.0
    %222 = vmatprep.mubr.f32.mxu0 0.0
    %223 = vmatmul.mubr.f32.gmra.mrb[0].mxu0 %v153
    %v224 = vpop.f32.mrb[0].mxu0
    %v225 = vadd.f32 %v139, %v224
    %v226 = vpop.f32.mrb[0].mxu0
    %v227 = vadd.f32 %v143, %v226
    %228 = vmatprep.mubr.f32.mxu0 0.0
    %229 = vmatmul.mubr.f32.gmra.mrb[0].mxu0 %v156
    %v230 = vpop.f32.mrb[0].mxu0
    %v231 = vadd.f32 %v139, %v230
    %v232 = vpop.f32.mrb[0].mxu0
    %v233 = vadd.f32 %v143, %v232
    %234 = vdwg.mxu0
    %235 = vmatprep.subr.mxu0 0.0
    %236 = vmatpush1.msra.mxu0 %v131
    %237 = vmatprep.subr.mxu0 0.0
    %238 = vmatpush1.msra.mxu0 %v134
    %239 = vmatprep.subr.mxu0 0.0
    %240 = vmatpush1.msra.mxu0 0.0
    %241 = vmatprep.subr.mxu0 0.0
    %242 = vmatpush1.msra.mxu0 0.0
    %243 = vmatprep.subr.mxu0 0.0
    %244 = vmatpush1.msra.mxu0 0.0
    %245 = vmatprep.subr.mxu0 0.0
    %246 = vmatpush1.msra.mxu0 0.0
    %247 = vmatprep.subr.mxu0 0.0
    %248 = vmatpush1.msra.mxu0 0.0
    %249 = vmatprep.subr.mxu0 0.0
    %250 = vmatpush1.msra.mxu0 0.0
    %251 = vmatprep.subr.mxu0 0.0
    %252 = vmatpush1.msra.mxu0 0.0
    %253 = vmatprep.subr.mxu0 0.0
    %254 = vmatpush1.msra.mxu0 0.0
    %255 = vmatprep.subr.mxu0 0.0
    %256 = vmatpush1.msra.mxu0 0.0
    %257 = vmatprep.subr.mxu0 0.0
    %258 = vmatpush1.msra.mxu0 0.0
    %259 = vmatprep.subr.mxu0 0.0
    %260 = vmatpush1.msra.mxu0 0.0
    %261 = vmatprep.subr.mxu0 0.0
    %262 = vmatpush1.msra.mxu0 0.0
    %263 = vmatprep.subr.mxu0 0.0
    %264 = vmatpush1.msra.mxu0 0.0
    %265 = vmatprep.subr.mxu0 0.0
    %266 = vmatpush1.msra.mxu0 0.0
    %267 = vmatprep.subr.mxu0 0.0
    %268 = vmatpush1.msra.mxu0 0.0
    %269 = vmatprep.subr.mxu0 0.0
    %270 = vmatpush1.msra.mxu0 0.0
    %271 = vmatprep.subr.mxu0 0.0
    %272 = vmatpush1.msra.mxu0 0.0
    %273 = vmatprep.subr.mxu0 0.0
    %274 = vmatpush1.msra.mxu0 0.0
    %275 = vmatprep.subr.mxu0 0.0
    %276 = vmatpush1.msra.mxu0 0.0
    %277 = vmatprep.subr.mxu0 0.0
    %278 = vmatpush1.msra.mxu0 0.0
    %279 = vmatprep.subr.mxu0 0.0
    %280 = vmatpush1.msra.mxu0 0.0
    %281 = vmatprep.subr.mxu0 0.0
    %282 = vmatpush1.msra.mxu0 0.0
    %283 = vmatprep.subr.mxu0 0.0
    %284 = vmatpush1.msra.mxu0 0.0
    %285 = vmatprep.subr.mxu0 0.0
    %286 = vmatpush1.msra.mxu0 0.0
    %287 = vmatprep.subr.mxu0 0.0
    %288 = vmatpush1.msra.mxu0 0.0
    %289 = vmatprep.subr.mxu0 0.0
    %290 = vmatpush1.msra.mxu0 0.0
    %291 = vmatprep.subr.mxu0 0.0
    %292 = vmatpush1.msra.mxu0 0.0
    %293 = vmatprep.subr.mxu0 0.0
    %294 = vmatpush1.msra.mxu0 0.0
    %295 = vmatprep.subr.mxu0 0.0
    %296 = vmatpush1.msra.mxu0 0.0
    %297 = vmatprep.subr.mxu0 0.0
    %298 = vmatpush1.msra.mxu0 0.0
    %299 = vmatprep.mubr.f32.mxu0 0.0
    %300 = vmatmul.mubr.f32.gmra.mrb[0].mxu0 %v153
    %v301 = vpop.f32.mrb[0].mxu0
    %v302 = vadd.f32 %v147, %v301
    %v303 = vpop.f32.mrb[0].mxu0
    %304 = vmatprep.mubr.f32.mxu0 0.0
    %305 = vmatmul.mubr.f32.gmra.mrb[0].mxu0 %v156
    %v306 = vpop.f32.mrb[0].mxu0
    %v307 = vadd.f32 %v147, %v306
    %v308 = vpop.f32.mrb[0].mxu0
    %309 = vdwg.mxu0
    %v310 = vld [vmem:[#allocation5] sm:$0xff]
    %v311 = vld [vmem:[#allocation5 + $0x8] sm:$0xff]
    %v312 = vld [vmem:[#allocation5 + $0x10] sm:$0xff]
    %v313 = vld [vmem:[#allocation5 + $0x18] sm:$0xff]
    %v314 = vld [vmem:[#allocation5 + $0x20] sm:$0xff]
    %v315 = vld [vmem:[#allocation5 + $0x28] sm:$0xff]
    %v316 = vld [vmem:[#allocation5 + $0x30] sm:$0xff]
    %v317 = vld [vmem:[#allocation5 + $0x38] sm:$0xff]
    %v318 = vld [vmem:[#allocation5 + $0x40] sm:$0xff]
    %v319 = vld [vmem:[#allocation5 + $0x48] sm:$0xff]
    %v320 = vld [vmem:[#allocation5 + $0x50] sm:$0xff]
    %v321 = vld [vmem:[#allocation5 + $0x58] sm:$0xff]
    %v322 = vld [vmem:[#allocation5 + $0x60] sm:$0xff]
    %v323 = vld [vmem:[#allocation5 + $0x68] sm:$0xff]
    %v324 = vld [vmem:[#allocation5 + $0x70] sm:$0xff]
    %v325 = vld [vmem:[#allocation5 + $0x78] sm:$0xff]
    %v327 = vlaneseq
    %v328 = vshrl.u32 %v327, 7
    %v329 = vsub.s32 0, %v328
    %v330 = vrot.slane %v124, %v329
    %v331 = vlaneseq
    %v332 = vshrl.u32 %v331, 7
    %v333 = vsub.s32 1, %v332
    %v334 = vrot.slane %v124, %v333
    %vm337 = vcmask 523264
    %v339 = vsel %vm337, 0.0, 0
    %341 = vmatprep.subr.mxu0 %v311
    %342 = vmatpush1.msra.mxu0 %v310
    %343 = vmatprep.subr.mxu0 %v313
    %344 = vmatpush1.msra.mxu0 %v312
    %345 = vmatprep.subr.mxu0 %v315
    %346 = vmatpush1.msra.mxu0 %v314
    %347 = vmatprep.subr.mxu0 %v317
    %348 = vmatpush1.msra.mxu0 %v316
    %349 = vmatprep.subr.mxu0 %v319
    %350 = vmatpush1.msra.mxu0 %v318
    %351 = vmatprep.subr.mxu0 %v321
    %352 = vmatpush1.msra.mxu0 %v320
    %353 = vmatprep.subr.mxu0 %v323
    %354 = vmatpush1.msra.mxu0 %v322
    %355 = vmatprep.subr.mxu0 %v325
    %356 = vmatpush1.msra.mxu0 %v324
    %357 = vmatprep.subr.mxu0 0.0
    %358 = vmatpush1.msra.mxu0 0.0
    %359 = vmatprep.subr.mxu0 0.0
    %360 = vmatpush1.msra.mxu0 0.0
    %361 = vmatprep.subr.mxu0 0.0
    %362 = vmatpush1.msra.mxu0 0.0
    %363 = vmatprep.subr.mxu0 0.0
    %364 = vmatpush1.msra.mxu0 0.0
    %365 = vmatprep.subr.mxu0 0.0
    %366 = vmatpush1.msra.mxu0 0.0
    %367 = vmatprep.subr.mxu0 0.0
    %368 = vmatpush1.msra.mxu0 0.0
    %369 = vmatprep.subr.mxu0 0.0
    %370 = vmatpush1.msra.mxu0 0.0
    %371 = vmatprep.subr.mxu0 0.0
    %372 = vmatpush1.msra.mxu0 0.0
    %373 = vmatprep.subr.mxu0 0.0
    %374 = vmatpush1.msra.mxu0 0.0
    %375 = vmatprep.subr.mxu0 0.0
    %376 = vmatpush1.msra.mxu0 0.0
    %377 = vmatprep.subr.mxu0 0.0
    %378 = vmatpush1.msra.mxu0 0.0
    %379 = vmatprep.subr.mxu0 0.0
    %380 = vmatpush1.msra.mxu0 0.0
    %381 = vmatprep.subr.mxu0 0.0
    %382 = vmatpush1.msra.mxu0 0.0
    %383 = vmatprep.subr.mxu0 0.0
    %384 = vmatpush1.msra.mxu0 0.0
    %385 = vmatprep.subr.mxu0 0.0
    %386 = vmatpush1.msra.mxu0 0.0
    %387 = vmatprep.subr.mxu0 0.0
    %388 = vmatpush1.msra.mxu0 0.0
    %389 = vmatprep.subr.mxu0 0.0
    %390 = vmatpush1.msra.mxu0 0.0
    %391 = vmatprep.subr.mxu0 0.0
    %392 = vmatpush1.msra.mxu0 0.0
    %393 = vmatprep.subr.mxu0 0.0
    %394 = vmatpush1.msra.mxu0 0.0
    %395 = vmatprep.subr.mxu0 0.0
    %396 = vmatpush1.msra.mxu0 0.0
    %397 = vmatprep.subr.mxu0 0.0
    %398 = vmatpush1.msra.mxu0 0.0
    %399 = vmatprep.subr.mxu0 0.0
    %400 = vmatpush1.msra.mxu0 0.0
    %401 = vmatprep.subr.mxu0 0.0
    %402 = vmatpush1.msra.mxu0 0.0
    %403 = vmatprep.subr.mxu0 0.0
    %404 = vmatpush1.msra.mxu0 0.0
    %405 = vmatprep.mubr.f32.mxu0 0.0
    %406 = vmatmul.mubr.f32.gmra.mrb[0].mxu0 %v339
    %v407 = vpop.f32.mrb[0].mxu0
    %v408 = vadd.f32 %v330, %v407
    %v409 = vpop.f32.mrb[0].mxu0
    %v410 = vadd.f32 %v334, %v409
    %411 = vdwg.mxu0
    %v413 = vrot.slane %v408, 1
    %v416 = vadd.f32 %v225, %v408
    %v417 = vadd.f32 %v231, %v413
    %v418 = vxor.u32 %v416, 2147483648
    %v419 = vxor.u32 %v417, 2147483648
    %v420 = vmul.f32 %v418, 1.442695
    %v421 = vpow.pop %v420
    %v422 = vmul.f32 %v419, 1.442695
    %v423 = vpow.pop %v422
    %v424 = vadd.f32 %v421, 1.0
    %v425 = vadd.f32 %v423, 1.0
    %v426 = vrcp.pop %v424
    %v427 = vmul.f32 1.0, %v426
    %v428 = vrcp.pop %v425
    %v429 = vmul.f32 1.0, %v428
    %430 = vrot.lane.b32.xlu0 %v408, 64
    %v431 = vpop.permute.xlu0 %430
    %432 = vrot.lane.b32.xlu0 %v413, 64
    %v433 = vpop.permute.xlu0 %432
    %v436 = vmul.f32 %v427, %v431
    %v437 = vmul.f32 %v429, %v433
    %440 = vrot.lane.b32.xlu0 %v436, 64
    %v441 = vpop.permute.xlu0 %440
    %442 = vrot.lane.b32.xlu0 %v437, 64
    %v443 = vpop.permute.xlu0 %442
    %v446 = vadd.f32 %v225, %v441
    %v447 = vadd.f32 %v231, %v443
    %v448 = vtanh.pop %v446
    %v449 = vtanh.pop %v447
    %v450 = vsub.f32 1.0, %v427
    %v451 = vsub.f32 1.0, %v429
    %454 = vrot.lane.b32.xlu0 %v448, 96
    %v455 = vpop.permute.xlu0 %454
    %456 = vrot.lane.b32.xlu0 %v449, 96
    %v457 = vpop.permute.xlu0 %456
    %v460 = vmul.f32 %v450, %v455
    %v461 = vmul.f32 %v451, %v457
    %v462 = vmul.f32 %v427, 0.0
    %v463 = vmul.f32 %v429, 0.0
    %v464 = vadd.f32 %v460, %v462
    %v465 = vadd.f32 %v461, %v463
    %v466 = vrot.slane %v408, 2
    %v468 = vadd.f32 %v225, %v413
    %v469 = vadd.f32 %v231, %v466
    %v470 = vxor.u32 %v468, 2147483648
    %v471 = vxor.u32 %v469, 2147483648
    %v472 = vmul.f32 %v470, 1.442695
    %v473 = vpow.pop %v472
    %v474 = vmul.f32 %v471, 1.442695
    %v475 = vpow.pop %v474
    %v476 = vadd.f32 %v473, 1.0
    %v477 = vadd.f32 %v475, 1.0
    %v478 = vrcp.pop %v476
    %v479 = vmul.f32 1.0, %v478
    %v480 = vrcp.pop %v477
    %v481 = vmul.f32 1.0, %v480
    %v483 = vrot.slane %v410, 1
    %v484 = vrot.slane %v410, 2
    %v487 = vadd.f32 %v227, %v483
    %v488 = vadd.f32 %v233, %v484
    %v489 = vxor.u32 %v487, 2147483648
    %v490 = vxor.u32 %v488, 2147483648
    %v491 = vmul.f32 %v489, 1.442695
    %v492 = vpow.pop %v491
    %v493 = vmul.f32 %v490, 1.442695
    %v494 = vpow.pop %v493
    %v495 = vadd.f32 %v492, 1.0
    %v496 = vadd.f32 %v494, 1.0
    %v497 = vrcp.pop %v495
    %v498 = vmul.f32 1.0, %v497
    %v499 = vrcp.pop %v496
    %v500 = vmul.f32 1.0, %v499
    %501 = vrot.lane.b32.xlu0 %v483, 64
    %v502 = vpop.permute.xlu0 %501
    %503 = vrot.lane.b32.xlu0 %v484, 64
    %v504 = vpop.permute.xlu0 %503
    %v507 = vmul.f32 %v479, %v502
    %v508 = vmul.f32 %v481, %v504
    %511 = vrot.lane.b32.xlu0 %v507, 64
    %v512 = vpop.permute.xlu0 %511
    %513 = vrot.lane.b32.xlu0 %v508, 64
    %v514 = vpop.permute.xlu0 %513
    %v517 = vadd.f32 %v227, %v512
    %v518 = vadd.f32 %v233, %v514
    %v519 = vtanh.pop %v517
    %v520 = vtanh.pop %v518
    %v521 = vsub.f32 1.0, %v498
    %v522 = vsub.f32 1.0, %v500
    %525 = vrot.lane.b32.xlu0 %v519, 96
    %v526 = vpop.permute.xlu0 %525
    %527 = vrot.lane.b32.xlu0 %v520, 96
    %v528 = vpop.permute.xlu0 %527
    %v531 = vmul.f32 %v521, %v526
    %v532 = vmul.f32 %v522, %v528
    %v533 = vmul.f32 %v498, 0.0
    %v534 = vmul.f32 %v500, 0.0
    %v535 = vadd.f32 %v531, %v533
    %v536 = vadd.f32 %v532, %v534
    %v539 = vrot.slane %v465, 7
    %vm540 = vcmask 1041409
    %v541 = vsel %vm540, %v539, %v464
    %542 = vrot.lane.b32.xlu0 %v541, 96
    %v543 = vpop.permute.xlu0 %542
    %v547 = vrot.slane %v535, 7
    %v548 = vrot.slane %v536, 6
    %v549 = vsel %vm540, %v548, %v547
    %550 = vrot.lane.b32.xlu0 %v549, 32
    %v551 = vpop.permute.xlu0 %550
    %vm553 = vcmask 261120
    %v554 = vsel %vm553, %v543, %v551
    %555 = vrot.lane.b32.xlu0 %v464, 96
    %v556 = vpop.permute.xlu0 %555
    %557 = vrot.lane.b32.xlu0 %v465, 96
    %v558 = vpop.permute.xlu0 %557
    %vm561 = vcmask 122880
    %562 = vst.msk [vmem:[#allocation14] sm:$0x1] %vm561, %v556
    %563 = vst.msk [vmem:[#allocation14 + $0x8] sm:$0x1] %vm561, %v558
    %564 = vrot.lane.b32.xlu0 %v464, 80
    %v565 = vpop.permute.xlu0 %564
    %566 = vrot.lane.b32.xlu0 %v465, 80
    %v567 = vpop.permute.xlu0 %566
    %570 = vst.msk [vmem:[#allocation16] sm:$0x1] %vm561, %v565
    %571 = vst.msk [vmem:[#allocation16 + $0x8] sm:$0x1] %vm561, %v567
    %572 = vrot.lane.b32.xlu0 %v535, 16
    %v573 = vpop.permute.xlu0 %572
    %574 = vrot.lane.b32.xlu0 %v536, 16
    %v575 = vpop.permute.xlu0 %574
    %vm578 = vcmask 261255
    %579 = vst.msk [vmem:[#allocation14] sm:$0x80] %vm578, %v573
    %580 = vst.msk [vmem:[#allocation14 + $0x8] sm:$0x80] %vm578, %v575
    %581 = vst.msk [vmem:[#allocation16] sm:$0x80] %vm578, %v535
    %582 = vst.msk [vmem:[#allocation16 + $0x8] sm:$0x80] %vm578, %v536
    %v584 = vsel %vm337, %v554, 0
    %586 = vmatprep.subr.mxu0 %v311
    %587 = vmatpush1.msra.mxu0 %v310
    %588 = vmatprep.subr.mxu0 %v313
    %589 = vmatpush1.msra.mxu0 %v312
    %590 = vmatprep.subr.mxu0 %v315
    %591 = vmatpush1.msra.mxu0 %v314
    %592 = vmatprep.subr.mxu0 %v317
    %593 = vmatpush1.msra.mxu0 %v316
    %594 = vmatprep.subr.mxu0 %v319
    %595 = vmatpush1.msra.mxu0 %v318
    %596 = vmatprep.subr.mxu0 %v321
    %597 = vmatpush1.msra.mxu0 %v320
    %598 = vmatprep.subr.mxu0 %v323
    %599 = vmatpush1.msra.mxu0 %v322
    %600 = vmatprep.subr.mxu0 %v325
    %601 = vmatpush1.msra.mxu0 %v324
    %602 = vmatprep.subr.mxu0 0.0
    %603 = vmatpush1.msra.mxu0 0.0
    %604 = vmatprep.subr.mxu0 0.0
    %605 = vmatpush1.msra.mxu0 0.0
    %606 = vmatprep.subr.mxu0 0.0
    %607 = vmatpush1.msra.mxu0 0.0
    %608 = vmatprep.subr.mxu0 0.0
    %609 = vmatpush1.msra.mxu0 0.0
    %610 = vmatprep.subr.mxu0 0.0
    %611 = vmatpush1.msra.mxu0 0.0
    %612 = vmatprep.subr.mxu0 0.0
    %613 = vmatpush1.msra.mxu0 0.0
    %614 = vmatprep.subr.mxu0 0.0
    %615 = vmatpush1.msra.mxu0 0.0
    %616 = vmatprep.subr.mxu0 0.0
    %617 = vmatpush1.msra.mxu0 0.0
    %618 = vmatprep.subr.mxu0 0.0
    %619 = vmatpush1.msra.mxu0 0.0
    %620 = vmatprep.subr.mxu0 0.0
    %621 = vmatpush1.msra.mxu0 0.0
    %622 = vmatprep.subr.mxu0 0.0
    %623 = vmatpush1.msra.mxu0 0.0
    %624 = vmatprep.subr.mxu0 0.0
    %625 = vmatpush1.msra.mxu0 0.0
    %626 = vmatprep.subr.mxu0 0.0
    %627 = vmatpush1.msra.mxu0 0.0
    %628 = vmatprep.subr.mxu0 0.0
    %629 = vmatpush1.msra.mxu0 0.0
    %630 = vmatprep.subr.mxu0 0.0
    %631 = vmatpush1.msra.mxu0 0.0
    %632 = vmatprep.subr.mxu0 0.0
    %633 = vmatpush1.msra.mxu0 0.0
    %634 = vmatprep.subr.mxu0 0.0
    %635 = vmatpush1.msra.mxu0 0.0
    %636 = vmatprep.subr.mxu0 0.0
    %637 = vmatpush1.msra.mxu0 0.0
    %638 = vmatprep.subr.mxu0 0.0
    %639 = vmatpush1.msra.mxu0 0.0
    %640 = vmatprep.subr.mxu0 0.0
    %641 = vmatpush1.msra.mxu0 0.0
    %642 = vmatprep.subr.mxu0 0.0
    %643 = vmatpush1.msra.mxu0 0.0
    %644 = vmatprep.subr.mxu0 0.0
    %645 = vmatpush1.msra.mxu0 0.0
    %646 = vmatprep.subr.mxu0 0.0
    %647 = vmatpush1.msra.mxu0 0.0
    %648 = vmatprep.subr.mxu0 0.0
    %649 = vmatpush1.msra.mxu0 0.0
    %650 = vmatprep.mubr.f32.mxu0 0.0
    %651 = vmatmul.mubr.f32.gmra.mrb[0].mxu0 %v584
    %v652 = vpop.f32.mrb[0].mxu0
    %v653 = vadd.f32 %v330, %v652
    %v654 = vpop.f32.mrb[0].mxu0
    %v655 = vadd.f32 %v334, %v654
    %656 = vdwg.mxu0
    %v658 = vrot.slane %v653, 7
    %v661 = vadd.f32 %v225, %v658
    %v662 = vadd.f32 %v231, %v653
    %v663 = vxor.u32 %v661, 2147483648
    %v664 = vxor.u32 %v662, 2147483648
    %v665 = vmul.f32 %v663, 1.442695
    %v666 = vpow.pop %v665
    %v667 = vmul.f32 %v664, 1.442695
    %v668 = vpow.pop %v667
    %v669 = vadd.f32 %v666, 1.0
    %v670 = vadd.f32 %v668, 1.0
    %v671 = vrcp.pop %v669
    %v672 = vmul.f32 1.0, %v671
    %v673 = vrcp.pop %v670
    %v674 = vmul.f32 1.0, %v673
    %675 = vrot.lane.b32.xlu0 %v658, 64
    %v676 = vpop.permute.xlu0 %675
    %677 = vrot.lane.b32.xlu0 %v653, 64
    %v678 = vpop.permute.xlu0 %677
    %v681 = vmul.f32 %v672, %v676
    %v682 = vmul.f32 %v674, %v678
    %685 = vrot.lane.b32.xlu0 %v681, 64
    %v686 = vpop.permute.xlu0 %685
    %687 = vrot.lane.b32.xlu0 %v682, 64
    %v688 = vpop.permute.xlu0 %687
    %v691 = vadd.f32 %v225, %v686
    %v692 = vadd.f32 %v231, %v688
    %v693 = vtanh.pop %v691
    %v694 = vtanh.pop %v692
    %v695 = vsub.f32 1.0, %v672
    %v696 = vsub.f32 1.0, %v674
    %699 = vrot.lane.b32.xlu0 %v693, 96
    %v700 = vpop.permute.xlu0 %699
    %701 = vrot.lane.b32.xlu0 %v694, 96
    %v702 = vpop.permute.xlu0 %701
    %v705 = vmul.f32 %v695, %v700
    %v706 = vmul.f32 %v696, %v702
    %v707 = vrot.slane %v554, 7
    %708 = vrot.lane.b32.xlu0 %v707, 32
    %v709 = vpop.permute.xlu0 %708
    %710 = vrot.lane.b32.xlu0 %v554, 32
    %v711 = vpop.permute.xlu0 %710
    %v714 = vmul.f32 %v672, %v709
    %v715 = vmul.f32 %v674, %v711
    %v716 = vadd.f32 %v705, %v714
    %v717 = vadd.f32 %v706, %v715
    %v718 = vrot.slane %v653, 2
    %v719 = vrot.slane %v653, 3
    %v722 = vadd.f32 %v225, %v718
    %v723 = vadd.f32 %v231, %v719
    %v724 = vxor.u32 %v722, 2147483648
    %v725 = vxor.u32 %v723, 2147483648
    %v726 = vmul.f32 %v724, 1.442695
    %v727 = vpow.pop %v726
    %v728 = vmul.f32 %v725, 1.442695
    %v729 = vpow.pop %v728
    %v730 = vadd.f32 %v727, 1.0
    %v731 = vadd.f32 %v729, 1.0
    %v732 = vrcp.pop %v730
    %v733 = vmul.f32 1.0, %v732
    %v734 = vrcp.pop %v731
    %v735 = vmul.f32 1.0, %v734
    %v737 = vrot.slane %v655, 2
    %v738 = vrot.slane %v655, 3
    %v741 = vadd.f32 %v227, %v737
    %v742 = vadd.f32 %v233, %v738
    %v743 = vxor.u32 %v741, 2147483648
    %v744 = vxor.u32 %v742, 2147483648
    %v745 = vmul.f32 %v743, 1.442695
    %v746 = vpow.pop %v745
    %v747 = vmul.f32 %v744, 1.442695
    %v748 = vpow.pop %v747
    %v749 = vadd.f32 %v746, 1.0
    %v750 = vadd.f32 %v748, 1.0
    %v751 = vrcp.pop %v749
    %v752 = vmul.f32 1.0, %v751
    %v753 = vrcp.pop %v750
    %v754 = vmul.f32 1.0, %v753
    %755 = vrot.lane.b32.xlu0 %v737, 64
    %v756 = vpop.permute.xlu0 %755
    %757 = vrot.lane.b32.xlu0 %v738, 64
    %v758 = vpop.permute.xlu0 %757
    %v761 = vmul.f32 %v733, %v756
    %v762 = vmul.f32 %v735, %v758
    %765 = vrot.lane.b32.xlu0 %v761, 64
    %v766 = vpop.permute.xlu0 %765
    %767 = vrot.lane.b32.xlu0 %v762, 64
    %v768 = vpop.permute.xlu0 %767
    %v771 = vadd.f32 %v227, %v766
    %v772 = vadd.f32 %v233, %v768
    %v773 = vtanh.pop %v771
    %v774 = vtanh.pop %v772
    %v775 = vsub.f32 1.0, %v752
    %v776 = vsub.f32 1.0, %v754
    %779 = vrot.lane.b32.xlu0 %v773, 96
    %v780 = vpop.permute.xlu0 %779
    %781 = vrot.lane.b32.xlu0 %v774, 96
    %v782 = vpop.permute.xlu0 %781
    %v785 = vmul.f32 %v775, %v780
    %v786 = vmul.f32 %v776, %v782
    %v787 = vrot.slane %v554, 2
    %v788 = vrot.slane %v554, 3
    %789 = vrot.lane.b32.xlu0 %v787, 96
    %v790 = vpop.permute.xlu0 %789
    %791 = vrot.lane.b32.xlu0 %v788, 96
    %v792 = vpop.permute.xlu0 %791
    %v795 = vmul.f32 %v752, %v790
    %v796 = vmul.f32 %v754, %v792
    %v797 = vadd.f32 %v785, %v795
    %v798 = vadd.f32 %v786, %v796
    %v801 = vrot.slane %v717, 7
    %vm802 = vcmask 1042434
    %v803 = vsel %vm802, %v801, %v716
    %804 = vrot.lane.b32.xlu0 %v803, 96
    %v805 = vpop.permute.xlu0 %804
    %v809 = vrot.slane %v797, 5
    %v810 = vrot.slane %v798, 4
    %v811 = vsel %vm802, %v810, %v809
    %812 = vrot.lane.b32.xlu0 %v811, 32
    %v813 = vpop.permute.xlu0 %812
    %v815 = vsel %vm553, %v805, %v813
    %816 = vrot.lane.b32.xlu0 %v716, 96
    %v817 = vpop.permute.xlu0 %816
    %818 = vrot.lane.b32.xlu0 %v717, 96
    %v819 = vpop.permute.xlu0 %818
    %vm822 = vcmask 123905
    %823 = vst.msk [vmem:[#allocation14] sm:$0x2] %vm822, %v817
    %824 = vst.msk [vmem:[#allocation14 + $0x8] sm:$0x2] %vm822, %v819
    %825 = vrot.lane.b32.xlu0 %v716, 80
    %v826 = vpop.permute.xlu0 %825
    %827 = vrot.lane.b32.xlu0 %v717, 80
    %v828 = vpop.permute.xlu0 %827
    %831 = vst.msk [vmem:[#allocation16] sm:$0x2] %vm822, %v826
    %832 = vst.msk [vmem:[#allocation16 + $0x8] sm:$0x2] %vm822, %v828
    %833 = vrot.lane.b32.xlu0 %v797, 16
    %v834 = vpop.permute.xlu0 %833
    %835 = vrot.lane.b32.xlu0 %v798, 16
    %v836 = vpop.permute.xlu0 %835
    %vm839 = vcmask 260230
    %840 = vst.msk [vmem:[#allocation14] sm:$0x40] %vm839, %v834
    %841 = vst.msk [vmem:[#allocation14 + $0x8] sm:$0x40] %vm839, %v836
    %842 = vst.msk [vmem:[#allocation16] sm:$0x40] %vm839, %v797
    %843 = vst.msk [vmem:[#allocation16 + $0x8] sm:$0x40] %vm839, %v798
    %v845 = vrot.slane %v815, 1
    %v846 = vsel %vm337, %v845, 0
    %848 = vmatprep.subr.mxu0 %v311
    %849 = vmatpush1.msra.mxu0 %v310
    %850 = vmatprep.subr.mxu0 %v313
    %851 = vmatpush1.msra.mxu0 %v312
    %852 = vmatprep.subr.mxu0 %v315
    %853 = vmatpush1.msra.mxu0 %v314
    %854 = vmatprep.subr.mxu0 %v317
    %855 = vmatpush1.msra.mxu0 %v316
    %856 = vmatprep.subr.mxu0 %v319
    %857 = vmatpush1.msra.mxu0 %v318
    %858 = vmatprep.subr.mxu0 %v321
    %859 = vmatpush1.msra.mxu0 %v320
    %860 = vmatprep.subr.mxu0 %v323
    %861 = vmatpush1.msra.mxu0 %v322
    %862 = vmatprep.subr.mxu0 %v325
    %863 = vmatpush1.msra.mxu0 %v324
    %864 = vmatprep.subr.mxu0 0.0
    %865 = vmatpush1.msra.mxu0 0.0
    %866 = vmatprep.subr.mxu0 0.0
    %867 = vmatpush1.msra.mxu0 0.0
    %868 = vmatprep.subr.mxu0 0.0
    %869 = vmatpush1.msra.mxu0 0.0
    %870 = vmatprep.subr.mxu0 0.0
    %871 = vmatpush1.msra.mxu0 0.0
    %872 = vmatprep.subr.mxu0 0.0
    %873 = vmatpush1.msra.mxu0 0.0
    %874 = vmatprep.subr.mxu0 0.0
    %875 = vmatpush1.msra.mxu0 0.0
    %876 = vmatprep.subr.mxu0 0.0
    %877 = vmatpush1.msra.mxu0 0.0
    %878 = vmatprep.subr.mxu0 0.0
    %879 = vmatpush1.msra.mxu0 0.0
    %880 = vmatprep.subr.mxu0 0.0
    %881 = vmatpush1.msra.mxu0 0.0
    %882 = vmatprep.subr.mxu0 0.0
    %883 = vmatpush1.msra.mxu0 0.0
    %884 = vmatprep.subr.mxu0 0.0
    %885 = vmatpush1.msra.mxu0 0.0
    %886 = vmatprep.subr.mxu0 0.0
    %887 = vmatpush1.msra.mxu0 0.0
    %888 = vmatprep.subr.mxu0 0.0
    %889 = vmatpush1.msra.mxu0 0.0
    %890 = vmatprep.subr.mxu0 0.0
    %891 = vmatpush1.msra.mxu0 0.0
    %892 = vmatprep.subr.mxu0 0.0
    %893 = vmatpush1.msra.mxu0 0.0
    %894 = vmatprep.subr.mxu0 0.0
    %895 = vmatpush1.msra.mxu0 0.0
    %896 = vmatprep.subr.mxu0 0.0
    %897 = vmatpush1.msra.mxu0 0.0
    %898 = vmatprep.subr.mxu0 0.0
    %899 = vmatpush1.msra.mxu0 0.0
    %900 = vmatprep.subr.mxu0 0.0
    %901 = vmatpush1.msra.mxu0 0.0
    %902 = vmatprep.subr.mxu0 0.0
    %903 = vmatpush1.msra.mxu0 0.0
    %904 = vmatprep.subr.mxu0 0.0
    %905 = vmatpush1.msra.mxu0 0.0
    %906 = vmatprep.subr.mxu0 0.0
    %907 = vmatpush1.msra.mxu0 0.0
    %908 = vmatprep.subr.mxu0 0.0
    %909 = vmatpush1.msra.mxu0 0.0
    %910 = vmatprep.subr.mxu0 0.0
    %911 = vmatpush1.msra.mxu0 0.0
    %912 = vmatprep.mubr.f32.mxu0 0.0
    %913 = vmatmul.mubr.f32.gmra.mrb[0].mxu0 %v846
    %v914 = vpop.f32.mrb[0].mxu0
    %v915 = vadd.f32 %v330, %v914
    %v916 = vpop.f32.mrb[0].mxu0
    %v917 = vadd.f32 %v334, %v916
    %918 = vdwg.mxu0
    %v920 = vrot.slane %v915, 6
    %v921 = vrot.slane %v915, 7
    %v924 = vadd.f32 %v225, %v920
    %v925 = vadd.f32 %v231, %v921
    %v926 = vxor.u32 %v924, 2147483648
    %v927 = vxor.u32 %v925, 2147483648
    %v928 = vmul.f32 %v926, 1.442695
    %v929 = vpow.pop %v928
    %v930 = vmul.f32 %v927, 1.442695
    %v931 = vpow.pop %v930
    %v932 = vadd.f32 %v929, 1.0
    %v933 = vadd.f32 %v931, 1.0
    %v934 = vrcp.pop %v932
    %v935 = vmul.f32 1.0, %v934
    %v936 = vrcp.pop %v933
    %v937 = vmul.f32 1.0, %v936
    %938 = vrot.lane.b32.xlu0 %v920, 64
    %v939 = vpop.permute.xlu0 %938
    %940 = vrot.lane.b32.xlu0 %v921, 64
    %v941 = vpop.permute.xlu0 %940
    %v944 = vmul.f32 %v935, %v939
    %v945 = vmul.f32 %v937, %v941
    %948 = vrot.lane.b32.xlu0 %v944, 64
    %v949 = vpop.permute.xlu0 %948
    %950 = vrot.lane.b32.xlu0 %v945, 64
    %v951 = vpop.permute.xlu0 %950
    %v954 = vadd.f32 %v225, %v949
    %v955 = vadd.f32 %v231, %v951
    %v956 = vtanh.pop %v954
    %v957 = vtanh.pop %v955
    %v958 = vsub.f32 1.0, %v935
    %v959 = vsub.f32 1.0, %v937
    %962 = vrot.lane.b32.xlu0 %v956, 96
    %v963 = vpop.permute.xlu0 %962
    %964 = vrot.lane.b32.xlu0 %v957, 96
    %v965 = vpop.permute.xlu0 %964
    %v968 = vmul.f32 %v958, %v963
    %v969 = vmul.f32 %v959, %v965
    %v970 = vrot.slane %v815, 7
    %971 = vrot.lane.b32.xlu0 %v970, 32
    %v972 = vpop.permute.xlu0 %971
    %973 = vrot.lane.b32.xlu0 %v815, 32
    %v974 = vpop.permute.xlu0 %973
    %v977 = vmul.f32 %v935, %v972
    %v978 = vmul.f32 %v937, %v974
    %v979 = vadd.f32 %v968, %v977
    %v980 = vadd.f32 %v969, %v978
    %v981 = vrot.slane %v915, 3
    %v982 = vrot.slane %v915, 4
    %v985 = vadd.f32 %v225, %v981
    %v986 = vadd.f32 %v231, %v982
    %v987 = vxor.u32 %v985, 2147483648
    %v988 = vxor.u32 %v986, 2147483648
    %v989 = vmul.f32 %v987, 1.442695
    %v990 = vpow.pop %v989
    %v991 = vmul.f32 %v988, 1.442695
    %v992 = vpow.pop %v991
    %v993 = vadd.f32 %v990, 1.0
    %v994 = vadd.f32 %v992, 1.0
    %v995 = vrcp.pop %v993
    %v996 = vmul.f32 1.0, %v995
    %v997 = vrcp.pop %v994
    %v998 = vmul.f32 1.0, %v997
    %v1000 = vrot.slane %v917, 3
    %v1001 = vrot.slane %v917, 4
    %v1004 = vadd.f32 %v227, %v1000
    %v1005 = vadd.f32 %v233, %v1001
    %v1006 = vxor.u32 %v1004, 2147483648
    %v1007 = vxor.u32 %v1005, 2147483648
    %v1008 = vmul.f32 %v1006, 1.442695
    %v1009 = vpow.pop %v1008
    %v1010 = vmul.f32 %v1007, 1.442695
    %v1011 = vpow.pop %v1010
    %v1012 = vadd.f32 %v1009, 1.0
    %v1013 = vadd.f32 %v1011, 1.0
    %v1014 = vrcp.pop %v1012
    %v1015 = vmul.f32 1.0, %v1014
    %v1016 = vrcp.pop %v1013
    %v1017 = vmul.f32 1.0, %v1016
    %1018 = vrot.lane.b32.xlu0 %v1000, 64
    %v1019 = vpop.permute.xlu0 %1018
    %1020 = vrot.lane.b32.xlu0 %v1001, 64
    %v1021 = vpop.permute.xlu0 %1020
    %v1024 = vmul.f32 %v996, %v1019
    %v1025 = vmul.f32 %v998, %v1021
    %1028 = vrot.lane.b32.xlu0 %v1024, 64
    %v1029 = vpop.permute.xlu0 %1028
    %1030 = vrot.lane.b32.xlu0 %v1025, 64
    %v1031 = vpop.permute.xlu0 %1030
    %v1034 = vadd.f32 %v227, %v1029
    %v1035 = vadd.f32 %v233, %v1031
    %v1036 = vtanh.pop %v1034
    %v1037 = vtanh.pop %v1035
    %v1038 = vsub.f32 1.0, %v1015
    %v1039 = vsub.f32 1.0, %v1017
    %1042 = vrot.lane.b32.xlu0 %v1036, 96
    %v1043 = vpop.permute.xlu0 %1042
    %1044 = vrot.lane.b32.xlu0 %v1037, 96
    %v1045 = vpop.permute.xlu0 %1044
    %v1048 = vmul.f32 %v1038, %v1043
    %v1049 = vmul.f32 %v1039, %v1045
    %v1050 = vrot.slane %v815, 4
    %v1051 = vrot.slane %v815, 5
    %1052 = vrot.lane.b32.xlu0 %v1050, 96
    %v1053 = vpop.permute.xlu0 %1052
    %1054 = vrot.lane.b32.xlu0 %v1051, 96
    %v1055 = vpop.permute.xlu0 %1054
    %v1058 = vmul.f32 %v1015, %v1053
    %v1059 = vmul.f32 %v1017, %v1055
    %v1060 = vadd.f32 %v1048, %v1058
    %v1061 = vadd.f32 %v1049, %v1059
    %v1064 = vrot.slane %v980, 7
    %vm1065 = vcmask 1043459
    %v1066 = vsel %vm1065, %v1064, %v979
    %1067 = vrot.lane.b32.xlu0 %v1066, 96
    %v1068 = vpop.permute.xlu0 %1067
    %v1072 = vrot.slane %v1060, 3
    %v1073 = vrot.slane %v1061, 2
    %v1074 = vsel %vm1065, %v1073, %v1072
    %1075 = vrot.lane.b32.xlu0 %v1074, 32
    %v1076 = vpop.permute.xlu0 %1075
    %v1078 = vsel %vm553, %v1068, %v1076
    %1079 = vrot.lane.b32.xlu0 %v979, 96
    %v1080 = vpop.permute.xlu0 %1079
    %1081 = vrot.lane.b32.xlu0 %v980, 96
    %v1082 = vpop.permute.xlu0 %1081
    %vm1085 = vcmask 124930
    %1086 = vst.msk [vmem:[#allocation14] sm:$0x4] %vm1085, %v1080
    %1087 = vst.msk [vmem:[#allocation14 + $0x8] sm:$0x4] %vm1085, %v1082
    %1088 = vrot.lane.b32.xlu0 %v979, 80
    %v1089 = vpop.permute.xlu0 %1088
    %1090 = vrot.lane.b32.xlu0 %v980, 80
    %v1091 = vpop.permute.xlu0 %1090
    %1094 = vst.msk [vmem:[#allocation16] sm:$0x4] %vm1085, %v1089
    %1095 = vst.msk [vmem:[#allocation16 + $0x8] sm:$0x4] %vm1085, %v1091
    %1096 = vrot.lane.b32.xlu0 %v1060, 16
    %v1097 = vpop.permute.xlu0 %1096
    %1098 = vrot.lane.b32.xlu0 %v1061, 16
    %v1099 = vpop.permute.xlu0 %1098
    %vm1102 = vcmask 259205
    %1103 = vst.msk [vmem:[#allocation14] sm:$0x20] %vm1102, %v1097
    %1104 = vst.msk [vmem:[#allocation14 + $0x8] sm:$0x20] %vm1102, %v1099
    %1105 = vst.msk [vmem:[#allocation16] sm:$0x20] %vm1102, %v1060
    %1106 = vst.msk [vmem:[#allocation16 + $0x8] sm:$0x20] %vm1102, %v1061
    %v1108 = vrot.slane %v1078, 2
    %v1109 = vsel %vm337, %v1108, 0
    %1111 = vmatprep.subr.mxu0 %v311
    %1112 = vmatpush1.msra.mxu0 %v310
    %1113 = vmatprep.subr.mxu0 %v313
    %1114 = vmatpush1.msra.mxu0 %v312
    %1115 = vmatprep.subr.mxu0 %v315
    %1116 = vmatpush1.msra.mxu0 %v314
    %1117 = vmatprep.subr.mxu0 %v317
    %1118 = vmatpush1.msra.mxu0 %v316
    %1119 = vmatprep.subr.mxu0 %v319
    %1120 = vmatpush1.msra.mxu0 %v318
    %1121 = vmatprep.subr.mxu0 %v321
    %1122 = vmatpush1.msra.mxu0 %v320
    %1123 = vmatprep.subr.mxu0 %v323
    %1124 = vmatpush1.msra.mxu0 %v322
    %1125 = vmatprep.subr.mxu0 %v325
    %1126 = vmatpush1.msra.mxu0 %v324
    %1127 = vmatprep.subr.mxu0 0.0
    %1128 = vmatpush1.msra.mxu0 0.0
    %1129 = vmatprep.subr.mxu0 0.0
    %1130 = vmatpush1.msra.mxu0 0.0
    %1131 = vmatprep.subr.mxu0 0.0
    %1132 = vmatpush1.msra.mxu0 0.0
    %1133 = vmatprep.subr.mxu0 0.0
    %1134 = vmatpush1.msra.mxu0 0.0
    %1135 = vmatprep.subr.mxu0 0.0
    %1136 = vmatpush1.msra.mxu0 0.0
    %1137 = vmatprep.subr.mxu0 0.0
    %1138 = vmatpush1.msra.mxu0 0.0
    %1139 = vmatprep.subr.mxu0 0.0
    %1140 = vmatpush1.msra.mxu0 0.0
    %1141 = vmatprep.subr.mxu0 0.0
    %1142 = vmatpush1.msra.mxu0 0.0
    %1143 = vmatprep.subr.mxu0 0.0
    %1144 = vmatpush1.msra.mxu0 0.0
    %1145 = vmatprep.subr.mxu0 0.0
    %1146 = vmatpush1.msra.mxu0 0.0
    %1147 = vmatprep.subr.mxu0 0.0
    %1148 = vmatpush1.msra.mxu0 0.0
    %1149 = vmatprep.subr.mxu0 0.0
    %1150 = vmatpush1.msra.mxu0 0.0
    %1151 = vmatprep.subr.mxu0 0.0
    %1152 = vmatpush1.msra.mxu0 0.0
    %1153 = vmatprep.subr.mxu0 0.0
    %1154 = vmatpush1.msra.mxu0 0.0
    %1155 = vmatprep.subr.mxu0 0.0
    %1156 = vmatpush1.msra.mxu0 0.0
    %1157 = vmatprep.subr.mxu0 0.0
    %1158 = vmatpush1.msra.mxu0 0.0
    %1159 = vmatprep.subr.mxu0 0.0
    %1160 = vmatpush1.msra.mxu0 0.0
    %1161 = vmatprep.subr.mxu0 0.0
    %1162 = vmatpush1.msra.mxu0 0.0
    %1163 = vmatprep.subr.mxu0 0.0
    %1164 = vmatpush1.msra.mxu0 0.0
    %1165 = vmatprep.subr.mxu0 0.0
    %1166 = vmatpush1.msra.mxu0 0.0
    %1167 = vmatprep.subr.mxu0 0.0
    %1168 = vmatpush1.msra.mxu0 0.0
    %1169 = vmatprep.subr.mxu0 0.0
    %1170 = vmatpush1.msra.mxu0 0.0
    %1171 = vmatprep.subr.mxu0 0.0
    %1172 = vmatpush1.msra.mxu0 0.0
    %1173 = vmatprep.subr.mxu0 0.0
    %1174 = vmatpush1.msra.mxu0 0.0
    %1175 = vmatprep.mubr.f32.mxu0 0.0
    %1176 = vmatmul.mubr.f32.gmra.mrb[0].mxu0 %v1109
    %v1177 = vpop.f32.mrb[0].mxu0
    %v1178 = vadd.f32 %v330, %v1177
    %v1179 = vpop.f32.mrb[0].mxu0
    %v1180 = vadd.f32 %v334, %v1179
    %1181 = vdwg.mxu0
    %v1183 = vrot.slane %v1178, 5
    %v1184 = vrot.slane %v1178, 6
    %v1187 = vadd.f32 %v225, %v1183
    %v1188 = vadd.f32 %v231, %v1184
    %v1189 = vxor.u32 %v1187, 2147483648
    %v1190 = vxor.u32 %v1188, 2147483648
    %v1191 = vmul.f32 %v1189, 1.442695
    %v1192 = vpow.pop %v1191
    %v1193 = vmul.f32 %v1190, 1.442695
    %v1194 = vpow.pop %v1193
    %v1195 = vadd.f32 %v1192, 1.0
    %v1196 = vadd.f32 %v1194, 1.0
    %v1197 = vrcp.pop %v1195
    %v1198 = vmul.f32 1.0, %v1197
    %v1199 = vrcp.pop %v1196
    %v1200 = vmul.f32 1.0, %v1199
    %1201 = vrot.lane.b32.xlu0 %v1183, 64
    %v1202 = vpop.permute.xlu0 %1201
    %1203 = vrot.lane.b32.xlu0 %v1184, 64
    %v1204 = vpop.permute.xlu0 %1203
    %v1207 = vmul.f32 %v1198, %v1202
    %v1208 = vmul.f32 %v1200, %v1204
    %1211 = vrot.lane.b32.xlu0 %v1207, 64
    %v1212 = vpop.permute.xlu0 %1211
    %1213 = vrot.lane.b32.xlu0 %v1208, 64
    %v1214 = vpop.permute.xlu0 %1213
    %v1217 = vadd.f32 %v225, %v1212
    %v1218 = vadd.f32 %v231, %v1214
    %v1219 = vtanh.pop %v1217
    %v1220 = vtanh.pop %v1218
    %v1221 = vsub.f32 1.0, %v1198
    %v1222 = vsub.f32 1.0, %v1200
    %1225 = vrot.lane.b32.xlu0 %v1219, 96
    %v1226 = vpop.permute.xlu0 %1225
    %1227 = vrot.lane.b32.xlu0 %v1220, 96
    %v1228 = vpop.permute.xlu0 %1227
    %v1231 = vmul.f32 %v1221, %v1226
    %v1232 = vmul.f32 %v1222, %v1228
    %v1233 = vrot.slane %v1078, 7
    %1234 = vrot.lane.b32.xlu0 %v1233, 32
    %v1235 = vpop.permute.xlu0 %1234
    %1236 = vrot.lane.b32.xlu0 %v1078, 32
    %v1237 = vpop.permute.xlu0 %1236
    %v1240 = vmul.f32 %v1198, %v1235
    %v1241 = vmul.f32 %v1200, %v1237
    %v1242 = vadd.f32 %v1231, %v1240
    %v1243 = vadd.f32 %v1232, %v1241
    %v1244 = vrot.slane %v1178, 4
    %v1246 = vadd.f32 %v225, %v1244
    %v1247 = vadd.f32 %v231, %v1183
    %v1248 = vxor.u32 %v1246, 2147483648
    %v1249 = vxor.u32 %v1247, 2147483648
    %v1250 = vmul.f32 %v1248, 1.442695
    %v1251 = vpow.pop %v1250
    %v1252 = vmul.f32 %v1249, 1.442695
    %v1253 = vpow.pop %v1252
    %v1254 = vadd.f32 %v1251, 1.0
    %v1255 = vadd.f32 %v1253, 1.0
    %v1256 = vrcp.pop %v1254
    %v1257 = vmul.f32 1.0, %v1256
    %v1258 = vrcp.pop %v1255
    %v1259 = vmul.f32 1.0, %v1258
    %v1261 = vrot.slane %v1180, 4
    %v1262 = vrot.slane %v1180, 5
    %v1265 = vadd.f32 %v227, %v1261
    %v1266 = vadd.f32 %v233, %v1262
    %v1267 = vxor.u32 %v1265, 2147483648
    %v1268 = vxor.u32 %v1266, 2147483648
    %v1269 = vmul.f32 %v1267, 1.442695
    %v1270 = vpow.pop %v1269
    %v1271 = vmul.f32 %v1268, 1.442695
    %v1272 = vpow.pop %v1271
    %v1273 = vadd.f32 %v1270, 1.0
    %v1274 = vadd.f32 %v1272, 1.0
    %v1275 = vrcp.pop %v1273
    %v1276 = vmul.f32 1.0, %v1275
    %v1277 = vrcp.pop %v1274
    %v1278 = vmul.f32 1.0, %v1277
    %1279 = vrot.lane.b32.xlu0 %v1261, 64
    %v1280 = vpop.permute.xlu0 %1279
    %1281 = vrot.lane.b32.xlu0 %v1262, 64
    %v1282 = vpop.permute.xlu0 %1281
    %v1285 = vmul.f32 %v1257, %v1280
    %v1286 = vmul.f32 %v1259, %v1282
    %1289 = vrot.lane.b32.xlu0 %v1285, 64
    %v1290 = vpop.permute.xlu0 %1289
    %1291 = vrot.lane.b32.xlu0 %v1286, 64
    %v1292 = vpop.permute.xlu0 %1291
    %v1295 = vadd.f32 %v227, %v1290
    %v1296 = vadd.f32 %v233, %v1292
    %v1297 = vtanh.pop %v1295
    %v1298 = vtanh.pop %v1296
    %v1299 = vsub.f32 1.0, %v1276
    %v1300 = vsub.f32 1.0, %v1278
    %1303 = vrot.lane.b32.xlu0 %v1297, 96
    %v1304 = vpop.permute.xlu0 %1303
    %1305 = vrot.lane.b32.xlu0 %v1298, 96
    %v1306 = vpop.permute.xlu0 %1305
    %v1309 = vmul.f32 %v1299, %v1304
    %v1310 = vmul.f32 %v1300, %v1306
    %v1311 = vrot.slane %v1078, 6
    %1312 = vrot.lane.b32.xlu0 %v1311, 96
    %v1313 = vpop.permute.xlu0 %1312
    %1314 = vrot.lane.b32.xlu0 %v1233, 96
    %v1315 = vpop.permute.xlu0 %1314
    %v1318 = vmul.f32 %v1276, %v1313
    %v1319 = vmul.f32 %v1278, %v1315
    %v1320 = vadd.f32 %v1309, %v1318
    %v1321 = vadd.f32 %v1310, %v1319
    %v1324 = vrot.slane %v1243, 7
    %vm1325 = vcmask 1044484
    %v1326 = vsel %vm1325, %v1324, %v1242
    %1327 = vrot.lane.b32.xlu0 %v1326, 96
    %v1328 = vpop.permute.xlu0 %1327
    %v1332 = vrot.slane %v1320, 1
    %v1333 = vsel %vm1325, %v1321, %v1332
    %1334 = vrot.lane.b32.xlu0 %v1333, 32
    %v1335 = vpop.permute.xlu0 %1334
    %v1337 = vsel %vm553, %v1328, %v1335
    %1338 = vrot.lane.b32.xlu0 %v1242, 96
    %v1339 = vpop.permute.xlu0 %1338
    %1340 = vrot.lane.b32.xlu0 %v1243, 96
    %v1341 = vpop.permute.xlu0 %1340
    %vm1344 = vcmask 125955
    %1345 = vst.msk [vmem:[#allocation14] sm:$0x8] %vm1344, %v1339
    %1346 = vst.msk [vmem:[#allocation14 + $0x8] sm:$0x8] %vm1344, %v1341
    %1347 = vrot.lane.b32.xlu0 %v1242, 80
    %v1348 = vpop.permute.xlu0 %1347
    %1349 = vrot.lane.b32.xlu0 %v1243, 80
    %v1350 = vpop.permute.xlu0 %1349
    %1353 = vst.msk [vmem:[#allocation16] sm:$0x8] %vm1344, %v1348
    %1354 = vst.msk [vmem:[#allocation16 + $0x8] sm:$0x8] %vm1344, %v1350
    %1355 = vrot.lane.b32.xlu0 %v1320, 16
    %v1356 = vpop.permute.xlu0 %1355
    %1357 = vrot.lane.b32.xlu0 %v1321, 16
    %v1358 = vpop.permute.xlu0 %1357
    %vm1361 = vcmask 258180
    %1362 = vst.msk [vmem:[#allocation14] sm:$0x10] %vm1361, %v1356
    %1363 = vst.msk [vmem:[#allocation14 + $0x8] sm:$0x10] %vm1361, %v1358
    %1364 = vst.msk [vmem:[#allocation16] sm:$0x10] %vm1361, %v1320
    %1365 = vst.msk [vmem:[#allocation16 + $0x8] sm:$0x10] %vm1361, %v1321
    %v1367 = vrot.slane %v1337, 3
    %v1368 = vsel %vm337, %v1367, 0
    %1370 = vmatprep.subr.mxu0 %v311
    %1371 = vmatpush1.msra.mxu0 %v310
    %1372 = vmatprep.subr.mxu0 %v313
    %1373 = vmatpush1.msra.mxu0 %v312
    %1374 = vmatprep.subr.mxu0 %v315
    %1375 = vmatpush1.msra.mxu0 %v314
    %1376 = vmatprep.subr.mxu0 %v317
    %1377 = vmatpush1.msra.mxu0 %v316
    %1378 = vmatprep.subr.mxu0 %v319
    %1379 = vmatpush1.msra.mxu0 %v318
    %1380 = vmatprep.subr.mxu0 %v321
    %1381 = vmatpush1.msra.mxu0 %v320
    %1382 = vmatprep.subr.mxu0 %v323
    %1383 = vmatpush1.msra.mxu0 %v322
    %1384 = vmatprep.subr.mxu0 %v325
    %1385 = vmatpush1.msra.mxu0 %v324
    %1386 = vmatprep.subr.mxu0 0.0
    %1387 = vmatpush1.msra.mxu0 0.0
    %1388 = vmatprep.subr.mxu0 0.0
    %1389 = vmatpush1.msra.mxu0 0.0
    %1390 = vmatprep.subr.mxu0 0.0
    %1391 = vmatpush1.msra.mxu0 0.0
    %1392 = vmatprep.subr.mxu0 0.0
    %1393 = vmatpush1.msra.mxu0 0.0
    %1394 = vmatprep.subr.mxu0 0.0
    %1395 = vmatpush1.msra.mxu0 0.0
    %1396 = vmatprep.subr.mxu0 0.0
    %1397 = vmatpush1.msra.mxu0 0.0
    %1398 = vmatprep.subr.mxu0 0.0
    %1399 = vmatpush1.msra.mxu0 0.0
    %1400 = vmatprep.subr.mxu0 0.0
    %1401 = vmatpush1.msra.mxu0 0.0
    %1402 = vmatprep.subr.mxu0 0.0
    %1403 = vmatpush1.msra.mxu0 0.0
    %1404 = vmatprep.subr.mxu0 0.0
    %1405 = vmatpush1.msra.mxu0 0.0
    %1406 = vmatprep.subr.mxu0 0.0
    %1407 = vmatpush1.msra.mxu0 0.0
    %1408 = vmatprep.subr.mxu0 0.0
    %1409 = vmatpush1.msra.mxu0 0.0
    %1410 = vmatprep.subr.mxu0 0.0
    %1411 = vmatpush1.msra.mxu0 0.0
    %1412 = vmatprep.subr.mxu0 0.0
    %1413 = vmatpush1.msra.mxu0 0.0
    %1414 = vmatprep.subr.mxu0 0.0
    %1415 = vmatpush1.msra.mxu0 0.0
    %1416 = vmatprep.subr.mxu0 0.0
    %1417 = vmatpush1.msra.mxu0 0.0
    %1418 = vmatprep.subr.mxu0 0.0
    %1419 = vmatpush1.msra.mxu0 0.0
    %1420 = vmatprep.subr.mxu0 0.0
    %1421 = vmatpush1.msra.mxu0 0.0
    %1422 = vmatprep.subr.mxu0 0.0
    %1423 = vmatpush1.msra.mxu0 0.0
    %1424 = vmatprep.subr.mxu0 0.0
    %1425 = vmatpush1.msra.mxu0 0.0
    %1426 = vmatprep.subr.mxu0 0.0
    %1427 = vmatpush1.msra.mxu0 0.0
    %1428 = vmatprep.subr.mxu0 0.0
    %1429 = vmatpush1.msra.mxu0 0.0
    %1430 = vmatprep.subr.mxu0 0.0
    %1431 = vmatpush1.msra.mxu0 0.0
    %1432 = vmatprep.subr.mxu0 0.0
    %1433 = vmatpush1.msra.mxu0 0.0
    %1434 = vmatprep.mubr.f32.mxu0 0.0
    %1435 = vmatmul.mubr.f32.gmra.mrb[0].mxu0 %v1368
    %v1436 = vpop.f32.mrb[0].mxu0
    %v1437 = vadd.f32 %v330, %v1436
    %v1438 = vpop.f32.mrb[0].mxu0
    %v1439 = vadd.f32 %v334, %v1438
    %1440 = vdwg.mxu0
    %v1442 = vrot.slane %v1437, 4
    %v1443 = vrot.slane %v1437, 5
    %v1446 = vadd.f32 %v225, %v1442
    %v1447 = vadd.f32 %v231, %v1443
    %v1448 = vxor.u32 %v1446, 2147483648
    %v1449 = vxor.u32 %v1447, 2147483648
    %v1450 = vmul.f32 %v1448, 1.442695
    %v1451 = vpow.pop %v1450
    %v1452 = vmul.f32 %v1449, 1.442695
    %v1453 = vpow.pop %v1452
    %v1454 = vadd.f32 %v1451, 1.0
    %v1455 = vadd.f32 %v1453, 1.0
    %v1456 = vrcp.pop %v1454
    %v1457 = vmul.f32 1.0, %v1456
    %v1458 = vrcp.pop %v1455
    %v1459 = vmul.f32 1.0, %v1458
    %1460 = vrot.lane.b32.xlu0 %v1442, 64
    %v1461 = vpop.permute.xlu0 %1460
    %1462 = vrot.lane.b32.xlu0 %v1443, 64
    %v1463 = vpop.permute.xlu0 %1462
    %v1466 = vmul.f32 %v1457, %v1461
    %v1467 = vmul.f32 %v1459, %v1463
    %1470 = vrot.lane.b32.xlu0 %v1466, 64
    %v1471 = vpop.permute.xlu0 %1470
    %1472 = vrot.lane.b32.xlu0 %v1467, 64
    %v1473 = vpop.permute.xlu0 %1472
    %v1476 = vadd.f32 %v225, %v1471
    %v1477 = vadd.f32 %v231, %v1473
    %v1478 = vtanh.pop %v1476
    %v1479 = vtanh.pop %v1477
    %v1480 = vsub.f32 1.0, %v1457
    %v1481 = vsub.f32 1.0, %v1459
    %1484 = vrot.lane.b32.xlu0 %v1478, 96
    %v1485 = vpop.permute.xlu0 %1484
    %1486 = vrot.lane.b32.xlu0 %v1479, 96
    %v1487 = vpop.permute.xlu0 %1486
    %v1490 = vmul.f32 %v1480, %v1485
    %v1491 = vmul.f32 %v1481, %v1487
    %v1492 = vrot.slane %v1337, 7
    %1493 = vrot.lane.b32.xlu0 %v1492, 32
    %v1494 = vpop.permute.xlu0 %1493
    %1495 = vrot.lane.b32.xlu0 %v1337, 32
    %v1496 = vpop.permute.xlu0 %1495
    %v1499 = vmul.f32 %v1457, %v1494
    %v1500 = vmul.f32 %v1459, %v1496
    %v1501 = vadd.f32 %v1490, %v1499
    %v1502 = vadd.f32 %v1491, %v1500
    %v1503 = vrot.slane %v1437, 6
    %v1505 = vadd.f32 %v225, %v1443
    %v1506 = vadd.f32 %v231, %v1503
    %v1507 = vxor.u32 %v1505, 2147483648
    %v1508 = vxor.u32 %v1506, 2147483648
    %v1509 = vmul.f32 %v1507, 1.442695
    %v1510 = vpow.pop %v1509
    %v1511 = vmul.f32 %v1508, 1.442695
    %v1512 = vpow.pop %v1511
    %v1513 = vadd.f32 %v1510, 1.0
    %v1514 = vadd.f32 %v1512, 1.0
    %v1515 = vrcp.pop %v1513
    %v1516 = vmul.f32 1.0, %v1515
    %v1517 = vrcp.pop %v1514
    %v1518 = vmul.f32 1.0, %v1517
    %v1520 = vrot.slane %v1439, 5
    %v1521 = vrot.slane %v1439, 6
    %v1524 = vadd.f32 %v227, %v1520
    %v1525 = vadd.f32 %v233, %v1521
    %v1526 = vxor.u32 %v1524, 2147483648
    %v1527 = vxor.u32 %v1525, 2147483648
    %v1528 = vmul.f32 %v1526, 1.442695
    %v1529 = vpow.pop %v1528
    %v1530 = vmul.f32 %v1527, 1.442695
    %v1531 = vpow.pop %v1530
    %v1532 = vadd.f32 %v1529, 1.0
    %v1533 = vadd.f32 %v1531, 1.0
    %v1534 = vrcp.pop %v1532
    %v1535 = vmul.f32 1.0, %v1534
    %v1536 = vrcp.pop %v1533
    %v1537 = vmul.f32 1.0, %v1536
    %1538 = vrot.lane.b32.xlu0 %v1520, 64
    %v1539 = vpop.permute.xlu0 %1538
    %1540 = vrot.lane.b32.xlu0 %v1521, 64
    %v1541 = vpop.permute.xlu0 %1540
    %v1544 = vmul.f32 %v1516, %v1539
    %v1545 = vmul.f32 %v1518, %v1541
    %1548 = vrot.lane.b32.xlu0 %v1544, 64
    %v1549 = vpop.permute.xlu0 %1548
    %1550 = vrot.lane.b32.xlu0 %v1545, 64
    %v1551 = vpop.permute.xlu0 %1550
    %v1554 = vadd.f32 %v227, %v1549
    %v1555 = vadd.f32 %v233, %v1551
    %v1556 = vtanh.pop %v1554
    %v1557 = vtanh.pop %v1555
    %v1558 = vsub.f32 1.0, %v1535
    %v1559 = vsub.f32 1.0, %v1537
    %1562 = vrot.lane.b32.xlu0 %v1556, 96
    %v1563 = vpop.permute.xlu0 %1562
    %1564 = vrot.lane.b32.xlu0 %v1557, 96
    %v1565 = vpop.permute.xlu0 %1564
    %v1568 = vmul.f32 %v1558, %v1563
    %v1569 = vmul.f32 %v1559, %v1565
    %v1570 = vrot.slane %v1337, 1
    %1571 = vrot.lane.b32.xlu0 %v1337, 96
    %v1572 = vpop.permute.xlu0 %1571
    %1573 = vrot.lane.b32.xlu0 %v1570, 96
    %v1574 = vpop.permute.xlu0 %1573
    %v1577 = vmul.f32 %v1535, %v1572
    %v1578 = vmul.f32 %v1537, %v1574
    %v1579 = vadd.f32 %v1568, %v1577
    %v1580 = vadd.f32 %v1569, %v1578
    %v1583 = vrot.slane %v1502, 7
    %vm1584 = vcmask 1045509
    %v1585 = vsel %vm1584, %v1583, %v1501
    %1586 = vrot.lane.b32.xlu0 %v1585, 96
    %v1587 = vpop.permute.xlu0 %1586
    %v1591 = vrot.slane %v1579, 7
    %v1592 = vrot.slane %v1580, 6
    %v1593 = vsel %vm1584, %v1592, %v1591
    %1594 = vrot.lane.b32.xlu0 %v1593, 32
    %v1595 = vpop.permute.xlu0 %1594
    %v1597 = vsel %vm553, %v1587, %v1595
    %1598 = vrot.lane.b32.xlu0 %v1501, 96
    %v1599 = vpop.permute.xlu0 %1598
    %1600 = vrot.lane.b32.xlu0 %v1502, 96
    %v1601 = vpop.permute.xlu0 %1600
    %vm1604 = vcmask 126980
    %1605 = vst.msk [vmem:[#allocation14] sm:$0x10] %vm1604, %v1599
    %1606 = vst.msk [vmem:[#allocation14 + $0x8] sm:$0x10] %vm1604, %v1601
    %1607 = vrot.lane.b32.xlu0 %v1501, 80
    %v1608 = vpop.permute.xlu0 %1607
    %1609 = vrot.lane.b32.xlu0 %v1502, 80
    %v1610 = vpop.permute.xlu0 %1609
    %1613 = vst.msk [vmem:[#allocation16] sm:$0x10] %vm1604, %v1608
    %1614 = vst.msk [vmem:[#allocation16 + $0x8] sm:$0x10] %vm1604, %v1610
    %1615 = vrot.lane.b32.xlu0 %v1579, 16
    %v1616 = vpop.permute.xlu0 %1615
    %1617 = vrot.lane.b32.xlu0 %v1580, 16
    %v1618 = vpop.permute.xlu0 %1617
    %vm1621 = vcmask 257155
    %1622 = vst.msk [vmem:[#allocation14] sm:$0x8] %vm1621, %v1616
    %1623 = vst.msk [vmem:[#allocation14 + $0x8] sm:$0x8] %vm1621, %v1618
    %1624 = vst.msk [vmem:[#allocation16] sm:$0x8] %vm1621, %v1579
    %1625 = vst.msk [vmem:[#allocation16 + $0x8] sm:$0x8] %vm1621, %v1580
    %v1627 = vrot.slane %v1597, 4
    %v1628 = vsel %vm337, %v1627, 0
    %1630 = vmatprep.subr.mxu0 %v311
    %1631 = vmatpush1.msra.mxu0 %v310
    %1632 = vmatprep.subr.mxu0 %v313
    %1633 = vmatpush1.msra.mxu0 %v312
    %1634 = vmatprep.subr.mxu0 %v315
    %1635 = vmatpush1.msra.mxu0 %v314
    %1636 = vmatprep.subr.mxu0 %v317
    %1637 = vmatpush1.msra.mxu0 %v316
    %1638 = vmatprep.subr.mxu0 %v319
    %1639 = vmatpush1.msra.mxu0 %v318
    %1640 = vmatprep.subr.mxu0 %v321
    %1641 = vmatpush1.msra.mxu0 %v320
    %1642 = vmatprep.subr.mxu0 %v323
    %1643 = vmatpush1.msra.mxu0 %v322
    %1644 = vmatprep.subr.mxu0 %v325
    %1645 = vmatpush1.msra.mxu0 %v324
    %1646 = vmatprep.subr.mxu0 0.0
    %1647 = vmatpush1.msra.mxu0 0.0
    %1648 = vmatprep.subr.mxu0 0.0
    %1649 = vmatpush1.msra.mxu0 0.0
    %1650 = vmatprep.subr.mxu0 0.0
    %1651 = vmatpush1.msra.mxu0 0.0
    %1652 = vmatprep.subr.mxu0 0.0
    %1653 = vmatpush1.msra.mxu0 0.0
    %1654 = vmatprep.subr.mxu0 0.0
    %1655 = vmatpush1.msra.mxu0 0.0
    %1656 = vmatprep.subr.mxu0 0.0
    %1657 = vmatpush1.msra.mxu0 0.0
    %1658 = vmatprep.subr.mxu0 0.0
    %1659 = vmatpush1.msra.mxu0 0.0
    %1660 = vmatprep.subr.mxu0 0.0
    %1661 = vmatpush1.msra.mxu0 0.0
    %1662 = vmatprep.subr.mxu0 0.0
    %1663 = vmatpush1.msra.mxu0 0.0
    %1664 = vmatprep.subr.mxu0 0.0
    %1665 = vmatpush1.msra.mxu0 0.0
    %1666 = vmatprep.subr.mxu0 0.0
    %1667 = vmatpush1.msra.mxu0 0.0
    %1668 = vmatprep.subr.mxu0 0.0
    %1669 = vmatpush1.msra.mxu0 0.0
    %1670 = vmatprep.subr.mxu0 0.0
    %1671 = vmatpush1.msra.mxu0 0.0
    %1672 = vmatprep.subr.mxu0 0.0
    %1673 = vmatpush1.msra.mxu0 0.0
    %1674 = vmatprep.subr.mxu0 0.0
    %1675 = vmatpush1.msra.mxu0 0.0
    %1676 = vmatprep.subr.mxu0 0.0
    %1677 = vmatpush1.msra.mxu0 0.0
    %1678 = vmatprep.subr.mxu0 0.0
    %1679 = vmatpush1.msra.mxu0 0.0
    %1680 = vmatprep.subr.mxu0 0.0
    %1681 = vmatpush1.msra.mxu0 0.0
    %1682 = vmatprep.subr.mxu0 0.0
    %1683 = vmatpush1.msra.mxu0 0.0
    %1684 = vmatprep.subr.mxu0 0.0
    %1685 = vmatpush1.msra.mxu0 0.0
    %1686 = vmatprep.subr.mxu0 0.0
    %1687 = vmatpush1.msra.mxu0 0.0
    %1688 = vmatprep.subr.mxu0 0.0
    %1689 = vmatpush1.msra.mxu0 0.0
    %1690 = vmatprep.subr.mxu0 0.0
    %1691 = vmatpush1.msra.mxu0 0.0
    %1692 = vmatprep.subr.mxu0 0.0
    %1693 = vmatpush1.msra.mxu0 0.0
    %1694 = vmatprep.mubr.f32.mxu0 0.0
    %1695 = vmatmul.mubr.f32.gmra.mrb[0].mxu0 %v1628
    %v1696 = vpop.f32.mrb[0].mxu0
    %v1697 = vadd.f32 %v330, %v1696
    %v1698 = vpop.f32.mrb[0].mxu0
    %v1699 = vadd.f32 %v334, %v1698
    %1700 = vdwg.mxu0
    %v1702 = vrot.slane %v1697, 3
    %v1703 = vrot.slane %v1697, 4
    %v1706 = vadd.f32 %v225, %v1702
    %v1707 = vadd.f32 %v231, %v1703
    %v1708 = vxor.u32 %v1706, 2147483648
    %v1709 = vxor.u32 %v1707, 2147483648
    %v1710 = vmul.f32 %v1708, 1.442695
    %v1711 = vpow.pop %v1710
    %v1712 = vmul.f32 %v1709, 1.442695
    %v1713 = vpow.pop %v1712
    %v1714 = vadd.f32 %v1711, 1.0
    %v1715 = vadd.f32 %v1713, 1.0
    %v1716 = vrcp.pop %v1714
    %v1717 = vmul.f32 1.0, %v1716
    %v1718 = vrcp.pop %v1715
    %v1719 = vmul.f32 1.0, %v1718
    %1720 = vrot.lane.b32.xlu0 %v1702, 64
    %v1721 = vpop.permute.xlu0 %1720
    %1722 = vrot.lane.b32.xlu0 %v1703, 64
    %v1723 = vpop.permute.xlu0 %1722
    %v1726 = vmul.f32 %v1717, %v1721
    %v1727 = vmul.f32 %v1719, %v1723
    %1730 = vrot.lane.b32.xlu0 %v1726, 64
    %v1731 = vpop.permute.xlu0 %1730
    %1732 = vrot.lane.b32.xlu0 %v1727, 64
    %v1733 = vpop.permute.xlu0 %1732
    %v1736 = vadd.f32 %v225, %v1731
    %v1737 = vadd.f32 %v231, %v1733
    %v1738 = vtanh.pop %v1736
    %v1739 = vtanh.pop %v1737
    %v1740 = vsub.f32 1.0, %v1717
    %v1741 = vsub.f32 1.0, %v1719
    %1744 = vrot.lane.b32.xlu0 %v1738, 96
    %v1745 = vpop.permute.xlu0 %1744
    %1746 = vrot.lane.b32.xlu0 %v1739, 96
    %v1747 = vpop.permute.xlu0 %1746
    %v1750 = vmul.f32 %v1740, %v1745
    %v1751 = vmul.f32 %v1741, %v1747
    %v1752 = vrot.slane %v1597, 7
    %1753 = vrot.lane.b32.xlu0 %v1752, 32
    %v1754 = vpop.permute.xlu0 %1753
    %1755 = vrot.lane.b32.xlu0 %v1597, 32
    %v1756 = vpop.permute.xlu0 %1755
    %v1759 = vmul.f32 %v1717, %v1754
    %v1760 = vmul.f32 %v1719, %v1756
    %v1761 = vadd.f32 %v1750, %v1759
    %v1762 = vadd.f32 %v1751, %v1760
    %v1763 = vrot.slane %v1697, 6
    %v1764 = vrot.slane %v1697, 7
    %v1767 = vadd.f32 %v225, %v1763
    %v1768 = vadd.f32 %v231, %v1764
    %v1769 = vxor.u32 %v1767, 2147483648
    %v1770 = vxor.u32 %v1768, 2147483648
    %v1771 = vmul.f32 %v1769, 1.442695
    %v1772 = vpow.pop %v1771
    %v1773 = vmul.f32 %v1770, 1.442695
    %v1774 = vpow.pop %v1773
    %v1775 = vadd.f32 %v1772, 1.0
    %v1776 = vadd.f32 %v1774, 1.0
    %v1777 = vrcp.pop %v1775
    %v1778 = vmul.f32 1.0, %v1777
    %v1779 = vrcp.pop %v1776
    %v1780 = vmul.f32 1.0, %v1779
    %v1782 = vrot.slane %v1699, 6
    %v1783 = vrot.slane %v1699, 7
    %v1786 = vadd.f32 %v227, %v1782
    %v1787 = vadd.f32 %v233, %v1783
    %v1788 = vxor.u32 %v1786, 2147483648
    %v1789 = vxor.u32 %v1787, 2147483648
    %v1790 = vmul.f32 %v1788, 1.442695
    %v1791 = vpow.pop %v1790
    %v1792 = vmul.f32 %v1789, 1.442695
    %v1793 = vpow.pop %v1792
    %v1794 = vadd.f32 %v1791, 1.0
    %v1795 = vadd.f32 %v1793, 1.0
    %v1796 = vrcp.pop %v1794
    %v1797 = vmul.f32 1.0, %v1796
    %v1798 = vrcp.pop %v1795
    %v1799 = vmul.f32 1.0, %v1798
    %1800 = vrot.lane.b32.xlu0 %v1782, 64
    %v1801 = vpop.permute.xlu0 %1800
    %1802 = vrot.lane.b32.xlu0 %v1783, 64
    %v1803 = vpop.permute.xlu0 %1802
    %v1806 = vmul.f32 %v1778, %v1801
    %v1807 = vmul.f32 %v1780, %v1803
    %1810 = vrot.lane.b32.xlu0 %v1806, 64
    %v1811 = vpop.permute.xlu0 %1810
    %1812 = vrot.lane.b32.xlu0 %v1807, 64
    %v1813 = vpop.permute.xlu0 %1812
    %v1816 = vadd.f32 %v227, %v1811
    %v1817 = vadd.f32 %v233, %v1813
    %v1818 = vtanh.pop %v1816
    %v1819 = vtanh.pop %v1817
    %v1820 = vsub.f32 1.0, %v1797
    %v1821 = vsub.f32 1.0, %v1799
    %1824 = vrot.lane.b32.xlu0 %v1818, 96
    %v1825 = vpop.permute.xlu0 %1824
    %1826 = vrot.lane.b32.xlu0 %v1819, 96
    %v1827 = vpop.permute.xlu0 %1826
    %v1830 = vmul.f32 %v1820, %v1825
    %v1831 = vmul.f32 %v1821, %v1827
    %v1832 = vrot.slane %v1597, 2
    %v1833 = vrot.slane %v1597, 3
    %1834 = vrot.lane.b32.xlu0 %v1832, 96
    %v1835 = vpop.permute.xlu0 %1834
    %1836 = vrot.lane.b32.xlu0 %v1833, 96
    %v1837 = vpop.permute.xlu0 %1836
    %v1840 = vmul.f32 %v1797, %v1835
    %v1841 = vmul.f32 %v1799, %v1837
    %v1842 = vadd.f32 %v1830, %v1840
    %v1843 = vadd.f32 %v1831, %v1841
    %v1846 = vrot.slane %v1762, 7
    %vm1847 = vcmask 1046534
    %v1848 = vsel %vm1847, %v1846, %v1761
    %1849 = vrot.lane.b32.xlu0 %v1848, 96
    %v1850 = vpop.permute.xlu0 %1849
    %v1854 = vrot.slane %v1842, 5
    %v1855 = vrot.slane %v1843, 4
    %v1856 = vsel %vm1847, %v1855, %v1854
    %1857 = vrot.lane.b32.xlu0 %v1856, 32
    %v1858 = vpop.permute.xlu0 %1857
    %v1860 = vsel %vm553, %v1850, %v1858
    %1861 = vrot.lane.b32.xlu0 %v1761, 96
    %v1862 = vpop.permute.xlu0 %1861
    %1863 = vrot.lane.b32.xlu0 %v1762, 96
    %v1864 = vpop.permute.xlu0 %1863
    %vm1867 = vcmask 128005
    %1868 = vst.msk [vmem:[#allocation14] sm:$0x20] %vm1867, %v1862
    %1869 = vst.msk [vmem:[#allocation14 + $0x8] sm:$0x20] %vm1867, %v1864
    %1870 = vrot.lane.b32.xlu0 %v1761, 80
    %v1871 = vpop.permute.xlu0 %1870
    %1872 = vrot.lane.b32.xlu0 %v1762, 80
    %v1873 = vpop.permute.xlu0 %1872
    %1876 = vst.msk [vmem:[#allocation16] sm:$0x20] %vm1867, %v1871
    %1877 = vst.msk [vmem:[#allocation16 + $0x8] sm:$0x20] %vm1867, %v1873
    %1878 = vrot.lane.b32.xlu0 %v1842, 16
    %v1879 = vpop.permute.xlu0 %1878
    %1880 = vrot.lane.b32.xlu0 %v1843, 16
    %v1881 = vpop.permute.xlu0 %1880
    %vm1884 = vcmask 256130
    %1885 = vst.msk [vmem:[#allocation14] sm:$0x4] %vm1884, %v1879
    %1886 = vst.msk [vmem:[#allocation14 + $0x8] sm:$0x4] %vm1884, %v1881
    %1887 = vst.msk [vmem:[#allocation16] sm:$0x4] %vm1884, %v1842
    %1888 = vst.msk [vmem:[#allocation16 + $0x8] sm:$0x4] %vm1884, %v1843
    %v1890 = vrot.slane %v1860, 5
    %v1891 = vsel %vm337, %v1890, 0
    %1893 = vmatprep.subr.mxu0 %v311
    %1894 = vmatpush1.msra.mxu0 %v310
    %1895 = vmatprep.subr.mxu0 %v313
    %1896 = vmatpush1.msra.mxu0 %v312
    %1897 = vmatprep.subr.mxu0 %v315
    %1898 = vmatpush1.msra.mxu0 %v314
    %1899 = vmatprep.subr.mxu0 %v317
    %1900 = vmatpush1.msra.mxu0 %v316
    %1901 = vmatprep.subr.mxu0 %v319
    %1902 = vmatpush1.msra.mxu0 %v318
    %1903 = vmatprep.subr.mxu0 %v321
    %1904 = vmatpush1.msra.mxu0 %v320
    %1905 = vmatprep.subr.mxu0 %v323
    %1906 = vmatpush1.msra.mxu0 %v322
    %1907 = vmatprep.subr.mxu0 %v325
    %1908 = vmatpush1.msra.mxu0 %v324
    %1909 = vmatprep.subr.mxu0 0.0
    %1910 = vmatpush1.msra.mxu0 0.0
    %1911 = vmatprep.subr.mxu0 0.0
    %1912 = vmatpush1.msra.mxu0 0.0
    %1913 = vmatprep.subr.mxu0 0.0
    %1914 = vmatpush1.msra.mxu0 0.0
    %1915 = vmatprep.subr.mxu0 0.0
    %1916 = vmatpush1.msra.mxu0 0.0
    %1917 = vmatprep.subr.mxu0 0.0
    %1918 = vmatpush1.msra.mxu0 0.0
    %1919 = vmatprep.subr.mxu0 0.0
    %1920 = vmatpush1.msra.mxu0 0.0
    %1921 = vmatprep.subr.mxu0 0.0
    %1922 = vmatpush1.msra.mxu0 0.0
    %1923 = vmatprep.subr.mxu0 0.0
    %1924 = vmatpush1.msra.mxu0 0.0
    %1925 = vmatprep.subr.mxu0 0.0
    %1926 = vmatpush1.msra.mxu0 0.0
    %1927 = vmatprep.subr.mxu0 0.0
    %1928 = vmatpush1.msra.mxu0 0.0
    %1929 = vmatprep.subr.mxu0 0.0
    %1930 = vmatpush1.msra.mxu0 0.0
    %1931 = vmatprep.subr.mxu0 0.0
    %1932 = vmatpush1.msra.mxu0 0.0
    %1933 = vmatprep.subr.mxu0 0.0
    %1934 = vmatpush1.msra.mxu0 0.0
    %1935 = vmatprep.subr.mxu0 0.0
    %1936 = vmatpush1.msra.mxu0 0.0
    %1937 = vmatprep.subr.mxu0 0.0
    %1938 = vmatpush1.msra.mxu0 0.0
    %1939 = vmatprep.subr.mxu0 0.0
    %1940 = vmatpush1.msra.mxu0 0.0
    %1941 = vmatprep.subr.mxu0 0.0
    %1942 = vmatpush1.msra.mxu0 0.0
    %1943 = vmatprep.subr.mxu0 0.0
    %1944 = vmatpush1.msra.mxu0 0.0
    %1945 = vmatprep.subr.mxu0 0.0
    %1946 = vmatpush1.msra.mxu0 0.0
    %1947 = vmatprep.subr.mxu0 0.0
    %1948 = vmatpush1.msra.mxu0 0.0
    %1949 = vmatprep.subr.mxu0 0.0
    %1950 = vmatpush1.msra.mxu0 0.0
    %1951 = vmatprep.subr.mxu0 0.0
    %1952 = vmatpush1.msra.mxu0 0.0
    %1953 = vmatprep.subr.mxu0 0.0
    %1954 = vmatpush1.msra.mxu0 0.0
    %1955 = vmatprep.subr.mxu0 0.0
    %1956 = vmatpush1.msra.mxu0 0.0
    %1957 = vmatprep.mubr.f32.mxu0 0.0
    %1958 = vmatmul.mubr.f32.gmra.mrb[0].mxu0 %v1891
    %v1959 = vpop.f32.mrb[0].mxu0
    %v1960 = vadd.f32 %v330, %v1959
    %v1961 = vpop.f32.mrb[0].mxu0
    %v1962 = vadd.f32 %v334, %v1961
    %1963 = vdwg.mxu0
    %v1965 = vrot.slane %v1960, 2
    %v1966 = vrot.slane %v1960, 3
    %v1969 = vadd.f32 %v225, %v1965
    %v1970 = vadd.f32 %v231, %v1966
    %v1971 = vxor.u32 %v1969, 2147483648
    %v1972 = vxor.u32 %v1970, 2147483648
    %v1973 = vmul.f32 %v1971, 1.442695
    %v1974 = vpow.pop %v1973
    %v1975 = vmul.f32 %v1972, 1.442695
    %v1976 = vpow.pop %v1975
    %v1977 = vadd.f32 %v1974, 1.0
    %v1978 = vadd.f32 %v1976, 1.0
    %v1979 = vrcp.pop %v1977
    %v1980 = vmul.f32 1.0, %v1979
    %v1981 = vrcp.pop %v1978
    %v1982 = vmul.f32 1.0, %v1981
    %1983 = vrot.lane.b32.xlu0 %v1965, 64
    %v1984 = vpop.permute.xlu0 %1983
    %1985 = vrot.lane.b32.xlu0 %v1966, 64
    %v1986 = vpop.permute.xlu0 %1985
    %v1989 = vmul.f32 %v1980, %v1984
    %v1990 = vmul.f32 %v1982, %v1986
    %1993 = vrot.lane.b32.xlu0 %v1989, 64
    %v1994 = vpop.permute.xlu0 %1993
    %1995 = vrot.lane.b32.xlu0 %v1990, 64
    %v1996 = vpop.permute.xlu0 %1995
    %v1999 = vadd.f32 %v225, %v1994
    %v2000 = vadd.f32 %v231, %v1996
    %v2001 = vtanh.pop %v1999
    %v2002 = vtanh.pop %v2000
    %v2003 = vsub.f32 1.0, %v1980
    %v2004 = vsub.f32 1.0, %v1982
    %2007 = vrot.lane.b32.xlu0 %v2001, 96
    %v2008 = vpop.permute.xlu0 %2007
    %2009 = vrot.lane.b32.xlu0 %v2002, 96
    %v2010 = vpop.permute.xlu0 %2009
    %v2013 = vmul.f32 %v2003, %v2008
    %v2014 = vmul.f32 %v2004, %v2010
    %v2015 = vrot.slane %v1860, 7
    %2016 = vrot.lane.b32.xlu0 %v2015, 32
    %v2017 = vpop.permute.xlu0 %2016
    %2018 = vrot.lane.b32.xlu0 %v1860, 32
    %v2019 = vpop.permute.xlu0 %2018
    %v2022 = vmul.f32 %v1980, %v2017
    %v2023 = vmul.f32 %v1982, %v2019
    %v2024 = vadd.f32 %v2013, %v2022
    %v2025 = vadd.f32 %v2014, %v2023
    %v2026 = vrot.slane %v1960, 7
    %v2029 = vadd.f32 %v225, %v2026
    %v2030 = vadd.f32 %v231, %v1960
    %v2031 = vxor.u32 %v2029, 2147483648
    %v2032 = vxor.u32 %v2030, 2147483648
    %v2033 = vmul.f32 %v2031, 1.442695
    %v2034 = vpow.pop %v2033
    %v2035 = vmul.f32 %v2032, 1.442695
    %v2036 = vpow.pop %v2035
    %v2037 = vadd.f32 %v2034, 1.0
    %v2038 = vadd.f32 %v2036, 1.0
    %v2039 = vrcp.pop %v2037
    %v2040 = vmul.f32 1.0, %v2039
    %v2041 = vrcp.pop %v2038
    %v2042 = vmul.f32 1.0, %v2041
    %v2044 = vrot.slane %v1962, 7
    %v2047 = vadd.f32 %v227, %v2044
    %v2048 = vadd.f32 %v233, %v1962
    %v2049 = vxor.u32 %v2047, 2147483648
    %v2050 = vxor.u32 %v2048, 2147483648
    %v2051 = vmul.f32 %v2049, 1.442695
    %v2052 = vpow.pop %v2051
    %v2053 = vmul.f32 %v2050, 1.442695
    %v2054 = vpow.pop %v2053
    %v2055 = vadd.f32 %v2052, 1.0
    %v2056 = vadd.f32 %v2054, 1.0
    %v2057 = vrcp.pop %v2055
    %v2058 = vmul.f32 1.0, %v2057
    %v2059 = vrcp.pop %v2056
    %v2060 = vmul.f32 1.0, %v2059
    %2061 = vrot.lane.b32.xlu0 %v2044, 64
    %v2062 = vpop.permute.xlu0 %2061
    %2063 = vrot.lane.b32.xlu0 %v1962, 64
    %v2064 = vpop.permute.xlu0 %2063
    %v2067 = vmul.f32 %v2040, %v2062
    %v2068 = vmul.f32 %v2042, %v2064
    %2071 = vrot.lane.b32.xlu0 %v2067, 64
    %v2072 = vpop.permute.xlu0 %2071
    %2073 = vrot.lane.b32.xlu0 %v2068, 64
    %v2074 = vpop.permute.xlu0 %2073
    %v2077 = vadd.f32 %v227, %v2072
    %v2078 = vadd.f32 %v233, %v2074
    %v2079 = vtanh.pop %v2077
    %v2080 = vtanh.pop %v2078
    %v2081 = vsub.f32 1.0, %v2058
    %v2082 = vsub.f32 1.0, %v2060
    %2085 = vrot.lane.b32.xlu0 %v2079, 96
    %v2086 = vpop.permute.xlu0 %2085
    %2087 = vrot.lane.b32.xlu0 %v2080, 96
    %v2088 = vpop.permute.xlu0 %2087
    %v2091 = vmul.f32 %v2081, %v2086
    %v2092 = vmul.f32 %v2082, %v2088
    %v2093 = vrot.slane %v1860, 4
    %2094 = vrot.lane.b32.xlu0 %v2093, 96
    %v2095 = vpop.permute.xlu0 %2094
    %2096 = vrot.lane.b32.xlu0 %v1890, 96
    %v2097 = vpop.permute.xlu0 %2096
    %v2100 = vmul.f32 %v2058, %v2095
    %v2101 = vmul.f32 %v2060, %v2097
    %v2102 = vadd.f32 %v2091, %v2100
    %v2103 = vadd.f32 %v2092, %v2101
    %v2106 = vrot.slane %v2025, 7
    %vm2107 = vcmask 1047559
    %v2108 = vsel %vm2107, %v2106, %v2024
    %2109 = vrot.lane.b32.xlu0 %v2108, 96
    %v2110 = vpop.permute.xlu0 %2109
    %v2114 = vrot.slane %v2102, 3
    %v2115 = vrot.slane %v2103, 2
    %v2116 = vsel %vm2107, %v2115, %v2114
    %2117 = vrot.lane.b32.xlu0 %v2116, 32
    %v2118 = vpop.permute.xlu0 %2117
    %v2120 = vsel %vm553, %v2110, %v2118
    %2121 = vrot.lane.b32.xlu0 %v2024, 96
    %v2122 = vpop.permute.xlu0 %2121
    %2123 = vrot.lane.b32.xlu0 %v2025, 96
    %v2124 = vpop.permute.xlu0 %2123
    %vm2127 = vcmask 129030
    %2128 = vst.msk [vmem:[#allocation14] sm:$0x40] %vm2127, %v2122
    %2129 = vst.msk [vmem:[#allocation14 + $0x8] sm:$0x40] %vm2127, %v2124
    %2130 = vrot.lane.b32.xlu0 %v2024, 80
    %v2131 = vpop.permute.xlu0 %2130
    %2132 = vrot.lane.b32.xlu0 %v2025, 80
    %v2133 = vpop.permute.xlu0 %2132
    %2136 = vst.msk [vmem:[#allocation16] sm:$0x40] %vm2127, %v2131
    %2137 = vst.msk [vmem:[#allocation16 + $0x8] sm:$0x40] %vm2127, %v2133
    %2138 = vrot.lane.b32.xlu0 %v2102, 16
    %v2139 = vpop.permute.xlu0 %2138
    %2140 = vrot.lane.b32.xlu0 %v2103, 16
    %v2141 = vpop.permute.xlu0 %2140
    %vm2144 = vcmask 255105
    %2145 = vst.msk [vmem:[#allocation14] sm:$0x2] %vm2144, %v2139
    %2146 = vst.msk [vmem:[#allocation14 + $0x8] sm:$0x2] %vm2144, %v2141
    %2147 = vst.msk [vmem:[#allocation16] sm:$0x2] %vm2144, %v2102
    %2148 = vst.msk [vmem:[#allocation16 + $0x8] sm:$0x2] %vm2144, %v2103
    %v2150 = vrot.slane %v2120, 6
    %v2151 = vsel %vm337, %v2150, 0
    %2153 = vmatprep.subr.mxu0 %v311
    %2154 = vmatpush1.msra.mxu0 %v310
    %2155 = vmatprep.subr.mxu0 %v313
    %2156 = vmatpush1.msra.mxu0 %v312
    %2157 = vmatprep.subr.mxu0 %v315
    %2158 = vmatpush1.msra.mxu0 %v314
    %2159 = vmatprep.subr.mxu0 %v317
    %2160 = vmatpush1.msra.mxu0 %v316
    %2161 = vmatprep.subr.mxu0 %v319
    %2162 = vmatpush1.msra.mxu0 %v318
    %2163 = vmatprep.subr.mxu0 %v321
    %2164 = vmatpush1.msra.mxu0 %v320
    %2165 = vmatprep.subr.mxu0 %v323
    %2166 = vmatpush1.msra.mxu0 %v322
    %2167 = vmatprep.subr.mxu0 %v325
    %2168 = vmatpush1.msra.mxu0 %v324
    %2169 = vmatprep.subr.mxu0 0.0
    %2170 = vmatpush1.msra.mxu0 0.0
    %2171 = vmatprep.subr.mxu0 0.0
    %2172 = vmatpush1.msra.mxu0 0.0
    %2173 = vmatprep.subr.mxu0 0.0
    %2174 = vmatpush1.msra.mxu0 0.0
    %2175 = vmatprep.subr.mxu0 0.0
    %2176 = vmatpush1.msra.mxu0 0.0
    %2177 = vmatprep.subr.mxu0 0.0
    %2178 = vmatpush1.msra.mxu0 0.0
    %2179 = vmatprep.subr.mxu0 0.0
    %2180 = vmatpush1.msra.mxu0 0.0
    %2181 = vmatprep.subr.mxu0 0.0
    %2182 = vmatpush1.msra.mxu0 0.0
    %2183 = vmatprep.subr.mxu0 0.0
    %2184 = vmatpush1.msra.mxu0 0.0
    %2185 = vmatprep.subr.mxu0 0.0
    %2186 = vmatpush1.msra.mxu0 0.0
    %2187 = vmatprep.subr.mxu0 0.0
    %2188 = vmatpush1.msra.mxu0 0.0
    %2189 = vmatprep.subr.mxu0 0.0
    %2190 = vmatpush1.msra.mxu0 0.0
    %2191 = vmatprep.subr.mxu0 0.0
    %2192 = vmatpush1.msra.mxu0 0.0
    %2193 = vmatprep.subr.mxu0 0.0
    %2194 = vmatpush1.msra.mxu0 0.0
    %2195 = vmatprep.subr.mxu0 0.0
    %2196 = vmatpush1.msra.mxu0 0.0
    %2197 = vmatprep.subr.mxu0 0.0
    %2198 = vmatpush1.msra.mxu0 0.0
    %2199 = vmatprep.subr.mxu0 0.0
    %2200 = vmatpush1.msra.mxu0 0.0
    %2201 = vmatprep.subr.mxu0 0.0
    %2202 = vmatpush1.msra.mxu0 0.0
    %2203 = vmatprep.subr.mxu0 0.0
    %2204 = vmatpush1.msra.mxu0 0.0
    %2205 = vmatprep.subr.mxu0 0.0
    %2206 = vmatpush1.msra.mxu0 0.0
    %2207 = vmatprep.subr.mxu0 0.0
    %2208 = vmatpush1.msra.mxu0 0.0
    %2209 = vmatprep.subr.mxu0 0.0
    %2210 = vmatpush1.msra.mxu0 0.0
    %2211 = vmatprep.subr.mxu0 0.0
    %2212 = vmatpush1.msra.mxu0 0.0
    %2213 = vmatprep.subr.mxu0 0.0
    %2214 = vmatpush1.msra.mxu0 0.0
    %2215 = vmatprep.subr.mxu0 0.0
    %2216 = vmatpush1.msra.mxu0 0.0
    %2217 = vmatprep.mubr.f32.mxu0 0.0
    %2218 = vmatmul.mubr.f32.gmra.mrb[0].mxu0 %v2151
    %v2219 = vpop.f32.mrb[0].mxu0
    %v2220 = vadd.f32 %v330, %v2219
    %v2221 = vpop.f32.mrb[0].mxu0
    %v2222 = vadd.f32 %v334, %v2221
    %2223 = vdwg.mxu0
    %v2225 = vrot.slane %v2220, 1
    %v2226 = vrot.slane %v2220, 2
    %v2229 = vadd.f32 %v225, %v2225
    %v2230 = vadd.f32 %v231, %v2226
    %v2231 = vxor.u32 %v2229, 2147483648
    %v2232 = vxor.u32 %v2230, 2147483648
    %v2233 = vmul.f32 %v2231, 1.442695
    %v2234 = vpow.pop %v2233
    %v2235 = vmul.f32 %v2232, 1.442695
    %v2236 = vpow.pop %v2235
    %v2237 = vadd.f32 %v2234, 1.0
    %v2238 = vadd.f32 %v2236, 1.0
    %v2239 = vrcp.pop %v2237
    %v2240 = vmul.f32 1.0, %v2239
    %v2241 = vrcp.pop %v2238
    %v2242 = vmul.f32 1.0, %v2241
    %2243 = vrot.lane.b32.xlu0 %v2225, 64
    %v2244 = vpop.permute.xlu0 %2243
    %2245 = vrot.lane.b32.xlu0 %v2226, 64
    %v2246 = vpop.permute.xlu0 %2245
    %v2249 = vmul.f32 %v2240, %v2244
    %v2250 = vmul.f32 %v2242, %v2246
    %2253 = vrot.lane.b32.xlu0 %v2249, 64
    %v2254 = vpop.permute.xlu0 %2253
    %2255 = vrot.lane.b32.xlu0 %v2250, 64
    %v2256 = vpop.permute.xlu0 %2255
    %v2259 = vadd.f32 %v225, %v2254
    %v2260 = vadd.f32 %v231, %v2256
    %v2261 = vtanh.pop %v2259
    %v2262 = vtanh.pop %v2260
    %v2263 = vsub.f32 1.0, %v2240
    %v2264 = vsub.f32 1.0, %v2242
    %2267 = vrot.lane.b32.xlu0 %v2261, 96
    %v2268 = vpop.permute.xlu0 %2267
    %2269 = vrot.lane.b32.xlu0 %v2262, 96
    %v2270 = vpop.permute.xlu0 %2269
    %v2273 = vmul.f32 %v2263, %v2268
    %v2274 = vmul.f32 %v2264, %v2270
    %v2275 = vrot.slane %v2120, 7
    %2276 = vrot.lane.b32.xlu0 %v2275, 32
    %v2277 = vpop.permute.xlu0 %2276
    %2278 = vrot.lane.b32.xlu0 %v2120, 32
    %v2279 = vpop.permute.xlu0 %2278
    %v2282 = vmul.f32 %v2240, %v2277
    %v2283 = vmul.f32 %v2242, %v2279
    %v2284 = vadd.f32 %v2273, %v2282
    %v2285 = vadd.f32 %v2274, %v2283
    %v2287 = vadd.f32 %v225, %v2220
    %v2288 = vadd.f32 %v231, %v2225
    %v2289 = vxor.u32 %v2287, 2147483648
    %v2290 = vxor.u32 %v2288, 2147483648
    %v2291 = vmul.f32 %v2289, 1.442695
    %v2292 = vpow.pop %v2291
    %v2293 = vmul.f32 %v2290, 1.442695
    %v2294 = vpow.pop %v2293
    %v2295 = vadd.f32 %v2292, 1.0
    %v2296 = vadd.f32 %v2294, 1.0
    %v2297 = vrcp.pop %v2295
    %v2298 = vmul.f32 1.0, %v2297
    %v2299 = vrcp.pop %v2296
    %v2300 = vmul.f32 1.0, %v2299
    %v2302 = vrot.slane %v2222, 1
    %v2305 = vadd.f32 %v227, %v2222
    %v2306 = vadd.f32 %v233, %v2302
    %v2307 = vxor.u32 %v2305, 2147483648
    %v2308 = vxor.u32 %v2306, 2147483648
    %v2309 = vmul.f32 %v2307, 1.442695
    %v2310 = vpow.pop %v2309
    %v2311 = vmul.f32 %v2308, 1.442695
    %v2312 = vpow.pop %v2311
    %v2313 = vadd.f32 %v2310, 1.0
    %v2314 = vadd.f32 %v2312, 1.0
    %v2315 = vrcp.pop %v2313
    %v2316 = vmul.f32 1.0, %v2315
    %v2317 = vrcp.pop %v2314
    %v2318 = vmul.f32 1.0, %v2317
    %2319 = vrot.lane.b32.xlu0 %v2222, 64
    %v2320 = vpop.permute.xlu0 %2319
    %2321 = vrot.lane.b32.xlu0 %v2302, 64
    %v2322 = vpop.permute.xlu0 %2321
    %v2325 = vmul.f32 %v2298, %v2320
    %v2326 = vmul.f32 %v2300, %v2322
    %2329 = vrot.lane.b32.xlu0 %v2325, 64
    %v2330 = vpop.permute.xlu0 %2329
    %2331 = vrot.lane.b32.xlu0 %v2326, 64
    %v2332 = vpop.permute.xlu0 %2331
    %v2335 = vadd.f32 %v227, %v2330
    %v2336 = vadd.f32 %v233, %v2332
    %v2337 = vtanh.pop %v2335
    %v2338 = vtanh.pop %v2336
    %v2339 = vsub.f32 1.0, %v2316
    %v2340 = vsub.f32 1.0, %v2318
    %2343 = vrot.lane.b32.xlu0 %v2337, 96
    %v2344 = vpop.permute.xlu0 %2343
    %2345 = vrot.lane.b32.xlu0 %v2338, 96
    %v2346 = vpop.permute.xlu0 %2345
    %v2349 = vmul.f32 %v2339, %v2344
    %v2350 = vmul.f32 %v2340, %v2346
    %2351 = vrot.lane.b32.xlu0 %v2150, 96
    %v2352 = vpop.permute.xlu0 %2351
    %2353 = vrot.lane.b32.xlu0 %v2275, 96
    %v2354 = vpop.permute.xlu0 %2353
    %v2357 = vmul.f32 %v2316, %v2352
    %v2358 = vmul.f32 %v2318, %v2354
    %v2359 = vadd.f32 %v2349, %v2357
    %v2360 = vadd.f32 %v2350, %v2358
    %2363 = vrot.lane.b32.xlu0 %v2284, 96
    %v2364 = vpop.permute.xlu0 %2363
    %2365 = vrot.lane.b32.xlu0 %v2285, 96
    %v2366 = vpop.permute.xlu0 %2365
    %vm2369 = vcmask 130055
    %2370 = vst.msk [vmem:[#allocation14] sm:$0x80] %vm2369, %v2364
    %2371 = vst.msk [vmem:[#allocation14 + $0x8] sm:$0x80] %vm2369, %v2366
    %2372 = vrot.lane.b32.xlu0 %v2284, 80
    %v2373 = vpop.permute.xlu0 %2372
    %2374 = vrot.lane.b32.xlu0 %v2285, 80
    %v2375 = vpop.permute.xlu0 %2374
    %2378 = vst.msk [vmem:[#allocation16] sm:$0x80] %vm2369, %v2373
    %2379 = vst.msk [vmem:[#allocation16 + $0x8] sm:$0x80] %vm2369, %v2375
    %2382 = vrot.lane.b32.xlu0 %v2359, 16
    %v2383 = vpop.permute.xlu0 %2382
    %2384 = vrot.lane.b32.xlu0 %v2360, 16
    %v2385 = vpop.permute.xlu0 %2384
    %vm2388 = vcmask 254080
    %2389 = vst.msk [vmem:[#allocation14] sm:$0x1] %vm2388, %v2383
    %2390 = vst.msk [vmem:[#allocation14 + $0x8] sm:$0x1] %vm2388, %v2385
    %2391 = vst.msk [vmem:[#allocation16] sm:$0x1] %vm2388, %v2359
    %2392 = vst.msk [vmem:[#allocation16 + $0x8] sm:$0x1] %vm2388, %v2360
    %v2393 = vmax.f32 %v227, 0.0
    %v2394 = vmax.f32 %v233, 0.0
    %v2395 = vld [vmem:[#allocation7] sm:$0xff]
    %v2396 = vld [vmem:[#allocation7 + $0x8] sm:$0xff]
    %v2397 = vld [vmem:[#allocation7 + $0x10] sm:$0xff]
    %v2398 = vld [vmem:[#allocation7 + $0x18] sm:$0xff]
    %v2399 = vld [vmem:[#allocation7 + $0x20] sm:$0xff]
    %v2400 = vld [vmem:[#allocation7 + $0x28] sm:$0xff]
    %v2401 = vld [vmem:[#allocation7 + $0x30] sm:$0xff]
    %v2402 = vld [vmem:[#allocation7 + $0x38] sm:$0xff]
    %2405 = vrot.lane.b32.xlu0 %v2393, 64
    %v2406 = vpop.permute.xlu0 %2405
    %2407 = vrot.lane.b32.xlu0 %v2394, 64
    %v2408 = vpop.permute.xlu0 %2407
    %v2409 = vsel %vm337, %v2406, 0
    %v2411 = vsel %vm337, %v2408, 0
    %2413 = vmatprep.subr.mxu0 0.0
    %2414 = vmatpush1.msra.mxu0 %v2395
    %2415 = vmatprep.subr.mxu0 0.0
    %2416 = vmatpush1.msra.mxu0 %v2396
    %2417 = vmatprep.subr.mxu0 0.0
    %2418 = vmatpush1.msra.mxu0 %v2397
    %2419 = vmatprep.subr.mxu0 0.0
    %2420 = vmatpush1.msra.mxu0 %v2398
    %2421 = vmatprep.subr.mxu0 0.0
    %2422 = vmatpush1.msra.mxu0 %v2399
    %2423 = vmatprep.subr.mxu0 0.0
    %2424 = vmatpush1.msra.mxu0 %v2400
    %2425 = vmatprep.subr.mxu0 0.0
    %2426 = vmatpush1.msra.mxu0 %v2401
    %2427 = vmatprep.subr.mxu0 0.0
    %2428 = vmatpush1.msra.mxu0 %v2402
    %2429 = vmatprep.subr.mxu0 0.0
    %2430 = vmatpush1.msra.mxu0 0.0
    %2431 = vmatprep.subr.mxu0 0.0
    %2432 = vmatpush1.msra.mxu0 0.0
    %2433 = vmatprep.subr.mxu0 0.0
    %2434 = vmatpush1.msra.mxu0 0.0
    %2435 = vmatprep.subr.mxu0 0.0
    %2436 = vmatpush1.msra.mxu0 0.0
    %2437 = vmatprep.subr.mxu0 0.0
    %2438 = vmatpush1.msra.mxu0 0.0
    %2439 = vmatprep.subr.mxu0 0.0
    %2440 = vmatpush1.msra.mxu0 0.0
    %2441 = vmatprep.subr.mxu0 0.0
    %2442 = vmatpush1.msra.mxu0 0.0
    %2443 = vmatprep.subr.mxu0 0.0
    %2444 = vmatpush1.msra.mxu0 0.0
    %2445 = vmatprep.subr.mxu0 0.0
    %2446 = vmatpush1.msra.mxu0 0.0
    %2447 = vmatprep.subr.mxu0 0.0
    %2448 = vmatpush1.msra.mxu0 0.0
    %2449 = vmatprep.subr.mxu0 0.0
    %2450 = vmatpush1.msra.mxu0 0.0
    %2451 = vmatprep.subr.mxu0 0.0
    %2452 = vmatpush1.msra.mxu0 0.0
    %2453 = vmatprep.subr.mxu0 0.0
    %2454 = vmatpush1.msra.mxu0 0.0
    %2455 = vmatprep.subr.mxu0 0.0
    %2456 = vmatpush1.msra.mxu0 0.0
    %2457 = vmatprep.subr.mxu0 0.0
    %2458 = vmatpush1.msra.mxu0 0.0
    %2459 = vmatprep.subr.mxu0 0.0
    %2460 = vmatpush1.msra.mxu0 0.0
    %2461 = vmatprep.subr.mxu0 0.0
    %2462 = vmatpush1.msra.mxu0 0.0
    %2463 = vmatprep.subr.mxu0 0.0
    %2464 = vmatpush1.msra.mxu0 0.0
    %2465 = vmatprep.subr.mxu0 0.0
    %2466 = vmatpush1.msra.mxu0 0.0
    %2467 = vmatprep.subr.mxu0 0.0
    %2468 = vmatpush1.msra.mxu0 0.0
    %2469 = vmatprep.subr.mxu0 0.0
    %2470 = vmatpush1.msra.mxu0 0.0
    %2471 = vmatprep.subr.mxu0 0.0
    %2472 = vmatpush1.msra.mxu0 0.0
    %2473 = vmatprep.subr.mxu0 0.0
    %2474 = vmatpush1.msra.mxu0 0.0
    %2475 = vmatprep.subr.mxu0 0.0
    %2476 = vmatpush1.msra.mxu0 0.0
    %2477 = vmatprep.mubr.f32.mxu0 0.0
    %2478 = vmatmul.mubr.f32.gmra.mrb[0].mxu0 %v2409
    %v2479 = vpop.f32.mrb[0].mxu0
    %v2480 = vadd.f32 %v125, %v2479
    %v2481 = vpop.f32.mrb[0].mxu0
    %2482 = vmatprep.mubr.f32.mxu0 0.0
    %2483 = vmatmul.mubr.f32.gmra.mrb[0].mxu0 %v2411
    %v2484 = vpop.f32.mrb[0].mxu0
    %v2485 = vadd.f32 %v125, %v2484
    %v2486 = vpop.f32.mrb[0].mxu0
    %2487 = vdwg.mxu0
    %2488 = vst.msk [vmem:[#allocation17] sm:$0xff] %vm553, %v2480
    %2489 = vst.msk [vmem:[#allocation17 + $0x8] sm:$0xff] %vm553, %v2485
    %2492 = vrot.lane.b32.xlu0 %v2480, 96
    %v2493 = vpop.permute.xlu0 %2492
    %2494 = vrot.lane.b32.xlu0 %v2485, 96
    %v2495 = vpop.permute.xlu0 %2494
    %2498 = vst.msk [vmem:[#allocation19] sm:$0xff] %vm553, %v2493
    %2499 = vst.msk [vmem:[#allocation19 + $0x8] sm:$0xff] %vm553, %v2495
    %v2500 = vmul.f32 %v2480, 0.5
    %v2501 = vmul.f32 %v2485, 0.5
    %v2502 = vmul.f32 %v2500, 1.442695
    %v2503 = vpow.pop %v2502
    %v2504 = vmul.f32 %v2501, 1.442695
    %v2505 = vpow.pop %v2504
    %v2506 = vld [vmem:[%s1] sm:$0x1]
    %v2508 = vlaneseq
    %v2509 = vshrl.u32 %v2508, 7
    %v2510 = vsub.s32 0, %v2509
    %v2511 = vrot.slane %v2506, %v2510
    %2512 = vrot.lane.b32.xlu0 %v2511, 32
    %v2513 = vpop.permute.xlu0 %2512
    %v2515 = vmul.f32 %v2503, %v2513
    %v2516 = vmul.f32 %v2505, %v2513
    %2519 = vrot.lane.b32.xlu0 %v2515, 96
    %v2520 = vpop.permute.xlu0 %2519
    %2521 = vrot.lane.b32.xlu0 %v2516, 96
    %v2522 = vpop.permute.xlu0 %2521
    %v2525 = vadd.f32 %v2480, %v2520
    %v2526 = vadd.f32 %v2485, %v2522
    %v2527 = vld [vmem:[#allocation8] sm:$0xff]
    %v2528 = vld [vmem:[#allocation8 + $0x8] sm:$0xff]
    %v2529 = vld [vmem:[#allocation8 + $0x10] sm:$0xff]
    %v2530 = vld [vmem:[#allocation8 + $0x18] sm:$0xff]
    %v2532 = vsel %vm553, %v2525, 0
    %v2535 = vsel %vm553, %v2526, 0
    %2537 = vmatprep.subr.mxu0 0.0
    %2538 = vmatpush1.msra.mxu0 %v2527
    %2539 = vmatprep.subr.mxu0 0.0
    %2540 = vmatpush1.msra.mxu0 %v2528
    %2541 = vmatprep.subr.mxu0 0.0
    %2542 = vmatpush1.msra.mxu0 %v2529
    %2543 = vmatprep.subr.mxu0 0.0
    %2544 = vmatpush1.msra.mxu0 %v2530
    %2545 = vmatprep.subr.mxu0 0.0
    %2546 = vmatpush1.msra.mxu0 0.0
    %2547 = vmatprep.subr.mxu0 0.0
    %2548 = vmatpush1.msra.mxu0 0.0
    %2549 = vmatprep.subr.mxu0 0.0
    %2550 = vmatpush1.msra.mxu0 0.0
    %2551 = vmatprep.subr.mxu0 0.0
    %2552 = vmatpush1.msra.mxu0 0.0
    %2553 = vmatprep.subr.mxu0 0.0
    %2554 = vmatpush1.msra.mxu0 0.0
    %2555 = vmatprep.subr.mxu0 0.0
    %2556 = vmatpush1.msra.mxu0 0.0
    %2557 = vmatprep.subr.mxu0 0.0
    %2558 = vmatpush1.msra.mxu0 0.0
    %2559 = vmatprep.subr.mxu0 0.0
    %2560 = vmatpush1.msra.mxu0 0.0
    %2561 = vmatprep.subr.mxu0 0.0
    %2562 = vmatpush1.msra.mxu0 0.0
    %2563 = vmatprep.subr.mxu0 0.0
    %2564 = vmatpush1.msra.mxu0 0.0
    %2565 = vmatprep.subr.mxu0 0.0
    %2566 = vmatpush1.msra.mxu0 0.0
    %2567 = vmatprep.subr.mxu0 0.0
    %2568 = vmatpush1.msra.mxu0 0.0
    %2569 = vmatprep.subr.mxu0 0.0
    %2570 = vmatpush1.msra.mxu0 0.0
    %2571 = vmatprep.subr.mxu0 0.0
    %2572 = vmatpush1.msra.mxu0 0.0
    %2573 = vmatprep.subr.mxu0 0.0
    %2574 = vmatpush1.msra.mxu0 0.0
    %2575 = vmatprep.subr.mxu0 0.0
    %2576 = vmatpush1.msra.mxu0 0.0
    %2577 = vmatprep.subr.mxu0 0.0
    %2578 = vmatpush1.msra.mxu0 0.0
    %2579 = vmatprep.subr.mxu0 0.0
    %2580 = vmatpush1.msra.mxu0 0.0
    %2581 = vmatprep.subr.mxu0 0.0
    %2582 = vmatpush1.msra.mxu0 0.0
    %2583 = vmatprep.subr.mxu0 0.0
    %2584 = vmatpush1.msra.mxu0 0.0
    %2585 = vmatprep.subr.mxu0 0.0
    %2586 = vmatpush1.msra.mxu0 0.0
    %2587 = vmatprep.subr.mxu0 0.0
    %2588 = vmatpush1.msra.mxu0 0.0
    %2589 = vmatprep.subr.mxu0 0.0
    %2590 = vmatpush1.msra.mxu0 0.0
    %2591 = vmatprep.subr.mxu0 0.0
    %2592 = vmatpush1.msra.mxu0 0.0
    %2593 = vmatprep.subr.mxu0 0.0
    %2594 = vmatpush1.msra.mxu0 0.0
    %2595 = vmatprep.subr.mxu0 0.0
    %2596 = vmatpush1.msra.mxu0 0.0
    %2597 = vmatprep.subr.mxu0 0.0
    %2598 = vmatpush1.msra.mxu0 0.0
    %2599 = vmatprep.subr.mxu0 0.0
    %2600 = vmatpush1.msra.mxu0 0.0
    %2601 = vmatprep.mubr.f32.mxu0 0.0
    %2602 = vmatmul.mubr.f32.gmra.mrb[0].mxu0 %v2532
    %v2603 = vpop.f32.mrb[0].mxu0
    %v2604 = vadd.f32 %v126, %v2603
    %v2605 = vpop.f32.mrb[0].mxu0
    %2606 = vmatprep.mubr.f32.mxu0 0.0
    %2607 = vmatmul.mubr.f32.gmra.mrb[0].mxu0 %v2535
    %v2608 = vpop.f32.mrb[0].mxu0
    %v2609 = vadd.f32 %v126, %v2608
    %v2610 = vpop.f32.mrb[0].mxu0
    %2611 = vdwg.mxu0
    %v2612 = vmax.f32 %v2604, 0.0
    %v2613 = vmax.f32 %v2609, 0.0
    %v2614 = vld [vmem:[#allocation10] sm:$0xff]
    %v2615 = vld [vmem:[#allocation10 + $0x8] sm:$0xff]
    %v2616 = vld [vmem:[#allocation10 + $0x10] sm:$0xff]
    %v2617 = vld [vmem:[#allocation10 + $0x18] sm:$0xff]
    %v2619 = vsel %vm553, %v2612, 0
    %v2622 = vsel %vm553, %v2613, 0
    %2624 = vmatprep.subr.mxu0 0.0
    %2625 = vmatpush1.msra.mxu0 %v2614
    %2626 = vmatprep.subr.mxu0 0.0
    %2627 = vmatpush1.msra.mxu0 %v2615
    %2628 = vmatprep.subr.mxu0 0.0
    %2629 = vmatpush1.msra.mxu0 %v2616
    %2630 = vmatprep.subr.mxu0 0.0
    %2631 = vmatpush1.msra.mxu0 %v2617
    %2632 = vmatprep.subr.mxu0 0.0
    %2633 = vmatpush1.msra.mxu0 0.0
    %2634 = vmatprep.subr.mxu0 0.0
    %2635 = vmatpush1.msra.mxu0 0.0
    %2636 = vmatprep.subr.mxu0 0.0
    %2637 = vmatpush1.msra.mxu0 0.0
    %2638 = vmatprep.subr.mxu0 0.0
    %2639 = vmatpush1.msra.mxu0 0.0
    %2640 = vmatprep.subr.mxu0 0.0
    %2641 = vmatpush1.msra.mxu0 0.0
    %2642 = vmatprep.subr.mxu0 0.0
    %2643 = vmatpush1.msra.mxu0 0.0
    %2644 = vmatprep.subr.mxu0 0.0
    %2645 = vmatpush1.msra.mxu0 0.0
    %2646 = vmatprep.subr.mxu0 0.0
    %2647 = vmatpush1.msra.mxu0 0.0
    %2648 = vmatprep.subr.mxu0 0.0
    %2649 = vmatpush1.msra.mxu0 0.0
    %2650 = vmatprep.subr.mxu0 0.0
    %2651 = vmatpush1.msra.mxu0 0.0
    %2652 = vmatprep.subr.mxu0 0.0
    %2653 = vmatpush1.msra.mxu0 0.0
    %2654 = vmatprep.subr.mxu0 0.0
    %2655 = vmatpush1.msra.mxu0 0.0
    %2656 = vmatprep.subr.mxu0 0.0
    %2657 = vmatpush1.msra.mxu0 0.0
    %2658 = vmatprep.subr.mxu0 0.0
    %2659 = vmatpush1.msra.mxu0 0.0
    %2660 = vmatprep.subr.mxu0 0.0
    %2661 = vmatpush1.msra.mxu0 0.0
    %2662 = vmatprep.subr.mxu0 0.0
    %2663 = vmatpush1.msra.mxu0 0.0
    %2664 = vmatprep.subr.mxu0 0.0
    %2665 = vmatpush1.msra.mxu0 0.0
    %2666 = vmatprep.subr.mxu0 0.0
    %2667 = vmatpush1.msra.mxu0 0.0
    %2668 = vmatprep.subr.mxu0 0.0
    %2669 = vmatpush1.msra.mxu0 0.0
    %2670 = vmatprep.subr.mxu0 0.0
    %2671 = vmatpush1.msra.mxu0 0.0
    %2672 = vmatprep.subr.mxu0 0.0
    %2673 = vmatpush1.msra.mxu0 0.0
    %2674 = vmatprep.subr.mxu0 0.0
    %2675 = vmatpush1.msra.mxu0 0.0
    %2676 = vmatprep.subr.mxu0 0.0
    %2677 = vmatpush1.msra.mxu0 0.0
    %2678 = vmatprep.subr.mxu0 0.0
    %2679 = vmatpush1.msra.mxu0 0.0
    %2680 = vmatprep.subr.mxu0 0.0
    %2681 = vmatpush1.msra.mxu0 0.0
    %2682 = vmatprep.subr.mxu0 0.0
    %2683 = vmatpush1.msra.mxu0 0.0
    %2684 = vmatprep.subr.mxu0 0.0
    %2685 = vmatpush1.msra.mxu0 0.0
    %2686 = vmatprep.subr.mxu0 0.0
    %2687 = vmatpush1.msra.mxu0 0.0
    %2688 = vmatprep.mubr.f32.mxu0 0.0
    %2689 = vmatmul.mubr.f32.gmra.mrb[0].mxu0 %v2619
    %v2690 = vpop.f32.mrb[0].mxu0
    %v2691 = vadd.f32 0.0, %v2690
    %v2692 = vpop.f32.mrb[0].mxu0
    %2693 = vmatprep.mubr.f32.mxu0 0.0
    %2694 = vmatmul.mubr.f32.gmra.mrb[0].mxu0 %v2622
    %v2695 = vpop.f32.mrb[0].mxu0
    %v2696 = vadd.f32 0.0, %v2695
    %v2697 = vpop.f32.mrb[0].mxu0
    %2698 = vdwg.mxu0
    %v2699 = vadd.f32 %v302, %v2691
    %v2700 = vadd.f32 %v307, %v2696
    %v2701 = vadd.f32 %v2699, %v127
    %v2702 = vadd.f32 %v2700, %v127
    %v2703 = vmax.f32 %v2701, 0.0
    %v2704 = vmax.f32 %v2702, 0.0
    %v2705 = vld [vmem:[%s7] sm:$0xff]
    %v2706 = vld [vmem:[%s7 + $0x8] sm:$0xff]
    %v2707 = vld [vmem:[%s7 + $0x10] sm:$0xff]
    %v2708 = vld [vmem:[%s7 + $0x18] sm:$0xff]
    %v2710 = vsel %vm553, %v2703, 0
    %v2713 = vsel %vm553, %v2704, 0
    %2715 = vmatprep.subr.mxu0 0.0
    %2716 = vmatpush1.msra.mxu0 %v2705
    %2717 = vmatprep.subr.mxu0 0.0
    %2718 = vmatpush1.msra.mxu0 %v2706
    %2719 = vmatprep.subr.mxu0 0.0
    %2720 = vmatpush1.msra.mxu0 %v2707
    %2721 = vmatprep.subr.mxu0 0.0
    %2722 = vmatpush1.msra.mxu0 %v2708
    %2723 = vmatprep.subr.mxu0 0.0
    %2724 = vmatpush1.msra.mxu0 0.0
    %2725 = vmatprep.subr.mxu0 0.0
    %2726 = vmatpush1.msra.mxu0 0.0
    %2727 = vmatprep.subr.mxu0 0.0
    %2728 = vmatpush1.msra.mxu0 0.0
    %2729 = vmatprep.subr.mxu0 0.0
    %2730 = vmatpush1.msra.mxu0 0.0
    %2731 = vmatprep.subr.mxu0 0.0
    %2732 = vmatpush1.msra.mxu0 0.0
    %2733 = vmatprep.subr.mxu0 0.0
    %2734 = vmatpush1.msra.mxu0 0.0
    %2735 = vmatprep.subr.mxu0 0.0
    %2736 = vmatpush1.msra.mxu0 0.0
    %2737 = vmatprep.subr.mxu0 0.0
    %2738 = vmatpush1.msra.mxu0 0.0
    %2739 = vmatprep.subr.mxu0 0.0
    %2740 = vmatpush1.msra.mxu0 0.0
    %2741 = vmatprep.subr.mxu0 0.0
    %2742 = vmatpush1.msra.mxu0 0.0
    %2743 = vmatprep.subr.mxu0 0.0
    %2744 = vmatpush1.msra.mxu0 0.0
    %2745 = vmatprep.subr.mxu0 0.0
    %2746 = vmatpush1.msra.mxu0 0.0
    %2747 = vmatprep.subr.mxu0 0.0
    %2748 = vmatpush1.msra.mxu0 0.0
    %2749 = vmatprep.subr.mxu0 0.0
    %2750 = vmatpush1.msra.mxu0 0.0
    %2751 = vmatprep.subr.mxu0 0.0
    %2752 = vmatpush1.msra.mxu0 0.0
    %2753 = vmatprep.subr.mxu0 0.0
    %2754 = vmatpush1.msra.mxu0 0.0
    %2755 = vmatprep.subr.mxu0 0.0
    %2756 = vmatpush1.msra.mxu0 0.0
    %2757 = vmatprep.subr.mxu0 0.0
    %2758 = vmatpush1.msra.mxu0 0.0
    %2759 = vmatprep.subr.mxu0 0.0
    %2760 = vmatpush1.msra.mxu0 0.0
    %2761 = vmatprep.subr.mxu0 0.0
    %2762 = vmatpush1.msra.mxu0 0.0
    %2763 = vmatprep.subr.mxu0 0.0
    %2764 = vmatpush1.msra.mxu0 0.0
    %2765 = vmatprep.subr.mxu0 0.0
    %2766 = vmatpush1.msra.mxu0 0.0
    %2767 = vmatprep.subr.mxu0 0.0
    %2768 = vmatpush1.msra.mxu0 0.0
    %2769 = vmatprep.subr.mxu0 0.0
    %2770 = vmatpush1.msra.mxu0 0.0
    %2771 = vmatprep.subr.mxu0 0.0
    %2772 = vmatpush1.msra.mxu0 0.0
    %2773 = vmatprep.subr.mxu0 0.0
    %2774 = vmatpush1.msra.mxu0 0.0
    %2775 = vmatprep.subr.mxu0 0.0
    %2776 = vmatpush1.msra.mxu0 0.0
    %2777 = vmatprep.subr.mxu0 0.0
    %2778 = vmatpush1.msra.mxu0 0.0
    %2779 = vmatprep.mubr.f32.mxu0 0.0
    %2780 = vmatmul.mubr.f32.gmra.mrb[0].mxu0 %v2710
    %v2781 = vpop.f32.mrb[0].mxu0
    %v2782 = vadd.f32 %v128, %v2781
    %v2783 = vpop.f32.mrb[0].mxu0
    %2784 = vmatprep.mubr.f32.mxu0 0.0
    %2785 = vmatmul.mubr.f32.gmra.mrb[0].mxu0 %v2713
    %v2786 = vpop.f32.mrb[0].mxu0
    %v2787 = vadd.f32 %v128, %v2786
    %v2788 = vpop.f32.mrb[0].mxu0
    %2789 = vdwg.mxu0
    %2790 = vst.msk [vmem:[#allocation13] sm:$0xff] %vm151, %v2782
    %2791 = vst.msk [vmem:[#allocation13 + $0x8] sm:$0xff] %vm151, %v2787
    // Predicated region
    $region62: #{forward.1} parent=1 // pred_check
      _
    $region63: #{forward.1} parent=1 // pred_check_branch
      %2793 = sbr.rel (0) target = $region65
    $region64: #{forward.1} parent=1 // pred_region
      %s2795 = ssub.s32 256, 256
      %2796 = vsyncadd [#allocation4], %s2795
      %s2797 = sshll.u32 [#allocation13], 4
      %s2798 = int_to_ptr.vmem [resolvable:$true] %s2797
      %2803 = dma.vmem_to_hbm [thread:$0]  %s2798, 256, %s9, [#allocation4], 128, 128, 8
    $region65: #{forward.1} parent=1 // pred_fallthru
      _
    // Predicated region
    $region66: #{forward.1} parent=1 // pred_check
      _
    $region67: #{forward.1} parent=1 // pred_check_branch
      %2805 = sbr.rel (0) target = $region69
    $region68: #{forward.1} parent=1 // pred_region
      %s2807 = ssub.s32 256, 256
      %2808 = vsyncadd [#allocation15], %s2807
      %s2809 = sshll.u32 [#allocation14], 4
      %s2810 = int_to_ptr.vmem [resolvable:$true] %s2809
      %2815 = dma.vmem_to_hbm [thread:$0]  %s2810, 256, %s10, [#allocation15], 128, 128, 8
    $region69: #{forward.1} parent=1 // pred_fallthru
      _
    // Predicated region
    $region70: #{forward.1} parent=1 // pred_check
      _
    $region71: #{forward.1} parent=1 // pred_check_branch
      %2817 = sbr.rel (0) target = $region73
    $region72: #{forward.1} parent=1 // pred_region
      %s2819 = ssub.s32 256, 256
      %2820 = vsyncadd [#allocation15], %s2819
      %s2821 = sshll.u32 [#allocation16], 4
      %s2822 = int_to_ptr.vmem [resolvable:$true] %s2821
      %2827 = dma.vmem_to_hbm [thread:$0]  %s2822, 256, %s11, [#allocation15], 128, 128, 8
    $region73: #{forward.1} parent=1 // pred_fallthru
      _
    // Predicated region
    $region74: #{forward.1} parent=1 // pred_check
      _
    $region75: #{forward.1} parent=1 // pred_check_branch
      %2829 = sbr.rel (0) target = $region77
    $region76: #{forward.1} parent=1 // pred_region
      %s2831 = ssub.s32 256, 256
      %2832 = vsyncadd [#allocation18], %s2831
      %s2833 = sshll.u32 [#allocation17], 4
      %s2834 = int_to_ptr.vmem [resolvable:$true] %s2833
      %2839 = dma.vmem_to_hbm [thread:$0]  %s2834, 256, %s12, [#allocation18], 128, 128, 8
    $region77: #{forward.1} parent=1 // pred_fallthru
      _
    // Predicated region
    $region78: #{forward.1} parent=1 // pred_check
      _
    $region79: #{forward.1} parent=1 // pred_check_branch
      %2841 = sbr.rel (0) target = $region81
    $region80: #{forward.1} parent=1 // pred_region
      %s2843 = ssub.s32 256, 256
      %2844 = vsyncadd [#allocation18], %s2843
      %s2845 = sshll.u32 [#allocation19], 4
      %s2846 = int_to_ptr.vmem [resolvable:$true] %s2845
      %2851 = dma.vmem_to_hbm [thread:$0]  %s2846, 256, %s13, [#allocation18], 128, 128, 8
    $region81: #{forward.1} parent=1 // pred_fallthru
      _
    // Predicated region
    $region82: #{forward.1} parent=1 // pred_check
      _
    $region83: #{forward.1} parent=1 // pred_check_branch
      %2853 = sbr.rel (0) target = $region85
    $region84: #{forward.1} parent=1 // pred_region
      %2854 = dma.done [#allocation4], 256
    $region85: #{forward.1} parent=1 // pred_fallthru
      _
    // Predicated region
    $region86: #{forward.1} parent=1 // pred_check
      _
    $region87: #{forward.1} parent=1 // pred_check_branch
      %2856 = sbr.rel (0) target = $region89
    $region88: #{forward.1} parent=1 // pred_region
      %2857 = dma.done [#allocation15], 256
    $region89: #{forward.1} parent=1 // pred_fallthru
      _
    // Predicated region
    $region90: #{forward.1} parent=1 // pred_check
      _
    $region91: #{forward.1} parent=1 // pred_check_branch
      %2859 = sbr.rel (0) target = $region93
    $region92: #{forward.1} parent=1 // pred_region
      %2860 = dma.done [#allocation15], 256
    $region93: #{forward.1} parent=1 // pred_fallthru
      _
    // Predicated region
    $region94: #{forward.1} parent=1 // pred_check
      _
    $region95: #{forward.1} parent=1 // pred_check_branch
      %2862 = sbr.rel (0) target = $region97
    $region96: #{forward.1} parent=1 // pred_region
      %2863 = dma.done [#allocation18], 256
    $region97: #{forward.1} parent=1 // pred_fallthru
      _
    // Predicated region
    $region98: #{forward.1} parent=1 // pred_check
      _
    $region99: #{forward.1} parent=1 // pred_check_branch
      %2865 = sbr.rel (0) target = $region101
    $region100: #{forward.1} parent=1 // pred_region
      %2866 = dma.done [#allocation18], 256
    $region101: #{forward.1} parent=1 // pred_fallthru
      _
    %2867 = vsyncpa [#allocation3], 1
    %2868 = vsyncpa [#allocation6], 1
    %2869 = vsyncpa [#allocation9], 1
    %2870 = vsyncpa [#allocation12], 1
    %2871 = vsyncpa [#allocation4], 1
    %2872 = vsyncpa [#allocation15], 1
    %2873 = vsyncpa [#allocation18], 1

</llo_original>
